<compile_context>
chip_gen: v7x
topology: tpu7x:2x2x1
jax: 0.10.0
libtpu: 0.0.40
codegen_flags: <defaults>
</compile_context>

<pallas_src>
import functools

import jax
import jax.numpy as jnp
from jax.experimental import pallas as pl
from jax.experimental.pallas import tpu as pltpu


_INV_SQRT2 = 0.7071067811865476


def _erf(x):
    # Abramowitz & Stegun 7.1.26 rational approximation of erf, |err| <= 1.5e-7.
    # Only mul/add/div/exp/abs/where -> guaranteed Mosaic lowerings (f32 & bf16).
    p = 0.3275911
    a1, a2, a3, a4, a5 = (0.254829592, -0.284496736, 1.421413741,
                          -1.453152027, 1.061405429)
    ax = jnp.abs(x)
    t = 1.0 / (1.0 + p * ax)
    poly = ((((a5 * t + a4) * t + a3) * t + a2) * t + a1) * t
    y = 1.0 - poly * jnp.exp(-(ax * ax))
    return jnp.where(x < 0, -y, y)


def _gelu(x):
    # nn.GELU() default: exact erf-based GELU.
    return 0.5 * x * (1.0 + _erf(x * _INV_SQRT2))


def _mlp_kernel(x_ref, w1_ref, b1_ref, w2_ref, b2_ref, o_ref, *, gelu_dtype):
    # fc1: in-kernel cast of the activation tile to the weight dtype (VPU),
    # MXU matmul with f32 accumulation, bias add in f32.
    x = x_ref[...].astype(w1_ref.dtype)
    h = jnp.dot(x, w1_ref[...], preferred_element_type=jnp.float32)
    h = (h + b1_ref[...]).astype(gelu_dtype)
    h = _gelu(h)                                   # GELU #1 (exact erf)
    # drop1: p=0 -> identity
    # fc2: GELU output is already in the matmul dtype on v6e/v7x (bf16).
    y = jnp.dot(h.astype(w2_ref.dtype), w2_ref[...],
                preferred_element_type=jnp.float32)
    y = (y + b2_ref[...]).astype(gelu_dtype)
    y = _gelu(y)                                   # GELU #2 (module applies it)
    # drop2: p=0 -> identity
    o_ref[...] = y.astype(o_ref.dtype)


def _round_up(a, b):
    return (a + b - 1) // b * b


def _device_config():
    """Return (gelu_dtype, tm_target, min_grid_steps, vmem_cap_bytes)."""
    kind = ""
    try:
        kind = jax.devices()[0].device_kind.lower()
    except Exception:
        pass
    try:
        vmem_phys = int(pltpu.get_tpu_info().vmem_capacity_bytes)
    except Exception:
        vmem_phys = 64 * 1024 * 1024 if "v7" in kind else 128 * 1024 * 1024
    # Leave headroom for Mosaic internal scratch; never request > 100 MiB.
    vmem_cap = min(int(vmem_phys * 0.8), 100 * 1024 * 1024)
    if "v7" in kind:
        # 2 TensorCores share the 1-D parallel grid: want >= 4 steps per core.
        return jnp.bfloat16, 256, 8, vmem_cap
    if "v6" in kind:
        # bf16 VALU exists -> GELU polynomial in bf16; big row tiles.
        return jnp.bfloat16, 512, 2, vmem_cap
    # v5e and older / unknown: no bf16 VALU -> GELU in f32; MXU-bound regime,
    # so favour large resident-weight row tiles.
    return jnp.float32, 512, 2, vmem_cap


def _vmem_footprint(tm, c_in, hidden, c_out, x_bytes, w_bytes, o_bytes):
    return (2 * tm * c_in * x_bytes                       # double-buffered x tiles
            + 2 * tm * c_out * o_bytes                    # double-buffered out tiles
            + 2 * (c_in * hidden + hidden * c_out) * w_bytes  # resident weights
            + 2 * (hidden + c_out) * 4                    # biases (f32)
            + tm * hidden * 4 + tm * c_out * 4)           # f32 intermediates


@functools.partial(jax.jit, static_argnames=("tm", "gelu_dtype", "vmem_limit"))
def _mlp_pallas_jit(x, w1, b1, w2, b2, *, tm, gelu_dtype, vmem_limit):
    B, N, c_in = x.shape
    hidden = w1.shape[1]
    c_out = w2.shape[1]
    M = B * N

    x2 = x.reshape(M, c_in)                       # free inside jit
    b1_2 = b1.reshape(1, hidden).astype(jnp.float32)
    b2_2 = b2.reshape(1, c_out).astype(jnp.float32)

    x_bytes = jnp.dtype(x.dtype).itemsize
    w_bytes = jnp.dtype(w1.dtype).itemsize

    cost = pl.CostEstimate(
        flops=2 * M * (c_in * hidden + hidden * c_out),
        transcendentals=M * (hidden + c_out),
        bytes_accessed=(M * c_in * x_bytes
                        + (c_in * hidden + hidden * c_out) * w_bytes
                        + (hidden + c_out) * 4
                        + M * c_out * x_bytes),
    )

    grid = (pl.cdiv(M, tm),)                      # ragged last block is masked
    out2 = pl.pallas_call(
        functools.partial(_mlp_kernel, gelu_dtype=gelu_dtype),
        out_shape=jax.ShapeDtypeStruct((M, c_out), x.dtype),
        grid_spec=pltpu.PrefetchScalarGridSpec(
            num_scalar_prefetch=0,
            grid=grid,
            in_specs=[
                pl.BlockSpec((tm, c_in), lambda i: (i, 0)),       # x row tile
                pl.BlockSpec((c_in, hidden), lambda i: (0, 0)),   # W1 (resident)
                pl.BlockSpec((1, hidden), lambda i: (0, 0)),      # b1
                pl.BlockSpec((hidden, c_out), lambda i: (0, 0)),  # W2 (resident)
                pl.BlockSpec((1, c_out), lambda i: (0, 0)),       # b2
            ],
            out_specs=pl.BlockSpec((tm, c_out), lambda i: (i, 0)),
        ),
        compiler_params=pltpu.CompilerParams(
            dimension_semantics=("parallel",),
            vmem_limit_bytes=vmem_limit),
        cost_estimate=cost,
    )(x2, w1, b1_2, w2, b2_2)
    return out2.reshape(B, N, c_out)


def mlp_pallas(x, w1, b1, w2, b2, *, tm=None, gelu_dtype=None):
    """Fused Mlp forward: GELU(GELU(x @ W1 + b1) @ W2 + b2). x: (B, N, C_in)."""
    B, N, c_in = x.shape
    hidden = w1.shape[1]
    c_out = w2.shape[1]
    M = B * N

    auto_gelu, tm_target, min_steps, vmem_cap = _device_config()
    if gelu_dtype is None:
        gelu_dtype = auto_gelu
    if tm is None:
        tm = tm_target

    x_bytes = jnp.dtype(x.dtype).itemsize
    w_bytes = jnp.dtype(w1.dtype).itemsize

    # Row tile: multiple of 8, no larger than the (8-rounded) row count, small
    # enough that the grid has >= min_steps steps (keeps both v7x cores busy
    # with pipelined iterations), and fits under ~half the VMEM cap.
    tm_eff = min(tm, _round_up(M, 8))
    tm_eff = min(tm_eff, max(8, _round_up(-(-M // min_steps), 8)))
    tm_eff = max(8, _round_up(tm_eff, 8))
    while (tm_eff > 8 and
           _vmem_footprint(tm_eff, c_in, hidden, c_out,
                           x_bytes, w_bytes, x_bytes) > vmem_cap // 2):
        tm_eff = max(8, _round_up(tm_eff // 2, 8))
    # TODO(synk): if the resident weights alone exceed ~60% of the VMEM cap
    # (very large MLPs on v7x's 64 MiB), add an "arbitrary" grid axis over
    # hidden chunks with a (tm, C_out) f32 accumulator instead of residency.

    footprint = _vmem_footprint(tm_eff, c_in, hidden, c_out,
                                x_bytes, w_bytes, x_bytes)
    vmem_limit = int(min(max(int(footprint * 1.25), 16 * 1024 * 1024), vmem_cap))

    return _mlp_pallas_jit(x, w1, b1, w2, b2, tm=tm_eff,
                           gelu_dtype=gelu_dtype, vmem_limit=vmem_limit)


# ----------------------------- references ---------------------------------

def mlp_reference_f32(x, w1_f32, b1, w2_f32, b2):
    # Pure f32 module math with JAX's exact-erf GELU (ground truth).
    h = jax.nn.gelu(jnp.einsum("bnc,ch->bnh", x, w1_f32) + b1, approximate=False)
    return jax.nn.gelu(jnp.einsum("bnh,ho->bno", h, w2_f32) + b2,
                       approximate=False)


def mlp_reference_matched(x, w1, b1, w2, b2, gelu_dtype):
    # Same precision recipe as the kernel: weight-dtype matmul inputs, f32
    # accumulation, GELU polynomial in gelu_dtype.
    h = jnp.dot(x.astype(w1.dtype), w1, preferred_element_type=jnp.float32) + b1
    h = _gelu(h.astype(gelu_dtype))
    y = jnp.dot(h.astype(w2.dtype), w2, preferred_element_type=jnp.float32) + b2
    y = _gelu(y.astype(gelu_dtype))
    return y.astype(x.dtype)


if __name__ == "__main__":
    # Small ViT-style shapes (lane-dense feature dims, M = B*N = 512 rows).
    B, N = 2, 256
    in_features = 128
    hidden_features = 512          # 4x, as in ViT MLP blocks
    out_features = 128             # defaults to in_features in the module

    key = jax.random.PRNGKey(0)
    kx, k1, kb1, k2, kb2 = jax.random.split(key, 5)

    x = jax.random.normal(kx, (B, N, in_features), dtype=jnp.float32)

    # PyTorch nn.Linear-style uniform init (f32 master copies).
    lim1 = in_features ** -0.5
    w1_f32 = jax.random.uniform(k1, (in_features, hidden_features),
                                minval=-lim1, maxval=lim1, dtype=jnp.float32)
    b1 = jax.random.uniform(kb1, (hidden_features,),
                            minval=-lim1, maxval=lim1, dtype=jnp.float32)
    lim2 = hidden_features ** -0.5
    w2_f32 = jax.random.uniform(k2, (hidden_features, out_features),
                                minval=-lim2, maxval=lim2, dtype=jnp.float32)
    b2 = jax.random.uniform(kb2, (out_features,),
                            minval=-lim2, maxval=lim2, dtype=jnp.float32)

    # Weights stored persistently in bf16 (cast once, outside the fused call),
    # so no per-call wrapper casts are needed.
    w1 = jax.block_until_ready(w1_f32.astype(jnp.bfloat16))
    w2 = jax.block_until_ready(w2_f32.astype(jnp.bfloat16))

    out = mlp_pallas(x, w1, b1, w2, b2)
    out = jax.block_until_ready(out)
    assert out.shape == (B, N, out_features)
    assert bool(jnp.all(jnp.isfinite(out)))

    gelu_dtype = _device_config()[0]

    # Tight check against a reference with the identical precision recipe.
    ref_m = mlp_reference_matched(x, w1, b1, w2, b2, gelu_dtype)
    tol_m = 2e-3 if gelu_dtype == jnp.float32 else 2e-2
    assert jnp.allclose(out, ref_m, atol=tol_m, rtol=tol_m), \
        float(jnp.max(jnp.abs(out - ref_m)))

    # Loose sanity check against the pure-f32 module math (bf16 matmul inputs
    # and bf16 GELU introduce small rounding differences).
    ref_f = mlp_reference_f32(x, w1_f32, b1, w2_f32, b2)
    assert jnp.allclose(out, ref_f, atol=7e-2, rtol=7e-2), \
        float(jnp.max(jnp.abs(out - ref_f)))

    print("KERNEL_OK")
</pallas_src>

<mosaic_0001>
module attributes {stable_mosaic.version = 11 : i64} {
  func.func @_mlp_kernel(%arg0: i32, %arg1: memref<256x128xf32, #tpu.memory_space<vmem>>, %arg2: memref<128x512xbf16, #tpu.memory_space<vmem>>, %arg3: memref<1x512xf32, #tpu.memory_space<vmem>>, %arg4: memref<512x128xbf16, #tpu.memory_space<vmem>>, %arg5: memref<1x128xf32, #tpu.memory_space<vmem>>, %arg6: memref<256x128xf32, #tpu.memory_space<vmem>>) attributes {dimension_semantics = [#tpu.dimension_semantics<parallel>], iteration_bounds = array<i64: 2>, scalar_prefetch = 0 : i64, scratch_operands = 0 : i64, tpu.core_type = #tpu.core_type<tc>, window_params = [{transform_indices = @transform_0, window_bounds = array<i64: 256, 128>}, {pipeline_mode = #tpu.pipeline_mode<synchronous>, transform_indices = @transform_1, window_bounds = array<i64: 128, 512>}, {pipeline_mode = #tpu.pipeline_mode<synchronous>, transform_indices = @transform_2, window_bounds = array<i64: 1, 512>}, {pipeline_mode = #tpu.pipeline_mode<synchronous>, transform_indices = @transform_3, window_bounds = array<i64: 512, 128>}, {pipeline_mode = #tpu.pipeline_mode<synchronous>, transform_indices = @transform_4, window_bounds = array<i64: 1, 128>}, {transform_indices = @transform_5, window_bounds = array<i64: 256, 128>}]} {
    %c0 = arith.constant 0 : index
    %c0_0 = arith.constant 0 : index
    %0 = vector.load %arg1[%c0, %c0_0] : memref<256x128xf32, #tpu.memory_space<vmem>>, vector<256x128xf32>
    %1 = arith.truncf %0 : vector<256x128xf32> to vector<256x128xbf16>
    %c0_1 = arith.constant 0 : index
    %c0_2 = arith.constant 0 : index
    %2 = vector.load %arg2[%c0_1, %c0_2] : memref<128x512xbf16, #tpu.memory_space<vmem>>, vector<128x512xbf16>
    %cst = arith.constant dense<0.000000e+00> : vector<256x512xf32>
    %3 = tpu.matmul %1, %2, %cst {dimension_numbers = #tpu.dot_dimension_numbers<[1], [0], [0], [1], [0, 0, 1, 1], [], []>} : vector<256x128xbf16>, vector<128x512xbf16>, vector<256x512xf32> -> vector<256x512xf32>
    %c0_3 = arith.constant 0 : index
    %c0_4 = arith.constant 0 : index
    %4 = vector.load %arg3[%c0_3, %c0_4] : memref<1x512xf32, #tpu.memory_space<vmem>>, vector<1x512xf32>
    %5 = vector.broadcast %4 : vector<1x512xf32> to vector<256x512xf32>
    %6 = arith.addf %3, %5 : vector<256x512xf32>
    %cst_5 = arith.constant 5.000000e-01 : f32
    %7 = vector.broadcast %cst_5 : f32 to vector<256x512xf32>
    %8 = arith.mulf %7, %6 : vector<256x512xf32>
    %cst_6 = arith.constant 0.707106769 : f32
    %9 = vector.broadcast %cst_6 : f32 to vector<256x512xf32>
    %10 = arith.mulf %6, %9 : vector<256x512xf32>
    %11 = math.absf %10 : vector<256x512xf32>
    %cst_7 = arith.constant 0.327591091 : f32
    %12 = vector.broadcast %cst_7 : f32 to vector<256x512xf32>
    %13 = arith.mulf %12, %11 : vector<256x512xf32>
    %cst_8 = arith.constant 1.000000e+00 : f32
    %14 = vector.broadcast %cst_8 : f32 to vector<256x512xf32>
    %15 = arith.addf %14, %13 : vector<256x512xf32>
    %cst_9 = arith.constant 1.000000e+00 : f32
    %16 = vector.broadcast %cst_9 : f32 to vector<256x512xf32>
    %17 = arith.divf %16, %15 : vector<256x512xf32>
    %cst_10 = arith.constant 1.06140542 : f32
    %18 = vector.broadcast %cst_10 : f32 to vector<256x512xf32>
    %19 = arith.mulf %18, %17 : vector<256x512xf32>
    %cst_11 = arith.constant -1.45315206 : f32
    %20 = vector.broadcast %cst_11 : f32 to vector<256x512xf32>
    %21 = arith.addf %19, %20 : vector<256x512xf32>
    %22 = arith.mulf %21, %17 : vector<256x512xf32>
    %cst_12 = arith.constant 1.42141378 : f32
    %23 = vector.broadcast %cst_12 : f32 to vector<256x512xf32>
    %24 = arith.addf %22, %23 : vector<256x512xf32>
    %25 = arith.mulf %24, %17 : vector<256x512xf32>
    %cst_13 = arith.constant -0.284496725 : f32
    %26 = vector.broadcast %cst_13 : f32 to vector<256x512xf32>
    %27 = arith.addf %25, %26 : vector<256x512xf32>
    %28 = arith.mulf %27, %17 : vector<256x512xf32>
    %cst_14 = arith.constant 0.254829586 : f32
    %29 = vector.broadcast %cst_14 : f32 to vector<256x512xf32>
    %30 = arith.addf %28, %29 : vector<256x512xf32>
    %31 = arith.mulf %30, %17 : vector<256x512xf32>
    %32 = arith.mulf %11, %11 : vector<256x512xf32>
    %cst_15 = arith.constant 0.000000e+00 : f32
    %33 = vector.broadcast %cst_15 : f32 to vector<256x512xf32>
    %34 = arith.subf %33, %32 : vector<256x512xf32>
    %35 = math.exp %34 : vector<256x512xf32>
    %36 = arith.mulf %31, %35 : vector<256x512xf32>
    %cst_16 = arith.constant 1.000000e+00 : f32
    %37 = vector.broadcast %cst_16 : f32 to vector<256x512xf32>
    %38 = arith.subf %37, %36 : vector<256x512xf32>
    %cst_17 = arith.constant 0.000000e+00 : f32
    %39 = vector.broadcast %cst_17 : f32 to vector<256x512xf32>
    %40 = arith.cmpf olt, %10, %39 : vector<256x512xf32>
    %cst_18 = arith.constant 0.000000e+00 : f32
    %41 = vector.broadcast %cst_18 : f32 to vector<256x512xf32>
    %42 = arith.subf %41, %38 : vector<256x512xf32>
    %43 = arith.select %40, %42, %38 : vector<256x512xi1>, vector<256x512xf32>
    %cst_19 = arith.constant 1.000000e+00 : f32
    %44 = vector.broadcast %cst_19 : f32 to vector<256x512xf32>
    %45 = arith.addf %44, %43 : vector<256x512xf32>
    %46 = arith.mulf %8, %45 : vector<256x512xf32>
    %47 = arith.truncf %46 : vector<256x512xf32> to vector<256x512xbf16>
    %c0_20 = arith.constant 0 : index
    %c0_21 = arith.constant 0 : index
    %48 = vector.load %arg4[%c0_20, %c0_21] : memref<512x128xbf16, #tpu.memory_space<vmem>>, vector<512x128xbf16>
    %cst_22 = arith.constant dense<0.000000e+00> : vector<256x128xf32>
    %49 = tpu.matmul %47, %48, %cst_22 {dimension_numbers = #tpu.dot_dimension_numbers<[1], [0], [0], [1], [0, 0, 1, 1], [], []>} : vector<256x512xbf16>, vector<512x128xbf16>, vector<256x128xf32> -> vector<256x128xf32>
    %c0_23 = arith.constant 0 : index
    %c0_24 = arith.constant 0 : index
    %50 = vector.load %arg5[%c0_23, %c0_24] : memref<1x128xf32, #tpu.memory_space<vmem>>, vector<1x128xf32>
    %51 = vector.broadcast %50 : vector<1x128xf32> to vector<256x128xf32>
    %52 = arith.addf %49, %51 : vector<256x128xf32>
    %cst_25 = arith.constant 5.000000e-01 : f32
    %53 = vector.broadcast %cst_25 : f32 to vector<256x128xf32>
    %54 = arith.mulf %53, %52 : vector<256x128xf32>
    %cst_26 = arith.constant 0.707106769 : f32
    %55 = vector.broadcast %cst_26 : f32 to vector<256x128xf32>
    %56 = arith.mulf %52, %55 : vector<256x128xf32>
    %57 = math.absf %56 : vector<256x128xf32>
    %cst_27 = arith.constant 0.327591091 : f32
    %58 = vector.broadcast %cst_27 : f32 to vector<256x128xf32>
    %59 = arith.mulf %58, %57 : vector<256x128xf32>
    %cst_28 = arith.constant 1.000000e+00 : f32
    %60 = vector.broadcast %cst_28 : f32 to vector<256x128xf32>
    %61 = arith.addf %60, %59 : vector<256x128xf32>
    %cst_29 = arith.constant 1.000000e+00 : f32
    %62 = vector.broadcast %cst_29 : f32 to vector<256x128xf32>
    %63 = arith.divf %62, %61 : vector<256x128xf32>
    %cst_30 = arith.constant 1.06140542 : f32
    %64 = vector.broadcast %cst_30 : f32 to vector<256x128xf32>
    %65 = arith.mulf %64, %63 : vector<256x128xf32>
    %cst_31 = arith.constant -1.45315206 : f32
    %66 = vector.broadcast %cst_31 : f32 to vector<256x128xf32>
    %67 = arith.addf %65, %66 : vector<256x128xf32>
    %68 = arith.mulf %67, %63 : vector<256x128xf32>
    %cst_32 = arith.constant 1.42141378 : f32
    %69 = vector.broadcast %cst_32 : f32 to vector<256x128xf32>
    %70 = arith.addf %68, %69 : vector<256x128xf32>
    %71 = arith.mulf %70, %63 : vector<256x128xf32>
    %cst_33 = arith.constant -0.284496725 : f32
    %72 = vector.broadcast %cst_33 : f32 to vector<256x128xf32>
    %73 = arith.addf %71, %72 : vector<256x128xf32>
    %74 = arith.mulf %73, %63 : vector<256x128xf32>
    %cst_34 = arith.constant 0.254829586 : f32
    %75 = vector.broadcast %cst_34 : f32 to vector<256x128xf32>
    %76 = arith.addf %74, %75 : vector<256x128xf32>
    %77 = arith.mulf %76, %63 : vector<256x128xf32>
    %78 = arith.mulf %57, %57 : vector<256x128xf32>
    %cst_35 = arith.constant 0.000000e+00 : f32
    %79 = vector.broadcast %cst_35 : f32 to vector<256x128xf32>
    %80 = arith.subf %79, %78 : vector<256x128xf32>
    %81 = math.exp %80 : vector<256x128xf32>
    %82 = arith.mulf %77, %81 : vector<256x128xf32>
    %cst_36 = arith.constant 1.000000e+00 : f32
    %83 = vector.broadcast %cst_36 : f32 to vector<256x128xf32>
    %84 = arith.subf %83, %82 : vector<256x128xf32>
    %cst_37 = arith.constant 0.000000e+00 : f32
    %85 = vector.broadcast %cst_37 : f32 to vector<256x128xf32>
    %86 = arith.cmpf olt, %56, %85 : vector<256x128xf32>
    %cst_38 = arith.constant 0.000000e+00 : f32
    %87 = vector.broadcast %cst_38 : f32 to vector<256x128xf32>
    %88 = arith.subf %87, %84 : vector<256x128xf32>
    %89 = arith.select %86, %88, %84 : vector<256x128xi1>, vector<256x128xf32>
    %cst_39 = arith.constant 1.000000e+00 : f32
    %90 = vector.broadcast %cst_39 : f32 to vector<256x128xf32>
    %91 = arith.addf %90, %89 : vector<256x128xf32>
    %92 = arith.mulf %54, %91 : vector<256x128xf32>
    %c0_40 = arith.constant 0 : index
    %c0_41 = arith.constant 0 : index
    %93 = vector.load %arg6[%c0_40, %c0_41] : memref<256x128xf32, #tpu.memory_space<vmem>>, vector<256x128xf32>
    tpu.vector_store %arg6[%c0_40, %c0_41], %92 {strides = array<i32>} : memref<256x128xf32, #tpu.memory_space<vmem>>, vector<256x128xf32>,
    return
  }
  func.func @transform_0(%arg0: i32) -> (i32, i32) {
    %c0_i32 = arith.constant 0 : i32
    %c0_i32_0 = arith.constant 0 : i32
    return %arg0, %c0_i32 : i32, i32
  }
  func.func @transform_1(%arg0: i32) -> (i32, i32) {
    %c0_i32 = arith.constant 0 : i32
    %c0_i32_0 = arith.constant 0 : i32
    %c0_i32_1 = arith.constant 0 : i32
    return %c0_i32, %c0_i32_0 : i32, i32
  }
  func.func @transform_2(%arg0: i32) -> (i32, i32) {
    %c0_i32 = arith.constant 0 : i32
    %c0_i32_0 = arith.constant 0 : i32
    %c0_i32_1 = arith.constant 0 : i32
    return %c0_i32, %c0_i32_0 : i32, i32
  }
  func.func @transform_3(%arg0: i32) -> (i32, i32) {
    %c0_i32 = arith.constant 0 : i32
    %c0_i32_0 = arith.constant 0 : i32
    %c0_i32_1 = arith.constant 0 : i32
    return %c0_i32, %c0_i32_0 : i32, i32
  }
  func.func @transform_4(%arg0: i32) -> (i32, i32) {
    %c0_i32 = arith.constant 0 : i32
    %c0_i32_0 = arith.constant 0 : i32
    %c0_i32_1 = arith.constant 0 : i32
    return %c0_i32, %c0_i32_0 : i32, i32
  }
  func.func @transform_5(%arg0: i32) -> (i32, i32) {
    %c0_i32 = arith.constant 0 : i32
    %c0_i32_0 = arith.constant 0 : i32
    return %arg0, %c0_i32 : i32, i32
  }
}

</mosaic_0001>

<llo_original>
// kernel: _mlp_pallas_jit.1
$region0: #{_mlp_pallas_jit.1}
  #allocation0 [shape = 'u32[]', space=smem, size = 0x4, offset = 0x4, fixed_abs, tag = 'smem constant byte address 0x4 - core index']
  #allocation1 [shape = 'u32[144,128]{1,0:T(1,128)}', space=vmem, size = 0x12000, scoped, tag = 'internal scratch']
  %s0 = inlined_call_operand.hbm [shape: f32[512,128], index: 0, kind: input, shape index: {}]
  %s1 = inlined_call_operand.hbm [shape: bf16[128,512], index: 1, kind: input, shape index: {}]
  %s2 = inlined_call_operand.vmem [shape: f32[1,512], index: 2, kind: input, shape index: {}]
  %s3 = inlined_call_operand.hbm [shape: bf16[512,128], index: 3, kind: input, shape index: {}]
  %s4 = inlined_call_operand.vmem [shape: f32[1,128], index: 4, kind: input, shape index: {}]
  %s5 = inlined_call_operand.hbm [shape: f32[512,128], index: 5, kind: output, shape index: {}]
  %s6 = sld [smem:[#allocation0]]
  $region65: #{_mlp_pallas_jit.1} parent=0
    _
  %s8 = ssub.s32 1, %s6
  %s9 = scalar_select 0, %s8, %s6
  $region1: #{_mlp_pallas_jit.1} parent=0
    #allocation2 [shape = 'u8[262144]{0}', space=vmem, size = 0x40000, scoped, tag = 'input window, operand 0']
    #allocation3 [shape = 's32[2]{0}', space=sflag, size = 0x8, scoped, tag = 'scoped memory for _mlp_pallas_jit.1']
    #allocation4 [shape = 's32[2]{0}', space=sflag, size = 0x8, scoped, tag = 'scoped memory for _mlp_pallas_jit.1']
    #allocation5 [shape = 'u8[131072]{0}', space=vmem, size = 0x20000, scoped, tag = 'input window, operand 1, single buffered']
    #allocation6 [shape = 's32[1]{0}', space=sflag, size = 0x4, scoped, tag = 'scoped memory for _mlp_pallas_jit.1']
    #allocation7 [shape = 'u8[131072]{0}', space=vmem, size = 0x20000, scoped, tag = 'input window, operand 3, single buffered']
    #allocation8 [shape = 'u8[262144]{0}', space=vmem, size = 0x40000, scoped, tag = 'output window, operand 0']
    %10 = vsyncpa [#allocation3], 0
    %s11 = scalar_lea.sflag [#allocation3], 1
    %12 = vsyncpa %s11, 0
    %13 = vsyncpa [#allocation6], 0
    %14 = vsyncpa [#allocation4], 0
    %s15 = scalar_lea.sflag [#allocation4], 1
    %16 = vsyncpa %s15, 0
    loop: start=0, step=1, limit=4
    $region2: #{_mlp_pallas_jit.1} parent=1 // loop_pre_header
      _
    $region3: #{_mlp_pallas_jit.1} parent=1 // loop_header
      %s18 = sphi 0, %s22
      %p19 = scmp.ge.s32.totalorder %s18, 4
      %s28 = sphi 0, %s30
      %s31 = sphi 0, %s28
      %s32 = sphi 0, %s31
      %s48 = sphi 0, %s32
      %s52 = sphi 0, %s52
      %s54 = sphi 0, %s52
      %s55 = sphi 0, %s54
      %s69 = sphi 0, %s55
      %s73 = sphi 0, %s73
      %s75 = sphi 0, %s73
      %s76 = sphi 0, %s75
      %s90 = sphi 0, %s76
      %s94 = sphi 0, %s94
      %s96 = sphi 0, %s94
      %s97 = sphi 0, %s96
      %s111 = sphi 0, %s97
      %s115 = sphi 0, %s115
      %s117 = sphi 0, %s115
      %s118 = sphi 0, %s117
      %s132 = sphi 0, %s118
      %s138 = sphi 0, %s140
      %s141 = sphi 0, %s138
      %s142 = sphi 0, %s141
      %s158 = sphi 0, %s142
    $region4: #{_mlp_pallas_jit.1} parent=1 // loop_header_branch
      %21 = sbr.rel (%p19) target = $region8
    $region5: #{_mlp_pallas_jit.1} parent=1 // loop_body
      %s23 = ssub.s32 %s18, 1
      %s24 = ssub.s32 %s18, 2
      %s25 = sadd.s32 %s18, 1
      %s26 = ssub.s32 %s18, %s25
      %p27 = scmp.eq.s32.totalorder %s26, 0
      %s29 = sadd.s32 %s28, 1
      %s30 = scalar_select %p27, %s28, %s29
      %p33 = pneg %p27
      %p34 = scmp.eq.s32.totalorder %s18, 1
      %p35 = por %p33, %p34
      %p36 = scmp.ne.s32.totalorder %s28, %s31
      %p37 = scmp.eq.s32.totalorder %s18, 0
      %p38 = por %p36, %p37
      %p39 = scmp.ne.s32.totalorder %s28, %s31
      %p40 = scmp.eq.s32.totalorder %s23, 1
      %p41 = por %p39, %p40
      %p42 = scmp.ne.s32.totalorder %s31, %s32
      %p43 = scmp.eq.s32.totalorder %s23, 0
      %p44 = por %p42, %p43
      %p45 = scmp.ne.s32.totalorder %s31, %s32
      %p46 = scmp.eq.s32.totalorder %s24, 1
      %p47 = por %p45, %p46
      %p49 = scmp.ne.s32.totalorder %s32, %s48
      %p50 = scmp.eq.s32.totalorder %s24, 0
      %p51 = por %p49, %p50
      %s53 = sadd.s32 %s52, 1
      %p56 = scmp.eq.s32.totalorder %s18, 1
      %p57 = scmp.ne.s32.totalorder %s52, %s54
      %p58 = scmp.eq.s32.totalorder %s18, 0
      %p59 = por %p57, %p58
      %p60 = scmp.ne.s32.totalorder %s52, %s54
      %p61 = scmp.eq.s32.totalorder %s23, 1
      %p62 = por %p60, %p61
      %p63 = scmp.ne.s32.totalorder %s54, %s55
      %p64 = scmp.eq.s32.totalorder %s23, 0
      %p65 = por %p63, %p64
      %p66 = scmp.ne.s32.totalorder %s54, %s55
      %p67 = scmp.eq.s32.totalorder %s24, 1
      %p68 = por %p66, %p67
      %p70 = scmp.ne.s32.totalorder %s55, %s69
      %p71 = scmp.eq.s32.totalorder %s24, 0
      %p72 = por %p70, %p71
      %s74 = sadd.s32 %s73, 1
      %p77 = scmp.eq.s32.totalorder %s18, 1
      %p78 = scmp.ne.s32.totalorder %s73, %s75
      %p79 = scmp.eq.s32.totalorder %s18, 0
      %p80 = por %p78, %p79
      %p81 = scmp.ne.s32.totalorder %s73, %s75
      %p82 = scmp.eq.s32.totalorder %s23, 1
      %p83 = por %p81, %p82
      %p84 = scmp.ne.s32.totalorder %s75, %s76
      %p85 = scmp.eq.s32.totalorder %s23, 0
      %p86 = por %p84, %p85
      %p87 = scmp.ne.s32.totalorder %s75, %s76
      %p88 = scmp.eq.s32.totalorder %s24, 1
      %p89 = por %p87, %p88
      %p91 = scmp.ne.s32.totalorder %s76, %s90
      %p92 = scmp.eq.s32.totalorder %s24, 0
      %p93 = por %p91, %p92
      %s95 = sadd.s32 %s94, 1
      %p98 = scmp.eq.s32.totalorder %s18, 1
      %p99 = scmp.ne.s32.totalorder %s94, %s96
      %p100 = scmp.eq.s32.totalorder %s18, 0
      %p101 = por %p99, %p100
      %p102 = scmp.ne.s32.totalorder %s94, %s96
      %p103 = scmp.eq.s32.totalorder %s23, 1
      %p104 = por %p102, %p103
      %p105 = scmp.ne.s32.totalorder %s96, %s97
      %p106 = scmp.eq.s32.totalorder %s23, 0
      %p107 = por %p105, %p106
      %p108 = scmp.ne.s32.totalorder %s96, %s97
      %p109 = scmp.eq.s32.totalorder %s24, 1
      %p110 = por %p108, %p109
      %p112 = scmp.ne.s32.totalorder %s97, %s111
      %p113 = scmp.eq.s32.totalorder %s24, 0
      %p114 = por %p112, %p113
      %s116 = sadd.s32 %s115, 1
      %p119 = scmp.eq.s32.totalorder %s18, 1
      %p120 = scmp.ne.s32.totalorder %s115, %s117
      %p121 = scmp.eq.s32.totalorder %s18, 0
      %p122 = por %p120, %p121
      %p123 = scmp.ne.s32.totalorder %s115, %s117
      %p124 = scmp.eq.s32.totalorder %s23, 1
      %p125 = por %p123, %p124
      %p126 = scmp.ne.s32.totalorder %s117, %s118
      %p127 = scmp.eq.s32.totalorder %s23, 0
      %p128 = por %p126, %p127
      %p129 = scmp.ne.s32.totalorder %s117, %s118
      %p130 = scmp.eq.s32.totalorder %s24, 1
      %p131 = por %p129, %p130
      %p133 = scmp.ne.s32.totalorder %s118, %s132
      %p134 = scmp.eq.s32.totalorder %s24, 0
      %p135 = por %p133, %p134
      %s136 = ssub.s32 %s18, %s25
      %p137 = scmp.eq.s32.totalorder %s136, 0
      %s139 = sadd.s32 %s138, 1
      %s140 = scalar_select %p137, %s138, %s139
      %p143 = pneg %p137
      %p144 = scmp.eq.s32.totalorder %s18, 1
      %p145 = por %p143, %p144
      %p146 = scmp.ne.s32.totalorder %s138, %s141
      %p147 = scmp.eq.s32.totalorder %s18, 0
      %p148 = por %p146, %p147
      %p149 = scmp.ne.s32.totalorder %s138, %s141
      %p150 = scmp.eq.s32.totalorder %s23, 1
      %p151 = por %p149, %p150
      %p152 = scmp.ne.s32.totalorder %s141, %s142
      %p153 = scmp.eq.s32.totalorder %s23, 0
      %p154 = por %p152, %p153
      %p155 = scmp.ne.s32.totalorder %s141, %s142
      %p156 = scmp.eq.s32.totalorder %s24, 1
      %p157 = por %p155, %p156
      %p159 = scmp.ne.s32.totalorder %s142, %s158
      %p160 = scmp.eq.s32.totalorder %s24, 0
      %p161 = por %p159, %p160
      %p162 = scmp.le.s32.totalorder 1, %s18
      %p163 = scmp.lt.s32.totalorder %s18, 3
      %p164 = pnand %p162, %p163
      %p165 = pneg %p164
      // Predicated region
      $region9: #{_mlp_pallas_jit.1} parent=5 // pred_check
        _
      $region10: #{_mlp_pallas_jit.1} parent=5 // pred_check_branch
        %167 = sbr.rel (%p164) target = $region12
      $region11: #{_mlp_pallas_jit.1} parent=5 // pred_region
        %s168 = ssub.s32 %s18, 1
        // Predicated region
        $region13: #{_mlp_pallas_jit.1} parent=11 // pred_check
          %p169 = pneg %p65
        $region14: #{_mlp_pallas_jit.1} parent=11 // pred_check_branch
          %171 = sbr.rel (%p169) target = $region16
        $region15: #{_mlp_pallas_jit.1} parent=11 // pred_region
          %s173 = ssub.s32 4096, 4096
          %174 = vsyncadd [#allocation6], %s173
          %s175 = sshll.u32 [#allocation5], 4
          %s176 = int_to_ptr.vmem [resolvable:$true] %s175
          %181 = dma.hbm_to_vmem [thread:$0]  %s1, 4096, %s176, [#allocation6], 256, 256, 16
        $region16: #{_mlp_pallas_jit.1} parent=11 // pred_fallthru
          _
        // Predicated region
        $region17: #{_mlp_pallas_jit.1} parent=11 // pred_check
          %p182 = pneg %p86
        $region18: #{_mlp_pallas_jit.1} parent=11 // pred_check_branch
          %184 = sbr.rel (%p182) target = $region20
        $region19: #{_mlp_pallas_jit.1} parent=11 // pred_region
          _
        $region20: #{_mlp_pallas_jit.1} parent=11 // pred_fallthru
          _
        // Predicated region
        $region21: #{_mlp_pallas_jit.1} parent=11 // pred_check
          %p185 = pneg %p107
        $region22: #{_mlp_pallas_jit.1} parent=11 // pred_check_branch
          %187 = sbr.rel (%p185) target = $region24
        $region23: #{_mlp_pallas_jit.1} parent=11 // pred_region
          %s189 = ssub.s32 4096, 4096
          %190 = vsyncadd [#allocation6], %s189
          %s191 = sshll.u32 [#allocation7], 4
          %s192 = int_to_ptr.vmem [resolvable:$true] %s191
          %197 = dma.hbm_to_vmem [thread:$0]  %s3, 4096, %s192, [#allocation6], 64, 64, 4
        $region24: #{_mlp_pallas_jit.1} parent=11 // pred_fallthru
          _
        // Predicated region
        $region25: #{_mlp_pallas_jit.1} parent=11 // pred_check
          %p198 = pneg %p128
        $region26: #{_mlp_pallas_jit.1} parent=11 // pred_check_branch
          %200 = sbr.rel (%p198) target = $region28
        $region27: #{_mlp_pallas_jit.1} parent=11 // pred_region
          _
        $region28: #{_mlp_pallas_jit.1} parent=11 // pred_fallthru
          _
      $region12: #{_mlp_pallas_jit.1} parent=5 // pred_fallthru
        _
      %p201 = scmp.lt.s32.totalorder %s18, 2
      // Predicated region
      $region29: #{_mlp_pallas_jit.1} parent=5 // pred_check
        %p202 = pneg %p201
      $region30: #{_mlp_pallas_jit.1} parent=5 // pred_check_branch
        %204 = sbr.rel (%p202) target = $region32
      $region31: #{_mlp_pallas_jit.1} parent=5 // pred_region
        // Predicated region
        $region33: #{_mlp_pallas_jit.1} parent=31 // pred_check
          %p205 = pneg %p38
        $region34: #{_mlp_pallas_jit.1} parent=31 // pred_check_branch
          %207 = sbr.rel (%p205) target = $region36
        $region35: #{_mlp_pallas_jit.1} parent=31 // pred_region
          %s208 = sand.u32 %s28, 1
          %s209 = scalar_lea.sflag [#allocation3], %s208
          %s210 = sand.u32 %s28, 1
          %s211 = smul.addr %s210, 256
          %s212 = scalar_lea.vmem [#allocation2], %s211
          %s213 = smul.u32 32, %s18
          %s215 = ssub.s32 4096, 4096
          %216 = vsyncadd %s209, %s215
          %s217 = smul.addr %s213, 128
          %s218 = scalar_lea.hbm %s0, %s217
          %s219 = sshll.u32 %s212, 4
          %s220 = int_to_ptr.vmem [resolvable:$true] %s219
          %225 = dma.hbm_to_vmem [thread:$0]  %s218, 4096, %s220, %s209, 128, 128, 8
        $region36: #{_mlp_pallas_jit.1} parent=31 // pred_fallthru
          _
      $region32: #{_mlp_pallas_jit.1} parent=5 // pred_fallthru
        _
      %p226 = scmp.le.s32.totalorder 1, %s18
      %p227 = scmp.lt.s32.totalorder %s18, 3
      %p228 = pnand %p226, %p227
      %p229 = pneg %p228
      // Predicated region
      $region37: #{_mlp_pallas_jit.1} parent=5 // pred_check
        _
      $region38: #{_mlp_pallas_jit.1} parent=5 // pred_check_branch
        %231 = sbr.rel (%p228) target = $region40
      $region39: #{_mlp_pallas_jit.1} parent=5 // pred_region
        %s232 = ssub.s32 %s18, 1
        %s233 = sand.u32 %s31, 1
        %s234 = scalar_lea.sflag [#allocation3], %s233
        %s235 = sand.u32 %s31, 1
        %s236 = smul.addr %s235, 256
        %s237 = scalar_lea.vmem [#allocation2], %s236
        // Predicated region
        $region41: #{_mlp_pallas_jit.1} parent=39 // pred_check
          %p238 = pneg %p44
        $region42: #{_mlp_pallas_jit.1} parent=39 // pred_check_branch
          %240 = sbr.rel (%p238) target = $region44
        $region43: #{_mlp_pallas_jit.1} parent=39 // pred_region
          %241 = dma.done %s234, 4096
        $region44: #{_mlp_pallas_jit.1} parent=39 // pred_fallthru
          _
        // Predicated region
        $region45: #{_mlp_pallas_jit.1} parent=39 // pred_check
          %p242 = pneg %p65
        $region46: #{_mlp_pallas_jit.1} parent=39 // pred_check_branch
          %244 = sbr.rel (%p242) target = $region48
        $region47: #{_mlp_pallas_jit.1} parent=39 // pred_region
          %245 = dma.done [#allocation6], 4096
        $region48: #{_mlp_pallas_jit.1} parent=39 // pred_fallthru
          _
        // Predicated region
        $region49: #{_mlp_pallas_jit.1} parent=39 // pred_check
          %p246 = pneg %p107
        $region50: #{_mlp_pallas_jit.1} parent=39 // pred_check_branch
          %248 = sbr.rel (%p246) target = $region52
        $region51: #{_mlp_pallas_jit.1} parent=39 // pred_region
          %249 = dma.done [#allocation6], 4096
        $region52: #{_mlp_pallas_jit.1} parent=39 // pred_fallthru
          _
        %s250 = sand.u32 %s31, 1
        %s251 = scalar_lea.sflag [#allocation3], %s250
        %s252 = sand.u32 %s31, 1
        %s253 = smul.addr %s252, 256
        %s254 = scalar_lea.vmem [#allocation2], %s253
        %p255 = pneg %p44
        %p256 = pneg %p41
        %p257 = pneg %p65
        %p258 = pneg %p62
        %p259 = pneg %p86
        %p260 = pneg %p83
        %p261 = pneg %p107
        %p262 = pneg %p104
        %p263 = pneg %p128
        %p264 = pneg %p125
        %p265 = pneg %p154
        %p266 = pneg %p151
        %s267 = sand.u32 %s141, 1
        %s268 = scalar_lea.sflag [#allocation4], %s267
        %s269 = sand.u32 %s141, 1
        %s270 = smul.addr %s269, 256
        %s271 = scalar_lea.vmem [#allocation8], %s270
        %s272 = smul.u32 32, %s23
        %s273 = smul.u32 32, %s23
        %v275 = vld [vmem:[%s237] sm:$0xff]
        %v276 = vld [vmem:[%s237 + $0x8] sm:$0xff]
        %v277 = vld [vmem:[%s237 + $0x10] sm:$0xff]
        %v278 = vld [vmem:[%s237 + $0x18] sm:$0xff]
        %v279 = vld [vmem:[%s237 + $0x20] sm:$0xff]
        %v280 = vld [vmem:[%s237 + $0x28] sm:$0xff]
        %v281 = vld [vmem:[%s237 + $0x30] sm:$0xff]
        %v282 = vld [vmem:[%s237 + $0x38] sm:$0xff]
        %v283 = vld [vmem:[%s237 + $0x40] sm:$0xff]
        %v284 = vld [vmem:[%s237 + $0x48] sm:$0xff]
        %v285 = vld [vmem:[%s237 + $0x50] sm:$0xff]
        %v286 = vld [vmem:[%s237 + $0x58] sm:$0xff]
        %v287 = vld [vmem:[%s237 + $0x60] sm:$0xff]
        %v288 = vld [vmem:[%s237 + $0x68] sm:$0xff]
        %v289 = vld [vmem:[%s237 + $0x70] sm:$0xff]
        %v290 = vld [vmem:[%s237 + $0x78] sm:$0xff]
        %v291 = vld [vmem:[%s237 + $0x80] sm:$0xff]
        %v292 = vld [vmem:[%s237 + $0x88] sm:$0xff]
        %v293 = vld [vmem:[%s237 + $0x90] sm:$0xff]
        %v294 = vld [vmem:[%s237 + $0x98] sm:$0xff]
        %v295 = vld [vmem:[%s237 + $0xa0] sm:$0xff]
        %v296 = vld [vmem:[%s237 + $0xa8] sm:$0xff]
        %v297 = vld [vmem:[%s237 + $0xb0] sm:$0xff]
        %v298 = vld [vmem:[%s237 + $0xb8] sm:$0xff]
        %v299 = vld [vmem:[%s237 + $0xc0] sm:$0xff]
        %v300 = vld [vmem:[%s237 + $0xc8] sm:$0xff]
        %v301 = vld [vmem:[%s237 + $0xd0] sm:$0xff]
        %v302 = vld [vmem:[%s237 + $0xd8] sm:$0xff]
        %v303 = vld [vmem:[%s237 + $0xe0] sm:$0xff]
        %v304 = vld [vmem:[%s237 + $0xe8] sm:$0xff]
        %v305 = vld [vmem:[%s237 + $0xf0] sm:$0xff]
        %v306 = vld [vmem:[%s237 + $0xf8] sm:$0xff]
        %v307 = vpack.c.bf16 %v276, %v275
        %v308 = vpack.c.bf16 %v278, %v277
        %v309 = vpack.c.bf16 %v280, %v279
        %v310 = vpack.c.bf16 %v282, %v281
        %v311 = vpack.c.bf16 %v284, %v283
        %v312 = vpack.c.bf16 %v286, %v285
        %v313 = vpack.c.bf16 %v288, %v287
        %v314 = vpack.c.bf16 %v290, %v289
        %v315 = vpack.c.bf16 %v292, %v291
        %v316 = vpack.c.bf16 %v294, %v293
        %v317 = vpack.c.bf16 %v296, %v295
        %v318 = vpack.c.bf16 %v298, %v297
        %v319 = vpack.c.bf16 %v300, %v299
        %v320 = vpack.c.bf16 %v302, %v301
        %v321 = vpack.c.bf16 %v304, %v303
        %v322 = vpack.c.bf16 %v306, %v305
        %v323 = vld [vmem:[#allocation5] sm:$0xff]
        %v324 = vld [vmem:[#allocation5 + $0x8] sm:$0xff]
        %v325 = vld [vmem:[#allocation5 + $0x10] sm:$0xff]
        %v326 = vld [vmem:[#allocation5 + $0x18] sm:$0xff]
        %v327 = vld [vmem:[#allocation5 + $0x20] sm:$0xff]
        %v328 = vld [vmem:[#allocation5 + $0x28] sm:$0xff]
        %v329 = vld [vmem:[#allocation5 + $0x30] sm:$0xff]
        %v330 = vld [vmem:[#allocation5 + $0x38] sm:$0xff]
        %v331 = vld [vmem:[#allocation5 + $0x40] sm:$0xff]
        %v332 = vld [vmem:[#allocation5 + $0x48] sm:$0xff]
        %v333 = vld [vmem:[#allocation5 + $0x50] sm:$0xff]
        %v334 = vld [vmem:[#allocation5 + $0x58] sm:$0xff]
        %v335 = vld [vmem:[#allocation5 + $0x60] sm:$0xff]
        %v336 = vld [vmem:[#allocation5 + $0x68] sm:$0xff]
        %v337 = vld [vmem:[#allocation5 + $0x70] sm:$0xff]
        %v338 = vld [vmem:[#allocation5 + $0x78] sm:$0xff]
        %v339 = vld [vmem:[#allocation5 + $0x80] sm:$0xff]
        %v340 = vld [vmem:[#allocation5 + $0x88] sm:$0xff]
        %v341 = vld [vmem:[#allocation5 + $0x90] sm:$0xff]
        %v342 = vld [vmem:[#allocation5 + $0x98] sm:$0xff]
        %v343 = vld [vmem:[#allocation5 + $0xa0] sm:$0xff]
        %v344 = vld [vmem:[#allocation5 + $0xa8] sm:$0xff]
        %v345 = vld [vmem:[#allocation5 + $0xb0] sm:$0xff]
        %v346 = vld [vmem:[#allocation5 + $0xb8] sm:$0xff]
        %v347 = vld [vmem:[#allocation5 + $0xc0] sm:$0xff]
        %v348 = vld [vmem:[#allocation5 + $0xc8] sm:$0xff]
        %v349 = vld [vmem:[#allocation5 + $0xd0] sm:$0xff]
        %v350 = vld [vmem:[#allocation5 + $0xd8] sm:$0xff]
        %v351 = vld [vmem:[#allocation5 + $0xe0] sm:$0xff]
        %v352 = vld [vmem:[#allocation5 + $0xe8] sm:$0xff]
        %v353 = vld [vmem:[#allocation5 + $0xf0] sm:$0xff]
        %v354 = vld [vmem:[#allocation5 + $0xf8] sm:$0xff]
        %v355 = vld [vmem:[%s2] sm:$0xf]
        %v357 = vlaneseq
        %v358 = vshrl.u32 %v357, 7
        %v359 = vsub.s32 0, %v358
        %v360 = vrot.slane %v355, %v359
        %v361 = vlaneseq
        %v362 = vshrl.u32 %v361, 7
        %v363 = vsub.s32 1, %v362
        %v364 = vrot.slane %v355, %v363
        %v365 = vlaneseq
        %v366 = vshrl.u32 %v365, 7
        %v367 = vsub.s32 2, %v366
        %v368 = vrot.slane %v355, %v367
        %v369 = vlaneseq
        %v370 = vshrl.u32 %v369, 7
        %v371 = vsub.s32 3, %v370
        %v372 = vrot.slane %v355, %v371
        %v409 = vunpack.c.l.b16 %v323
        %v410 = vunpack.c.h.b16 %v323
        %v411 = vunpack.c.l.b16 %v324
        %v412 = vunpack.c.h.b16 %v324
        %v413 = vunpack.c.l.b16 %v325
        %v414 = vunpack.c.h.b16 %v325
        %v415 = vunpack.c.l.b16 %v326
        %v416 = vunpack.c.h.b16 %v326
        %v417 = vunpack.c.l.b16 %v327
        %v418 = vunpack.c.h.b16 %v327
        %v419 = vunpack.c.l.b16 %v328
        %v420 = vunpack.c.h.b16 %v328
        %v421 = vunpack.c.l.b16 %v329
        %v422 = vunpack.c.h.b16 %v329
        %v423 = vunpack.c.l.b16 %v330
        %v424 = vunpack.c.h.b16 %v330
        %v425 = vunpack.c.l.b16 %v331
        %v426 = vunpack.c.h.b16 %v331
        %v427 = vunpack.c.l.b16 %v332
        %v428 = vunpack.c.h.b16 %v332
        %v429 = vunpack.c.l.b16 %v333
        %v430 = vunpack.c.h.b16 %v333
        %v431 = vunpack.c.l.b16 %v334
        %v432 = vunpack.c.h.b16 %v334
        %v433 = vunpack.c.l.b16 %v335
        %v434 = vunpack.c.h.b16 %v335
        %v435 = vunpack.c.l.b16 %v336
        %v436 = vunpack.c.h.b16 %v336
        %v437 = vunpack.c.l.b16 %v337
        %v438 = vunpack.c.h.b16 %v337
        %v439 = vunpack.c.l.b16 %v338
        %v440 = vunpack.c.h.b16 %v338
        %v441 = vunpack.c.l.b16 %v339
        %v442 = vunpack.c.h.b16 %v339
        %v443 = vunpack.c.l.b16 %v340
        %v444 = vunpack.c.h.b16 %v340
        %v445 = vunpack.c.l.b16 %v341
        %v446 = vunpack.c.h.b16 %v341
        %v447 = vunpack.c.l.b16 %v342
        %v448 = vunpack.c.h.b16 %v342
        %v449 = vunpack.c.l.b16 %v343
        %v450 = vunpack.c.h.b16 %v343
        %v451 = vunpack.c.l.b16 %v344
        %v452 = vunpack.c.h.b16 %v344
        %v453 = vunpack.c.l.b16 %v345
        %v454 = vunpack.c.h.b16 %v345
        %v455 = vunpack.c.l.b16 %v346
        %v456 = vunpack.c.h.b16 %v346
        %v457 = vunpack.c.l.b16 %v347
        %v458 = vunpack.c.h.b16 %v347
        %v459 = vunpack.c.l.b16 %v348
        %v460 = vunpack.c.h.b16 %v348
        %v461 = vunpack.c.l.b16 %v349
        %v462 = vunpack.c.h.b16 %v349
        %v463 = vunpack.c.l.b16 %v350
        %v464 = vunpack.c.h.b16 %v350
        %v465 = vunpack.c.l.b16 %v351
        %v466 = vunpack.c.h.b16 %v351
        %v467 = vunpack.c.l.b16 %v352
        %v468 = vunpack.c.h.b16 %v352
        %v469 = vunpack.c.l.b16 %v353
        %v470 = vunpack.c.h.b16 %v353
        %v471 = vunpack.c.l.b16 %v354
        %v472 = vunpack.c.h.b16 %v354
        %v473 = vpack.c.b16 %v413, %v409
        %v474 = vpack.c.b16 %v414, %v410
        %v475 = vpack.c.b16 %v415, %v411
        %v476 = vpack.c.b16 %v416, %v412
        %v477 = vpack.c.b16 %v421, %v417
        %v478 = vpack.c.b16 %v422, %v418
        %v479 = vpack.c.b16 %v423, %v419
        %v480 = vpack.c.b16 %v424, %v420
        %v481 = vpack.c.b16 %v429, %v425
        %v482 = vpack.c.b16 %v430, %v426
        %v483 = vpack.c.b16 %v431, %v427
        %v484 = vpack.c.b16 %v432, %v428
        %v485 = vpack.c.b16 %v437, %v433
        %v486 = vpack.c.b16 %v438, %v434
        %v487 = vpack.c.b16 %v439, %v435
        %v488 = vpack.c.b16 %v440, %v436
        %v489 = vpack.c.b16 %v445, %v441
        %v490 = vpack.c.b16 %v446, %v442
        %v491 = vpack.c.b16 %v447, %v443
        %v492 = vpack.c.b16 %v448, %v444
        %v493 = vpack.c.b16 %v453, %v449
        %v494 = vpack.c.b16 %v454, %v450
        %v495 = vpack.c.b16 %v455, %v451
        %v496 = vpack.c.b16 %v456, %v452
        %v497 = vpack.c.b16 %v461, %v457
        %v498 = vpack.c.b16 %v462, %v458
        %v499 = vpack.c.b16 %v463, %v459
        %v500 = vpack.c.b16 %v464, %v460
        %v501 = vpack.c.b16 %v469, %v465
        %v502 = vpack.c.b16 %v470, %v466
        %v503 = vpack.c.b16 %v471, %v467
        %v504 = vpack.c.b16 %v472, %v468
        %537 = vmatprep.subr.bf16.mxu0 %v474
        %538 = vmatpush1.bf16.msra.mxu0 %v473
        %539 = vmatprep.subr.bf16.mxu0 %v478
        %540 = vmatpush1.bf16.msra.mxu0 %v477
        %541 = vmatprep.subr.bf16.mxu0 %v482
        %542 = vmatpush1.bf16.msra.mxu0 %v481
        %543 = vmatprep.subr.bf16.mxu0 %v486
        %544 = vmatpush1.bf16.msra.mxu0 %v485
        %545 = vmatprep.subr.bf16.mxu0 %v490
        %546 = vmatpush1.bf16.msra.mxu0 %v489
        %547 = vmatprep.subr.bf16.mxu0 %v494
        %548 = vmatpush1.bf16.msra.mxu0 %v493
        %549 = vmatprep.subr.bf16.mxu0 %v498
        %550 = vmatpush1.bf16.msra.mxu0 %v497
        %551 = vmatprep.subr.bf16.mxu0 %v502
        %552 = vmatpush1.bf16.msra.mxu0 %v501
        %553 = vmatprep.subr.bf16.mxu0 0
        %554 = vmatpush1.bf16.msra.mxu0 0
        %555 = vmatprep.subr.bf16.mxu0 0
        %556 = vmatpush1.bf16.msra.mxu0 0
        %557 = vmatprep.subr.bf16.mxu0 0
        %558 = vmatpush1.bf16.msra.mxu0 0
        %559 = vmatprep.subr.bf16.mxu0 0
        %560 = vmatpush1.bf16.msra.mxu0 0
        %561 = vmatprep.subr.bf16.mxu0 0
        %562 = vmatpush1.bf16.msra.mxu0 0
        %563 = vmatprep.subr.bf16.mxu0 0
        %564 = vmatpush1.bf16.msra.mxu0 0
        %565 = vmatprep.subr.bf16.mxu0 0
        %566 = vmatpush1.bf16.msra.mxu0 0
        %567 = vmatprep.subr.bf16.mxu0 0
        %568 = vmatpush1.bf16.msra.mxu0 0
        %569 = vmatprep.mubr.bf16.mxu0 0
        %570 = vmatmul.mubr.bf16.gmra.mrb[0].mxu0 %v307
        %v571 = vpop.f32.mrb[0].mxu0
        %v572 = vadd.f32 %v360, %v571
        %v573 = vpop.f32.mrb[0].mxu0
        %v574 = vadd.f32 %v364, %v573
        %v575 = vpop.f32.mrb[0].mxu0
        %v576 = vadd.f32 %v360, %v575
        %v577 = vpop.f32.mrb[0].mxu0
        %v578 = vadd.f32 %v364, %v577
        %579 = vmatprep.mubr.bf16.mxu0 0
        %580 = vmatmul.mubr.bf16.gmra.mrb[0].mxu0 %v308
        %v581 = vpop.f32.mrb[0].mxu0
        %v582 = vadd.f32 %v360, %v581
        %v583 = vpop.f32.mrb[0].mxu0
        %v584 = vadd.f32 %v364, %v583
        %v585 = vpop.f32.mrb[0].mxu0
        %v586 = vadd.f32 %v360, %v585
        %v587 = vpop.f32.mrb[0].mxu0
        %v588 = vadd.f32 %v364, %v587
        %589 = vmatprep.mubr.bf16.mxu0 0
        %590 = vmatmul.mubr.bf16.gmra.mrb[0].mxu0 %v309
        %v591 = vpop.f32.mrb[0].mxu0
        %v592 = vadd.f32 %v360, %v591
        %v593 = vpop.f32.mrb[0].mxu0
        %v594 = vadd.f32 %v364, %v593
        %v595 = vpop.f32.mrb[0].mxu0
        %v596 = vadd.f32 %v360, %v595
        %v597 = vpop.f32.mrb[0].mxu0
        %v598 = vadd.f32 %v364, %v597
        %599 = vmatprep.mubr.bf16.mxu0 0
        %600 = vmatmul.mubr.bf16.gmra.mrb[0].mxu0 %v310
        %v601 = vpop.f32.mrb[0].mxu0
        %v602 = vadd.f32 %v360, %v601
        %v603 = vpop.f32.mrb[0].mxu0
        %v604 = vadd.f32 %v364, %v603
        %v605 = vpop.f32.mrb[0].mxu0
        %v606 = vadd.f32 %v360, %v605
        %v607 = vpop.f32.mrb[0].mxu0
        %v608 = vadd.f32 %v364, %v607
        %609 = vmatprep.mubr.bf16.mxu0 0
        %610 = vmatmul.mubr.bf16.gmra.mrb[0].mxu0 %v311
        %v611 = vpop.f32.mrb[0].mxu0
        %v612 = vadd.f32 %v360, %v611
        %v613 = vpop.f32.mrb[0].mxu0
        %v614 = vadd.f32 %v364, %v613
        %v615 = vpop.f32.mrb[0].mxu0
        %v616 = vadd.f32 %v360, %v615
        %v617 = vpop.f32.mrb[0].mxu0
        %v618 = vadd.f32 %v364, %v617
        %619 = vmatprep.mubr.bf16.mxu0 0
        %620 = vmatmul.mubr.bf16.gmra.mrb[0].mxu0 %v312
        %v621 = vpop.f32.mrb[0].mxu0
        %v622 = vadd.f32 %v360, %v621
        %v623 = vpop.f32.mrb[0].mxu0
        %v624 = vadd.f32 %v364, %v623
        %v625 = vpop.f32.mrb[0].mxu0
        %v626 = vadd.f32 %v360, %v625
        %v627 = vpop.f32.mrb[0].mxu0
        %v628 = vadd.f32 %v364, %v627
        %629 = vmatprep.mubr.bf16.mxu0 0
        %630 = vmatmul.mubr.bf16.gmra.mrb[0].mxu0 %v313
        %v631 = vpop.f32.mrb[0].mxu0
        %v632 = vadd.f32 %v360, %v631
        %v633 = vpop.f32.mrb[0].mxu0
        %v634 = vadd.f32 %v364, %v633
        %v635 = vpop.f32.mrb[0].mxu0
        %v636 = vadd.f32 %v360, %v635
        %v637 = vpop.f32.mrb[0].mxu0
        %v638 = vadd.f32 %v364, %v637
        %639 = vmatprep.mubr.bf16.mxu0 0
        %640 = vmatmul.mubr.bf16.gmra.mrb[0].mxu0 %v314
        %v641 = vpop.f32.mrb[0].mxu0
        %v642 = vadd.f32 %v360, %v641
        %v643 = vpop.f32.mrb[0].mxu0
        %v644 = vadd.f32 %v364, %v643
        %v645 = vpop.f32.mrb[0].mxu0
        %v646 = vadd.f32 %v360, %v645
        %v647 = vpop.f32.mrb[0].mxu0
        %v648 = vadd.f32 %v364, %v647
        %649 = vmatprep.mubr.bf16.mxu0 0
        %650 = vmatmul.mubr.bf16.gmra.mrb[0].mxu0 %v315
        %v651 = vpop.f32.mrb[0].mxu0
        %v652 = vadd.f32 %v360, %v651
        %v653 = vpop.f32.mrb[0].mxu0
        %v654 = vadd.f32 %v364, %v653
        %v655 = vpop.f32.mrb[0].mxu0
        %v656 = vadd.f32 %v360, %v655
        %v657 = vpop.f32.mrb[0].mxu0
        %v658 = vadd.f32 %v364, %v657
        %659 = vmatprep.mubr.bf16.mxu0 0
        %660 = vmatmul.mubr.bf16.gmra.mrb[0].mxu0 %v316
        %v661 = vpop.f32.mrb[0].mxu0
        %v662 = vadd.f32 %v360, %v661
        %v663 = vpop.f32.mrb[0].mxu0
        %v664 = vadd.f32 %v364, %v663
        %v665 = vpop.f32.mrb[0].mxu0
        %v666 = vadd.f32 %v360, %v665
        %v667 = vpop.f32.mrb[0].mxu0
        %v668 = vadd.f32 %v364, %v667
        %669 = vmatprep.mubr.bf16.mxu0 0
        %670 = vmatmul.mubr.bf16.gmra.mrb[0].mxu0 %v317
        %v671 = vpop.f32.mrb[0].mxu0
        %v672 = vadd.f32 %v360, %v671
        %v673 = vpop.f32.mrb[0].mxu0
        %v674 = vadd.f32 %v364, %v673
        %v675 = vpop.f32.mrb[0].mxu0
        %v676 = vadd.f32 %v360, %v675
        %v677 = vpop.f32.mrb[0].mxu0
        %v678 = vadd.f32 %v364, %v677
        %679 = vmatprep.mubr.bf16.mxu0 0
        %680 = vmatmul.mubr.bf16.gmra.mrb[0].mxu0 %v318
        %v681 = vpop.f32.mrb[0].mxu0
        %v682 = vadd.f32 %v360, %v681
        %v683 = vpop.f32.mrb[0].mxu0
        %v684 = vadd.f32 %v364, %v683
        %v685 = vpop.f32.mrb[0].mxu0
        %v686 = vadd.f32 %v360, %v685
        %v687 = vpop.f32.mrb[0].mxu0
        %v688 = vadd.f32 %v364, %v687
        %689 = vmatprep.mubr.bf16.mxu0 0
        %690 = vmatmul.mubr.bf16.gmra.mrb[0].mxu0 %v319
        %v691 = vpop.f32.mrb[0].mxu0
        %v692 = vadd.f32 %v360, %v691
        %v693 = vpop.f32.mrb[0].mxu0
        %v694 = vadd.f32 %v364, %v693
        %v695 = vpop.f32.mrb[0].mxu0
        %v696 = vadd.f32 %v360, %v695
        %v697 = vpop.f32.mrb[0].mxu0
        %v698 = vadd.f32 %v364, %v697
        %699 = vmatprep.mubr.bf16.mxu0 0
        %700 = vmatmul.mubr.bf16.gmra.mrb[0].mxu0 %v320
        %v701 = vpop.f32.mrb[0].mxu0
        %v702 = vadd.f32 %v360, %v701
        %v703 = vpop.f32.mrb[0].mxu0
        %v704 = vadd.f32 %v364, %v703
        %v705 = vpop.f32.mrb[0].mxu0
        %v706 = vadd.f32 %v360, %v705
        %v707 = vpop.f32.mrb[0].mxu0
        %v708 = vadd.f32 %v364, %v707
        %709 = vmatprep.mubr.bf16.mxu0 0
        %710 = vmatmul.mubr.bf16.gmra.mrb[0].mxu0 %v321
        %v711 = vpop.f32.mrb[0].mxu0
        %v712 = vadd.f32 %v360, %v711
        %v713 = vpop.f32.mrb[0].mxu0
        %v714 = vadd.f32 %v364, %v713
        %v715 = vpop.f32.mrb[0].mxu0
        %v716 = vadd.f32 %v360, %v715
        %v717 = vpop.f32.mrb[0].mxu0
        %v718 = vadd.f32 %v364, %v717
        %719 = vmatprep.mubr.bf16.mxu0 0
        %720 = vmatmul.mubr.bf16.gmra.mrb[0].mxu0 %v322
        %v721 = vpop.f32.mrb[0].mxu0
        %v722 = vadd.f32 %v360, %v721
        %v723 = vpop.f32.mrb[0].mxu0
        %v724 = vadd.f32 %v364, %v723
        %v725 = vpop.f32.mrb[0].mxu0
        %v726 = vadd.f32 %v360, %v725
        %v727 = vpop.f32.mrb[0].mxu0
        %v728 = vadd.f32 %v364, %v727
        %729 = vdwg.mxu0
        %730 = vmatprep.subr.bf16.mxu0 %v476
        %731 = vmatpush1.bf16.msra.mxu0 %v475
        %732 = vmatprep.subr.bf16.mxu0 %v480
        %733 = vmatpush1.bf16.msra.mxu0 %v479
        %734 = vmatprep.subr.bf16.mxu0 %v484
        %735 = vmatpush1.bf16.msra.mxu0 %v483
        %736 = vmatprep.subr.bf16.mxu0 %v488
        %737 = vmatpush1.bf16.msra.mxu0 %v487
        %738 = vmatprep.subr.bf16.mxu0 %v492
        %739 = vmatpush1.bf16.msra.mxu0 %v491
        %740 = vmatprep.subr.bf16.mxu0 %v496
        %741 = vmatpush1.bf16.msra.mxu0 %v495
        %742 = vmatprep.subr.bf16.mxu0 %v500
        %743 = vmatpush1.bf16.msra.mxu0 %v499
        %744 = vmatprep.subr.bf16.mxu0 %v504
        %745 = vmatpush1.bf16.msra.mxu0 %v503
        %746 = vmatprep.subr.bf16.mxu0 0
        %747 = vmatpush1.bf16.msra.mxu0 0
        %748 = vmatprep.subr.bf16.mxu0 0
        %749 = vmatpush1.bf16.msra.mxu0 0
        %750 = vmatprep.subr.bf16.mxu0 0
        %751 = vmatpush1.bf16.msra.mxu0 0
        %752 = vmatprep.subr.bf16.mxu0 0
        %753 = vmatpush1.bf16.msra.mxu0 0
        %754 = vmatprep.subr.bf16.mxu0 0
        %755 = vmatpush1.bf16.msra.mxu0 0
        %756 = vmatprep.subr.bf16.mxu0 0
        %757 = vmatpush1.bf16.msra.mxu0 0
        %758 = vmatprep.subr.bf16.mxu0 0
        %759 = vmatpush1.bf16.msra.mxu0 0
        %760 = vmatprep.subr.bf16.mxu0 0
        %761 = vmatpush1.bf16.msra.mxu0 0
        %762 = vmatprep.mubr.bf16.mxu0 0
        %763 = vmatmul.mubr.bf16.gmra.mrb[0].mxu0 %v307
        %v764 = vpop.f32.mrb[0].mxu0
        %v765 = vadd.f32 %v368, %v764
        %v766 = vpop.f32.mrb[0].mxu0
        %v767 = vadd.f32 %v372, %v766
        %v768 = vpop.f32.mrb[0].mxu0
        %v769 = vadd.f32 %v368, %v768
        %v770 = vpop.f32.mrb[0].mxu0
        %v771 = vadd.f32 %v372, %v770
        %772 = vmatprep.mubr.bf16.mxu0 0
        %773 = vmatmul.mubr.bf16.gmra.mrb[0].mxu0 %v308
        %v774 = vpop.f32.mrb[0].mxu0
        %v775 = vadd.f32 %v368, %v774
        %v776 = vpop.f32.mrb[0].mxu0
        %v777 = vadd.f32 %v372, %v776
        %v778 = vpop.f32.mrb[0].mxu0
        %v779 = vadd.f32 %v368, %v778
        %v780 = vpop.f32.mrb[0].mxu0
        %v781 = vadd.f32 %v372, %v780
        %782 = vmatprep.mubr.bf16.mxu0 0
        %783 = vmatmul.mubr.bf16.gmra.mrb[0].mxu0 %v309
        %v784 = vpop.f32.mrb[0].mxu0
        %v785 = vadd.f32 %v368, %v784
        %v786 = vpop.f32.mrb[0].mxu0
        %v787 = vadd.f32 %v372, %v786
        %v788 = vpop.f32.mrb[0].mxu0
        %v789 = vadd.f32 %v368, %v788
        %v790 = vpop.f32.mrb[0].mxu0
        %v791 = vadd.f32 %v372, %v790
        %792 = vmatprep.mubr.bf16.mxu0 0
        %793 = vmatmul.mubr.bf16.gmra.mrb[0].mxu0 %v310
        %v794 = vpop.f32.mrb[0].mxu0
        %v795 = vadd.f32 %v368, %v794
        %v796 = vpop.f32.mrb[0].mxu0
        %v797 = vadd.f32 %v372, %v796
        %v798 = vpop.f32.mrb[0].mxu0
        %v799 = vadd.f32 %v368, %v798
        %v800 = vpop.f32.mrb[0].mxu0
        %v801 = vadd.f32 %v372, %v800
        %802 = vmatprep.mubr.bf16.mxu0 0
        %803 = vmatmul.mubr.bf16.gmra.mrb[0].mxu0 %v311
        %v804 = vpop.f32.mrb[0].mxu0
        %v805 = vadd.f32 %v368, %v804
        %v806 = vpop.f32.mrb[0].mxu0
        %v807 = vadd.f32 %v372, %v806
        %v808 = vpop.f32.mrb[0].mxu0
        %v809 = vadd.f32 %v368, %v808
        %v810 = vpop.f32.mrb[0].mxu0
        %v811 = vadd.f32 %v372, %v810
        %812 = vmatprep.mubr.bf16.mxu0 0
        %813 = vmatmul.mubr.bf16.gmra.mrb[0].mxu0 %v312
        %v814 = vpop.f32.mrb[0].mxu0
        %v815 = vadd.f32 %v368, %v814
        %v816 = vpop.f32.mrb[0].mxu0
        %v817 = vadd.f32 %v372, %v816
        %v818 = vpop.f32.mrb[0].mxu0
        %v819 = vadd.f32 %v368, %v818
        %v820 = vpop.f32.mrb[0].mxu0
        %v821 = vadd.f32 %v372, %v820
        %822 = vmatprep.mubr.bf16.mxu0 0
        %823 = vmatmul.mubr.bf16.gmra.mrb[0].mxu0 %v313
        %v824 = vpop.f32.mrb[0].mxu0
        %v825 = vadd.f32 %v368, %v824
        %v826 = vpop.f32.mrb[0].mxu0
        %v827 = vadd.f32 %v372, %v826
        %v828 = vpop.f32.mrb[0].mxu0
        %v829 = vadd.f32 %v368, %v828
        %v830 = vpop.f32.mrb[0].mxu0
        %v831 = vadd.f32 %v372, %v830
        %832 = vmatprep.mubr.bf16.mxu0 0
        %833 = vmatmul.mubr.bf16.gmra.mrb[0].mxu0 %v314
        %v834 = vpop.f32.mrb[0].mxu0
        %v835 = vadd.f32 %v368, %v834
        %v836 = vpop.f32.mrb[0].mxu0
        %v837 = vadd.f32 %v372, %v836
        %v838 = vpop.f32.mrb[0].mxu0
        %v839 = vadd.f32 %v368, %v838
        %v840 = vpop.f32.mrb[0].mxu0
        %v841 = vadd.f32 %v372, %v840
        %842 = vmatprep.mubr.bf16.mxu0 0
        %843 = vmatmul.mubr.bf16.gmra.mrb[0].mxu0 %v315
        %v844 = vpop.f32.mrb[0].mxu0
        %v845 = vadd.f32 %v368, %v844
        %v846 = vpop.f32.mrb[0].mxu0
        %v847 = vadd.f32 %v372, %v846
        %v848 = vpop.f32.mrb[0].mxu0
        %v849 = vadd.f32 %v368, %v848
        %v850 = vpop.f32.mrb[0].mxu0
        %v851 = vadd.f32 %v372, %v850
        %852 = vmatprep.mubr.bf16.mxu0 0
        %853 = vmatmul.mubr.bf16.gmra.mrb[0].mxu0 %v316
        %v854 = vpop.f32.mrb[0].mxu0
        %v855 = vadd.f32 %v368, %v854
        %v856 = vpop.f32.mrb[0].mxu0
        %v857 = vadd.f32 %v372, %v856
        %v858 = vpop.f32.mrb[0].mxu0
        %v859 = vadd.f32 %v368, %v858
        %v860 = vpop.f32.mrb[0].mxu0
        %v861 = vadd.f32 %v372, %v860
        %862 = vmatprep.mubr.bf16.mxu0 0
        %863 = vmatmul.mubr.bf16.gmra.mrb[0].mxu0 %v317
        %v864 = vpop.f32.mrb[0].mxu0
        %v865 = vadd.f32 %v368, %v864
        %v866 = vpop.f32.mrb[0].mxu0
        %v867 = vadd.f32 %v372, %v866
        %v868 = vpop.f32.mrb[0].mxu0
        %v869 = vadd.f32 %v368, %v868
        %v870 = vpop.f32.mrb[0].mxu0
        %v871 = vadd.f32 %v372, %v870
        %872 = vmatprep.mubr.bf16.mxu0 0
        %873 = vmatmul.mubr.bf16.gmra.mrb[0].mxu0 %v318
        %v874 = vpop.f32.mrb[0].mxu0
        %v875 = vadd.f32 %v368, %v874
        %v876 = vpop.f32.mrb[0].mxu0
        %v877 = vadd.f32 %v372, %v876
        %v878 = vpop.f32.mrb[0].mxu0
        %v879 = vadd.f32 %v368, %v878
        %v880 = vpop.f32.mrb[0].mxu0
        %v881 = vadd.f32 %v372, %v880
        %882 = vmatprep.mubr.bf16.mxu0 0
        %883 = vmatmul.mubr.bf16.gmra.mrb[0].mxu0 %v319
        %v884 = vpop.f32.mrb[0].mxu0
        %v885 = vadd.f32 %v368, %v884
        %v886 = vpop.f32.mrb[0].mxu0
        %v887 = vadd.f32 %v372, %v886
        %v888 = vpop.f32.mrb[0].mxu0
        %v889 = vadd.f32 %v368, %v888
        %v890 = vpop.f32.mrb[0].mxu0
        %v891 = vadd.f32 %v372, %v890
        %892 = vmatprep.mubr.bf16.mxu0 0
        %893 = vmatmul.mubr.bf16.gmra.mrb[0].mxu0 %v320
        %v894 = vpop.f32.mrb[0].mxu0
        %v895 = vadd.f32 %v368, %v894
        %v896 = vpop.f32.mrb[0].mxu0
        %v897 = vadd.f32 %v372, %v896
        %v898 = vpop.f32.mrb[0].mxu0
        %v899 = vadd.f32 %v368, %v898
        %v900 = vpop.f32.mrb[0].mxu0
        %v901 = vadd.f32 %v372, %v900
        %902 = vmatprep.mubr.bf16.mxu0 0
        %903 = vmatmul.mubr.bf16.gmra.mrb[0].mxu0 %v321
        %v904 = vpop.f32.mrb[0].mxu0
        %v905 = vadd.f32 %v368, %v904
        %v906 = vpop.f32.mrb[0].mxu0
        %v907 = vadd.f32 %v372, %v906
        %v908 = vpop.f32.mrb[0].mxu0
        %v909 = vadd.f32 %v368, %v908
        %v910 = vpop.f32.mrb[0].mxu0
        %v911 = vadd.f32 %v372, %v910
        %912 = vmatprep.mubr.bf16.mxu0 0
        %913 = vmatmul.mubr.bf16.gmra.mrb[0].mxu0 %v322
        %v914 = vpop.f32.mrb[0].mxu0
        %v915 = vadd.f32 %v368, %v914
        %v916 = vpop.f32.mrb[0].mxu0
        %v917 = vadd.f32 %v372, %v916
        %v918 = vpop.f32.mrb[0].mxu0
        %v919 = vadd.f32 %v368, %v918
        %v920 = vpop.f32.mrb[0].mxu0
        %v921 = vadd.f32 %v372, %v920
        %922 = vdwg.mxu0
        %v923 = vmul.f32 %v572, 0.5
        %v924 = vmul.f32 %v574, 0.5
        %v925 = vmul.f32 %v765, 0.5
        %v926 = vmul.f32 %v767, 0.5
        %v927 = vmul.f32 %v576, 0.5
        %v928 = vmul.f32 %v578, 0.5
        %v929 = vmul.f32 %v769, 0.5
        %v930 = vmul.f32 %v771, 0.5
        %v931 = vmul.f32 %v582, 0.5
        %v932 = vmul.f32 %v584, 0.5
        %v933 = vmul.f32 %v775, 0.5
        %v934 = vmul.f32 %v777, 0.5
        %v935 = vmul.f32 %v586, 0.5
        %v936 = vmul.f32 %v588, 0.5
        %v937 = vmul.f32 %v779, 0.5
        %v938 = vmul.f32 %v781, 0.5
        %v939 = vmul.f32 %v592, 0.5
        %v940 = vmul.f32 %v594, 0.5
        %v941 = vmul.f32 %v785, 0.5
        %v942 = vmul.f32 %v787, 0.5
        %v943 = vmul.f32 %v596, 0.5
        %v944 = vmul.f32 %v598, 0.5
        %v945 = vmul.f32 %v789, 0.5
        %v946 = vmul.f32 %v791, 0.5
        %v947 = vmul.f32 %v602, 0.5
        %v948 = vmul.f32 %v604, 0.5
        %v949 = vmul.f32 %v795, 0.5
        %v950 = vmul.f32 %v797, 0.5
        %v951 = vmul.f32 %v606, 0.5
        %v952 = vmul.f32 %v608, 0.5
        %v953 = vmul.f32 %v799, 0.5
        %v954 = vmul.f32 %v801, 0.5
        %v955 = vmul.f32 %v612, 0.5
        %v956 = vmul.f32 %v614, 0.5
        %v957 = vmul.f32 %v805, 0.5
        %v958 = vmul.f32 %v807, 0.5
        %v959 = vmul.f32 %v616, 0.5
        %v960 = vmul.f32 %v618, 0.5
        %v961 = vmul.f32 %v809, 0.5
        %v962 = vmul.f32 %v811, 0.5
        %v963 = vmul.f32 %v622, 0.5
        %v964 = vmul.f32 %v624, 0.5
        %v965 = vmul.f32 %v815, 0.5
        %v966 = vmul.f32 %v817, 0.5
        %v967 = vmul.f32 %v626, 0.5
        %v968 = vmul.f32 %v628, 0.5
        %v969 = vmul.f32 %v819, 0.5
        %v970 = vmul.f32 %v821, 0.5
        %v971 = vmul.f32 %v632, 0.5
        %v972 = vmul.f32 %v634, 0.5
        %v973 = vmul.f32 %v825, 0.5
        %v974 = vmul.f32 %v827, 0.5
        %v975 = vmul.f32 %v636, 0.5
        %v976 = vmul.f32 %v638, 0.5
        %v977 = vmul.f32 %v829, 0.5
        %v978 = vmul.f32 %v831, 0.5
        %v979 = vmul.f32 %v642, 0.5
        %v980 = vmul.f32 %v644, 0.5
        %v981 = vmul.f32 %v835, 0.5
        %v982 = vmul.f32 %v837, 0.5
        %v983 = vmul.f32 %v646, 0.5
        %v984 = vmul.f32 %v648, 0.5
        %v985 = vmul.f32 %v839, 0.5
        %v986 = vmul.f32 %v841, 0.5
        %v987 = vmul.f32 %v652, 0.5
        %v988 = vmul.f32 %v654, 0.5
        %v989 = vmul.f32 %v845, 0.5
        %v990 = vmul.f32 %v847, 0.5
        %v991 = vmul.f32 %v656, 0.5
        %v992 = vmul.f32 %v658, 0.5
        %v993 = vmul.f32 %v849, 0.5
        %v994 = vmul.f32 %v851, 0.5
        %v995 = vmul.f32 %v662, 0.5
        %v996 = vmul.f32 %v664, 0.5
        %v997 = vmul.f32 %v855, 0.5
        %v998 = vmul.f32 %v857, 0.5
        %v999 = vmul.f32 %v666, 0.5
        %v1000 = vmul.f32 %v668, 0.5
        %v1001 = vmul.f32 %v859, 0.5
        %v1002 = vmul.f32 %v861, 0.5
        %v1003 = vmul.f32 %v672, 0.5
        %v1004 = vmul.f32 %v674, 0.5
        %v1005 = vmul.f32 %v865, 0.5
        %v1006 = vmul.f32 %v867, 0.5
        %v1007 = vmul.f32 %v676, 0.5
        %v1008 = vmul.f32 %v678, 0.5
        %v1009 = vmul.f32 %v869, 0.5
        %v1010 = vmul.f32 %v871, 0.5
        %v1011 = vmul.f32 %v682, 0.5
        %v1012 = vmul.f32 %v684, 0.5
        %v1013 = vmul.f32 %v875, 0.5
        %v1014 = vmul.f32 %v877, 0.5
        %v1015 = vmul.f32 %v686, 0.5
        %v1016 = vmul.f32 %v688, 0.5
        %v1017 = vmul.f32 %v879, 0.5
        %v1018 = vmul.f32 %v881, 0.5
        %v1019 = vmul.f32 %v692, 0.5
        %v1020 = vmul.f32 %v694, 0.5
        %v1021 = vmul.f32 %v885, 0.5
        %v1022 = vmul.f32 %v887, 0.5
        %v1023 = vmul.f32 %v696, 0.5
        %v1024 = vmul.f32 %v698, 0.5
        %v1025 = vmul.f32 %v889, 0.5
        %v1026 = vmul.f32 %v891, 0.5
        %v1027 = vmul.f32 %v702, 0.5
        %v1028 = vmul.f32 %v704, 0.5
        %v1029 = vmul.f32 %v895, 0.5
        %v1030 = vmul.f32 %v897, 0.5
        %v1031 = vmul.f32 %v706, 0.5
        %v1032 = vmul.f32 %v708, 0.5
        %v1033 = vmul.f32 %v899, 0.5
        %v1034 = vmul.f32 %v901, 0.5
        %v1035 = vmul.f32 %v712, 0.5
        %v1036 = vmul.f32 %v714, 0.5
        %v1037 = vmul.f32 %v905, 0.5
        %v1038 = vmul.f32 %v907, 0.5
        %v1039 = vmul.f32 %v716, 0.5
        %v1040 = vmul.f32 %v718, 0.5
        %v1041 = vmul.f32 %v909, 0.5
        %v1042 = vmul.f32 %v911, 0.5
        %v1043 = vmul.f32 %v722, 0.5
        %v1044 = vmul.f32 %v724, 0.5
        %v1045 = vmul.f32 %v915, 0.5
        %v1046 = vmul.f32 %v917, 0.5
        %v1047 = vmul.f32 %v726, 0.5
        %v1048 = vmul.f32 %v728, 0.5
        %v1049 = vmul.f32 %v919, 0.5
        %v1050 = vmul.f32 %v921, 0.5
        %v1051 = vmul.f32 %v572, 0.70710677
        %v1052 = vmul.f32 %v574, 0.70710677
        %v1053 = vmul.f32 %v765, 0.70710677
        %v1054 = vmul.f32 %v767, 0.70710677
        %v1055 = vmul.f32 %v576, 0.70710677
        %v1056 = vmul.f32 %v578, 0.70710677
        %v1057 = vmul.f32 %v769, 0.70710677
        %v1058 = vmul.f32 %v771, 0.70710677
        %v1059 = vmul.f32 %v582, 0.70710677
        %v1060 = vmul.f32 %v584, 0.70710677
        %v1061 = vmul.f32 %v775, 0.70710677
        %v1062 = vmul.f32 %v777, 0.70710677
        %v1063 = vmul.f32 %v586, 0.70710677
        %v1064 = vmul.f32 %v588, 0.70710677
        %v1065 = vmul.f32 %v779, 0.70710677
        %v1066 = vmul.f32 %v781, 0.70710677
        %v1067 = vmul.f32 %v592, 0.70710677
        %v1068 = vmul.f32 %v594, 0.70710677
        %v1069 = vmul.f32 %v785, 0.70710677
        %v1070 = vmul.f32 %v787, 0.70710677
        %v1071 = vmul.f32 %v596, 0.70710677
        %v1072 = vmul.f32 %v598, 0.70710677
        %v1073 = vmul.f32 %v789, 0.70710677
        %v1074 = vmul.f32 %v791, 0.70710677
        %v1075 = vmul.f32 %v602, 0.70710677
        %v1076 = vmul.f32 %v604, 0.70710677
        %v1077 = vmul.f32 %v795, 0.70710677
        %v1078 = vmul.f32 %v797, 0.70710677
        %v1079 = vmul.f32 %v606, 0.70710677
        %v1080 = vmul.f32 %v608, 0.70710677
        %v1081 = vmul.f32 %v799, 0.70710677
        %v1082 = vmul.f32 %v801, 0.70710677
        %v1083 = vmul.f32 %v612, 0.70710677
        %v1084 = vmul.f32 %v614, 0.70710677
        %v1085 = vmul.f32 %v805, 0.70710677
        %v1086 = vmul.f32 %v807, 0.70710677
        %v1087 = vmul.f32 %v616, 0.70710677
        %v1088 = vmul.f32 %v618, 0.70710677
        %v1089 = vmul.f32 %v809, 0.70710677
        %v1090 = vmul.f32 %v811, 0.70710677
        %v1091 = vmul.f32 %v622, 0.70710677
        %v1092 = vmul.f32 %v624, 0.70710677
        %v1093 = vmul.f32 %v815, 0.70710677
        %v1094 = vmul.f32 %v817, 0.70710677
        %v1095 = vmul.f32 %v626, 0.70710677
        %v1096 = vmul.f32 %v628, 0.70710677
        %v1097 = vmul.f32 %v819, 0.70710677
        %v1098 = vmul.f32 %v821, 0.70710677
        %v1099 = vmul.f32 %v632, 0.70710677
        %v1100 = vmul.f32 %v634, 0.70710677
        %v1101 = vmul.f32 %v825, 0.70710677
        %v1102 = vmul.f32 %v827, 0.70710677
        %v1103 = vmul.f32 %v636, 0.70710677
        %v1104 = vmul.f32 %v638, 0.70710677
        %v1105 = vmul.f32 %v829, 0.70710677
        %v1106 = vmul.f32 %v831, 0.70710677
        %v1107 = vmul.f32 %v642, 0.70710677
        %v1108 = vmul.f32 %v644, 0.70710677
        %v1109 = vmul.f32 %v835, 0.70710677
        %v1110 = vmul.f32 %v837, 0.70710677
        %v1111 = vmul.f32 %v646, 0.70710677
        %v1112 = vmul.f32 %v648, 0.70710677
        %v1113 = vmul.f32 %v839, 0.70710677
        %v1114 = vmul.f32 %v841, 0.70710677
        %v1115 = vmul.f32 %v652, 0.70710677
        %v1116 = vmul.f32 %v654, 0.70710677
        %v1117 = vmul.f32 %v845, 0.70710677
        %v1118 = vmul.f32 %v847, 0.70710677
        %v1119 = vmul.f32 %v656, 0.70710677
        %v1120 = vmul.f32 %v658, 0.70710677
        %v1121 = vmul.f32 %v849, 0.70710677
        %v1122 = vmul.f32 %v851, 0.70710677
        %v1123 = vmul.f32 %v662, 0.70710677
        %v1124 = vmul.f32 %v664, 0.70710677
        %v1125 = vmul.f32 %v855, 0.70710677
        %v1126 = vmul.f32 %v857, 0.70710677
        %v1127 = vmul.f32 %v666, 0.70710677
        %v1128 = vmul.f32 %v668, 0.70710677
        %v1129 = vmul.f32 %v859, 0.70710677
        %v1130 = vmul.f32 %v861, 0.70710677
        %v1131 = vmul.f32 %v672, 0.70710677
        %v1132 = vmul.f32 %v674, 0.70710677
        %v1133 = vmul.f32 %v865, 0.70710677
        %v1134 = vmul.f32 %v867, 0.70710677
        %v1135 = vmul.f32 %v676, 0.70710677
        %v1136 = vmul.f32 %v678, 0.70710677
        %v1137 = vmul.f32 %v869, 0.70710677
        %v1138 = vmul.f32 %v871, 0.70710677
        %v1139 = vmul.f32 %v682, 0.70710677
        %v1140 = vmul.f32 %v684, 0.70710677
        %v1141 = vmul.f32 %v875, 0.70710677
        %v1142 = vmul.f32 %v877, 0.70710677
        %v1143 = vmul.f32 %v686, 0.70710677
        %v1144 = vmul.f32 %v688, 0.70710677
        %v1145 = vmul.f32 %v879, 0.70710677
        %v1146 = vmul.f32 %v881, 0.70710677
        %v1147 = vmul.f32 %v692, 0.70710677
        %v1148 = vmul.f32 %v694, 0.70710677
        %v1149 = vmul.f32 %v885, 0.70710677
        %v1150 = vmul.f32 %v887, 0.70710677
        %v1151 = vmul.f32 %v696, 0.70710677
        %v1152 = vmul.f32 %v698, 0.70710677
        %v1153 = vmul.f32 %v889, 0.70710677
        %v1154 = vmul.f32 %v891, 0.70710677
        %v1155 = vmul.f32 %v702, 0.70710677
        %v1156 = vmul.f32 %v704, 0.70710677
        %v1157 = vmul.f32 %v895, 0.70710677
        %v1158 = vmul.f32 %v897, 0.70710677
        %v1159 = vmul.f32 %v706, 0.70710677
        %v1160 = vmul.f32 %v708, 0.70710677
        %v1161 = vmul.f32 %v899, 0.70710677
        %v1162 = vmul.f32 %v901, 0.70710677
        %v1163 = vmul.f32 %v712, 0.70710677
        %v1164 = vmul.f32 %v714, 0.70710677
        %v1165 = vmul.f32 %v905, 0.70710677
        %v1166 = vmul.f32 %v907, 0.70710677
        %v1167 = vmul.f32 %v716, 0.70710677
        %v1168 = vmul.f32 %v718, 0.70710677
        %v1169 = vmul.f32 %v909, 0.70710677
        %v1170 = vmul.f32 %v911, 0.70710677
        %v1171 = vmul.f32 %v722, 0.70710677
        %v1172 = vmul.f32 %v724, 0.70710677
        %v1173 = vmul.f32 %v915, 0.70710677
        %v1174 = vmul.f32 %v917, 0.70710677
        %v1175 = vmul.f32 %v726, 0.70710677
        %v1176 = vmul.f32 %v728, 0.70710677
        %v1177 = vmul.f32 %v919, 0.70710677
        %v1178 = vmul.f32 %v921, 0.70710677
        %v1179 = vand.u32 2147483647, %v1051
        %v1180 = vand.u32 2147483647, %v1052
        %v1181 = vand.u32 2147483647, %v1053
        %v1182 = vand.u32 2147483647, %v1054
        %v1183 = vand.u32 2147483647, %v1055
        %v1184 = vand.u32 2147483647, %v1056
        %v1185 = vand.u32 2147483647, %v1057
        %v1186 = vand.u32 2147483647, %v1058
        %v1187 = vand.u32 2147483647, %v1059
        %v1188 = vand.u32 2147483647, %v1060
        %v1189 = vand.u32 2147483647, %v1061
        %v1190 = vand.u32 2147483647, %v1062
        %v1191 = vand.u32 2147483647, %v1063
        %v1192 = vand.u32 2147483647, %v1064
        %v1193 = vand.u32 2147483647, %v1065
        %v1194 = vand.u32 2147483647, %v1066
        %v1195 = vand.u32 2147483647, %v1067
        %v1196 = vand.u32 2147483647, %v1068
        %v1197 = vand.u32 2147483647, %v1069
        %v1198 = vand.u32 2147483647, %v1070
        %v1199 = vand.u32 2147483647, %v1071
        %v1200 = vand.u32 2147483647, %v1072
        %v1201 = vand.u32 2147483647, %v1073
        %v1202 = vand.u32 2147483647, %v1074
        %v1203 = vand.u32 2147483647, %v1075
        %v1204 = vand.u32 2147483647, %v1076
        %v1205 = vand.u32 2147483647, %v1077
        %v1206 = vand.u32 2147483647, %v1078
        %v1207 = vand.u32 2147483647, %v1079
        %v1208 = vand.u32 2147483647, %v1080
        %v1209 = vand.u32 2147483647, %v1081
        %v1210 = vand.u32 2147483647, %v1082
        %v1211 = vand.u32 2147483647, %v1083
        %v1212 = vand.u32 2147483647, %v1084
        %v1213 = vand.u32 2147483647, %v1085
        %v1214 = vand.u32 2147483647, %v1086
        %v1215 = vand.u32 2147483647, %v1087
        %v1216 = vand.u32 2147483647, %v1088
        %v1217 = vand.u32 2147483647, %v1089
        %v1218 = vand.u32 2147483647, %v1090
        %v1219 = vand.u32 2147483647, %v1091
        %v1220 = vand.u32 2147483647, %v1092
        %v1221 = vand.u32 2147483647, %v1093
        %v1222 = vand.u32 2147483647, %v1094
        %v1223 = vand.u32 2147483647, %v1095
        %v1224 = vand.u32 2147483647, %v1096
        %v1225 = vand.u32 2147483647, %v1097
        %v1226 = vand.u32 2147483647, %v1098
        %v1227 = vand.u32 2147483647, %v1099
        %v1228 = vand.u32 2147483647, %v1100
        %v1229 = vand.u32 2147483647, %v1101
        %v1230 = vand.u32 2147483647, %v1102
        %v1231 = vand.u32 2147483647, %v1103
        %v1232 = vand.u32 2147483647, %v1104
        %v1233 = vand.u32 2147483647, %v1105
        %v1234 = vand.u32 2147483647, %v1106
        %v1235 = vand.u32 2147483647, %v1107
        %v1236 = vand.u32 2147483647, %v1108
        %v1237 = vand.u32 2147483647, %v1109
        %v1238 = vand.u32 2147483647, %v1110
        %v1239 = vand.u32 2147483647, %v1111
        %v1240 = vand.u32 2147483647, %v1112
        %v1241 = vand.u32 2147483647, %v1113
        %v1242 = vand.u32 2147483647, %v1114
        %v1243 = vand.u32 2147483647, %v1115
        %v1244 = vand.u32 2147483647, %v1116
        %v1245 = vand.u32 2147483647, %v1117
        %v1246 = vand.u32 2147483647, %v1118
        %v1247 = vand.u32 2147483647, %v1119
        %v1248 = vand.u32 2147483647, %v1120
        %v1249 = vand.u32 2147483647, %v1121
        %v1250 = vand.u32 2147483647, %v1122
        %v1251 = vand.u32 2147483647, %v1123
        %v1252 = vand.u32 2147483647, %v1124
        %v1253 = vand.u32 2147483647, %v1125
        %v1254 = vand.u32 2147483647, %v1126
        %v1255 = vand.u32 2147483647, %v1127
        %v1256 = vand.u32 2147483647, %v1128
        %v1257 = vand.u32 2147483647, %v1129
        %v1258 = vand.u32 2147483647, %v1130
        %v1259 = vand.u32 2147483647, %v1131
        %v1260 = vand.u32 2147483647, %v1132
        %v1261 = vand.u32 2147483647, %v1133
        %v1262 = vand.u32 2147483647, %v1134
        %v1263 = vand.u32 2147483647, %v1135
        %v1264 = vand.u32 2147483647, %v1136
        %v1265 = vand.u32 2147483647, %v1137
        %v1266 = vand.u32 2147483647, %v1138
        %v1267 = vand.u32 2147483647, %v1139
        %v1268 = vand.u32 2147483647, %v1140
        %v1269 = vand.u32 2147483647, %v1141
        %v1270 = vand.u32 2147483647, %v1142
        %v1271 = vand.u32 2147483647, %v1143
        %v1272 = vand.u32 2147483647, %v1144
        %v1273 = vand.u32 2147483647, %v1145
        %v1274 = vand.u32 2147483647, %v1146
        %v1275 = vand.u32 2147483647, %v1147
        %v1276 = vand.u32 2147483647, %v1148
        %v1277 = vand.u32 2147483647, %v1149
        %v1278 = vand.u32 2147483647, %v1150
        %v1279 = vand.u32 2147483647, %v1151
        %v1280 = vand.u32 2147483647, %v1152
        %v1281 = vand.u32 2147483647, %v1153
        %v1282 = vand.u32 2147483647, %v1154
        %v1283 = vand.u32 2147483647, %v1155
        %v1284 = vand.u32 2147483647, %v1156
        %v1285 = vand.u32 2147483647, %v1157
        %v1286 = vand.u32 2147483647, %v1158
        %v1287 = vand.u32 2147483647, %v1159
        %v1288 = vand.u32 2147483647, %v1160
        %v1289 = vand.u32 2147483647, %v1161
        %v1290 = vand.u32 2147483647, %v1162
        %v1291 = vand.u32 2147483647, %v1163
        %v1292 = vand.u32 2147483647, %v1164
        %v1293 = vand.u32 2147483647, %v1165
        %v1294 = vand.u32 2147483647, %v1166
        %v1295 = vand.u32 2147483647, %v1167
        %v1296 = vand.u32 2147483647, %v1168
        %v1297 = vand.u32 2147483647, %v1169
        %v1298 = vand.u32 2147483647, %v1170
        %v1299 = vand.u32 2147483647, %v1171
        %v1300 = vand.u32 2147483647, %v1172
        %v1301 = vand.u32 2147483647, %v1173
        %v1302 = vand.u32 2147483647, %v1174
        %v1303 = vand.u32 2147483647, %v1175
        %v1304 = vand.u32 2147483647, %v1176
        %v1305 = vand.u32 2147483647, %v1177
        %v1306 = vand.u32 2147483647, %v1178
        %v1307 = vmul.f32 %v1179, 0.3275911
        %v1308 = vmul.f32 %v1180, 0.3275911
        %v1309 = vmul.f32 %v1181, 0.3275911
        %v1310 = vmul.f32 %v1182, 0.3275911
        %v1311 = vmul.f32 %v1183, 0.3275911
        %v1312 = vmul.f32 %v1184, 0.3275911
        %v1313 = vmul.f32 %v1185, 0.3275911
        %v1314 = vmul.f32 %v1186, 0.3275911
        %v1315 = vmul.f32 %v1187, 0.3275911
        %v1316 = vmul.f32 %v1188, 0.3275911
        %v1317 = vmul.f32 %v1189, 0.3275911
        %v1318 = vmul.f32 %v1190, 0.3275911
        %v1319 = vmul.f32 %v1191, 0.3275911
        %v1320 = vmul.f32 %v1192, 0.3275911
        %v1321 = vmul.f32 %v1193, 0.3275911
        %v1322 = vmul.f32 %v1194, 0.3275911
        %v1323 = vmul.f32 %v1195, 0.3275911
        %v1324 = vmul.f32 %v1196, 0.3275911
        %v1325 = vmul.f32 %v1197, 0.3275911
        %v1326 = vmul.f32 %v1198, 0.3275911
        %v1327 = vmul.f32 %v1199, 0.3275911
        %v1328 = vmul.f32 %v1200, 0.3275911
        %v1329 = vmul.f32 %v1201, 0.3275911
        %v1330 = vmul.f32 %v1202, 0.3275911
        %v1331 = vmul.f32 %v1203, 0.3275911
        %v1332 = vmul.f32 %v1204, 0.3275911
        %v1333 = vmul.f32 %v1205, 0.3275911
        %v1334 = vmul.f32 %v1206, 0.3275911
        %v1335 = vmul.f32 %v1207, 0.3275911
        %v1336 = vmul.f32 %v1208, 0.3275911
        %v1337 = vmul.f32 %v1209, 0.3275911
        %v1338 = vmul.f32 %v1210, 0.3275911
        %v1339 = vmul.f32 %v1211, 0.3275911
        %v1340 = vmul.f32 %v1212, 0.3275911
        %v1341 = vmul.f32 %v1213, 0.3275911
        %v1342 = vmul.f32 %v1214, 0.3275911
        %v1343 = vmul.f32 %v1215, 0.3275911
        %v1344 = vmul.f32 %v1216, 0.3275911
        %v1345 = vmul.f32 %v1217, 0.3275911
        %v1346 = vmul.f32 %v1218, 0.3275911
        %v1347 = vmul.f32 %v1219, 0.3275911
        %v1348 = vmul.f32 %v1220, 0.3275911
        %v1349 = vmul.f32 %v1221, 0.3275911
        %v1350 = vmul.f32 %v1222, 0.3275911
        %v1351 = vmul.f32 %v1223, 0.3275911
        %v1352 = vmul.f32 %v1224, 0.3275911
        %v1353 = vmul.f32 %v1225, 0.3275911
        %v1354 = vmul.f32 %v1226, 0.3275911
        %v1355 = vmul.f32 %v1227, 0.3275911
        %v1356 = vmul.f32 %v1228, 0.3275911
        %v1357 = vmul.f32 %v1229, 0.3275911
        %v1358 = vmul.f32 %v1230, 0.3275911
        %v1359 = vmul.f32 %v1231, 0.3275911
        %v1360 = vmul.f32 %v1232, 0.3275911
        %v1361 = vmul.f32 %v1233, 0.3275911
        %v1362 = vmul.f32 %v1234, 0.3275911
        %v1363 = vmul.f32 %v1235, 0.3275911
        %v1364 = vmul.f32 %v1236, 0.3275911
        %v1365 = vmul.f32 %v1237, 0.3275911
        %v1366 = vmul.f32 %v1238, 0.3275911
        %v1367 = vmul.f32 %v1239, 0.3275911
        %v1368 = vmul.f32 %v1240, 0.3275911
        %v1369 = vmul.f32 %v1241, 0.3275911
        %v1370 = vmul.f32 %v1242, 0.3275911
        %v1371 = vmul.f32 %v1243, 0.3275911
        %v1372 = vmul.f32 %v1244, 0.3275911
        %v1373 = vmul.f32 %v1245, 0.3275911
        %v1374 = vmul.f32 %v1246, 0.3275911
        %v1375 = vmul.f32 %v1247, 0.3275911
        %v1376 = vmul.f32 %v1248, 0.3275911
        %v1377 = vmul.f32 %v1249, 0.3275911
        %v1378 = vmul.f32 %v1250, 0.3275911
        %v1379 = vmul.f32 %v1251, 0.3275911
        %v1380 = vmul.f32 %v1252, 0.3275911
        %v1381 = vmul.f32 %v1253, 0.3275911
        %v1382 = vmul.f32 %v1254, 0.3275911
        %v1383 = vmul.f32 %v1255, 0.3275911
        %v1384 = vmul.f32 %v1256, 0.3275911
        %v1385 = vmul.f32 %v1257, 0.3275911
        %v1386 = vmul.f32 %v1258, 0.3275911
        %v1387 = vmul.f32 %v1259, 0.3275911
        %v1388 = vmul.f32 %v1260, 0.3275911
        %v1389 = vmul.f32 %v1261, 0.3275911
        %v1390 = vmul.f32 %v1262, 0.3275911
        %v1391 = vmul.f32 %v1263, 0.3275911
        %v1392 = vmul.f32 %v1264, 0.3275911
        %v1393 = vmul.f32 %v1265, 0.3275911
        %v1394 = vmul.f32 %v1266, 0.3275911
        %v1395 = vmul.f32 %v1267, 0.3275911
        %v1396 = vmul.f32 %v1268, 0.3275911
        %v1397 = vmul.f32 %v1269, 0.3275911
        %v1398 = vmul.f32 %v1270, 0.3275911
        %v1399 = vmul.f32 %v1271, 0.3275911
        %v1400 = vmul.f32 %v1272, 0.3275911
        %v1401 = vmul.f32 %v1273, 0.3275911
        %v1402 = vmul.f32 %v1274, 0.3275911
        %v1403 = vmul.f32 %v1275, 0.3275911
        %v1404 = vmul.f32 %v1276, 0.3275911
        %v1405 = vmul.f32 %v1277, 0.3275911
        %v1406 = vmul.f32 %v1278, 0.3275911
        %v1407 = vmul.f32 %v1279, 0.3275911
        %v1408 = vmul.f32 %v1280, 0.3275911
        %v1409 = vmul.f32 %v1281, 0.3275911
        %v1410 = vmul.f32 %v1282, 0.3275911
        %v1411 = vmul.f32 %v1283, 0.3275911
        %v1412 = vmul.f32 %v1284, 0.3275911
        %v1413 = vmul.f32 %v1285, 0.3275911
        %v1414 = vmul.f32 %v1286, 0.3275911
        %v1415 = vmul.f32 %v1287, 0.3275911
        %v1416 = vmul.f32 %v1288, 0.3275911
        %v1417 = vmul.f32 %v1289, 0.3275911
        %v1418 = vmul.f32 %v1290, 0.3275911
        %v1419 = vmul.f32 %v1291, 0.3275911
        %v1420 = vmul.f32 %v1292, 0.3275911
        %v1421 = vmul.f32 %v1293, 0.3275911
        %v1422 = vmul.f32 %v1294, 0.3275911
        %v1423 = vmul.f32 %v1295, 0.3275911
        %v1424 = vmul.f32 %v1296, 0.3275911
        %v1425 = vmul.f32 %v1297, 0.3275911
        %v1426 = vmul.f32 %v1298, 0.3275911
        %v1427 = vmul.f32 %v1299, 0.3275911
        %v1428 = vmul.f32 %v1300, 0.3275911
        %v1429 = vmul.f32 %v1301, 0.3275911
        %v1430 = vmul.f32 %v1302, 0.3275911
        %v1431 = vmul.f32 %v1303, 0.3275911
        %v1432 = vmul.f32 %v1304, 0.3275911
        %v1433 = vmul.f32 %v1305, 0.3275911
        %v1434 = vmul.f32 %v1306, 0.3275911
        %v1435 = vadd.f32 %v1307, 1.0
        %v1436 = vadd.f32 %v1308, 1.0
        %v1437 = vadd.f32 %v1309, 1.0
        %v1438 = vadd.f32 %v1310, 1.0
        %v1439 = vadd.f32 %v1311, 1.0
        %v1440 = vadd.f32 %v1312, 1.0
        %v1441 = vadd.f32 %v1313, 1.0
        %v1442 = vadd.f32 %v1314, 1.0
        %v1443 = vadd.f32 %v1315, 1.0
        %v1444 = vadd.f32 %v1316, 1.0
        %v1445 = vadd.f32 %v1317, 1.0
        %v1446 = vadd.f32 %v1318, 1.0
        %v1447 = vadd.f32 %v1319, 1.0
        %v1448 = vadd.f32 %v1320, 1.0
        %v1449 = vadd.f32 %v1321, 1.0
        %v1450 = vadd.f32 %v1322, 1.0
        %v1451 = vadd.f32 %v1323, 1.0
        %v1452 = vadd.f32 %v1324, 1.0
        %v1453 = vadd.f32 %v1325, 1.0
        %v1454 = vadd.f32 %v1326, 1.0
        %v1455 = vadd.f32 %v1327, 1.0
        %v1456 = vadd.f32 %v1328, 1.0
        %v1457 = vadd.f32 %v1329, 1.0
        %v1458 = vadd.f32 %v1330, 1.0
        %v1459 = vadd.f32 %v1331, 1.0
        %v1460 = vadd.f32 %v1332, 1.0
        %v1461 = vadd.f32 %v1333, 1.0
        %v1462 = vadd.f32 %v1334, 1.0
        %v1463 = vadd.f32 %v1335, 1.0
        %v1464 = vadd.f32 %v1336, 1.0
        %v1465 = vadd.f32 %v1337, 1.0
        %v1466 = vadd.f32 %v1338, 1.0
        %v1467 = vadd.f32 %v1339, 1.0
        %v1468 = vadd.f32 %v1340, 1.0
        %v1469 = vadd.f32 %v1341, 1.0
        %v1470 = vadd.f32 %v1342, 1.0
        %v1471 = vadd.f32 %v1343, 1.0
        %v1472 = vadd.f32 %v1344, 1.0
        %v1473 = vadd.f32 %v1345, 1.0
        %v1474 = vadd.f32 %v1346, 1.0
        %v1475 = vadd.f32 %v1347, 1.0
        %v1476 = vadd.f32 %v1348, 1.0
        %v1477 = vadd.f32 %v1349, 1.0
        %v1478 = vadd.f32 %v1350, 1.0
        %v1479 = vadd.f32 %v1351, 1.0
        %v1480 = vadd.f32 %v1352, 1.0
        %v1481 = vadd.f32 %v1353, 1.0
        %v1482 = vadd.f32 %v1354, 1.0
        %v1483 = vadd.f32 %v1355, 1.0
        %v1484 = vadd.f32 %v1356, 1.0
        %v1485 = vadd.f32 %v1357, 1.0
        %v1486 = vadd.f32 %v1358, 1.0
        %v1487 = vadd.f32 %v1359, 1.0
        %v1488 = vadd.f32 %v1360, 1.0
        %v1489 = vadd.f32 %v1361, 1.0
        %v1490 = vadd.f32 %v1362, 1.0
        %v1491 = vadd.f32 %v1363, 1.0
        %v1492 = vadd.f32 %v1364, 1.0
        %v1493 = vadd.f32 %v1365, 1.0
        %v1494 = vadd.f32 %v1366, 1.0
        %v1495 = vadd.f32 %v1367, 1.0
        %v1496 = vadd.f32 %v1368, 1.0
        %v1497 = vadd.f32 %v1369, 1.0
        %v1498 = vadd.f32 %v1370, 1.0
        %v1499 = vadd.f32 %v1371, 1.0
        %v1500 = vadd.f32 %v1372, 1.0
        %v1501 = vadd.f32 %v1373, 1.0
        %v1502 = vadd.f32 %v1374, 1.0
        %v1503 = vadd.f32 %v1375, 1.0
        %v1504 = vadd.f32 %v1376, 1.0
        %v1505 = vadd.f32 %v1377, 1.0
        %v1506 = vadd.f32 %v1378, 1.0
        %v1507 = vadd.f32 %v1379, 1.0
        %v1508 = vadd.f32 %v1380, 1.0
        %v1509 = vadd.f32 %v1381, 1.0
        %v1510 = vadd.f32 %v1382, 1.0
        %v1511 = vadd.f32 %v1383, 1.0
        %v1512 = vadd.f32 %v1384, 1.0
        %v1513 = vadd.f32 %v1385, 1.0
        %v1514 = vadd.f32 %v1386, 1.0
        %v1515 = vadd.f32 %v1387, 1.0
        %v1516 = vadd.f32 %v1388, 1.0
        %v1517 = vadd.f32 %v1389, 1.0
        %v1518 = vadd.f32 %v1390, 1.0
        %v1519 = vadd.f32 %v1391, 1.0
        %v1520 = vadd.f32 %v1392, 1.0
        %v1521 = vadd.f32 %v1393, 1.0
        %v1522 = vadd.f32 %v1394, 1.0
        %v1523 = vadd.f32 %v1395, 1.0
        %v1524 = vadd.f32 %v1396, 1.0
        %v1525 = vadd.f32 %v1397, 1.0
        %v1526 = vadd.f32 %v1398, 1.0
        %v1527 = vadd.f32 %v1399, 1.0
        %v1528 = vadd.f32 %v1400, 1.0
        %v1529 = vadd.f32 %v1401, 1.0
        %v1530 = vadd.f32 %v1402, 1.0
        %v1531 = vadd.f32 %v1403, 1.0
        %v1532 = vadd.f32 %v1404, 1.0
        %v1533 = vadd.f32 %v1405, 1.0
        %v1534 = vadd.f32 %v1406, 1.0
        %v1535 = vadd.f32 %v1407, 1.0
        %v1536 = vadd.f32 %v1408, 1.0
        %v1537 = vadd.f32 %v1409, 1.0
        %v1538 = vadd.f32 %v1410, 1.0
        %v1539 = vadd.f32 %v1411, 1.0
        %v1540 = vadd.f32 %v1412, 1.0
        %v1541 = vadd.f32 %v1413, 1.0
        %v1542 = vadd.f32 %v1414, 1.0
        %v1543 = vadd.f32 %v1415, 1.0
        %v1544 = vadd.f32 %v1416, 1.0
        %v1545 = vadd.f32 %v1417, 1.0
        %v1546 = vadd.f32 %v1418, 1.0
        %v1547 = vadd.f32 %v1419, 1.0
        %v1548 = vadd.f32 %v1420, 1.0
        %v1549 = vadd.f32 %v1421, 1.0
        %v1550 = vadd.f32 %v1422, 1.0
        %v1551 = vadd.f32 %v1423, 1.0
        %v1552 = vadd.f32 %v1424, 1.0
        %v1553 = vadd.f32 %v1425, 1.0
        %v1554 = vadd.f32 %v1426, 1.0
        %v1555 = vadd.f32 %v1427, 1.0
        %v1556 = vadd.f32 %v1428, 1.0
        %v1557 = vadd.f32 %v1429, 1.0
        %v1558 = vadd.f32 %v1430, 1.0
        %v1559 = vadd.f32 %v1431, 1.0
        %v1560 = vadd.f32 %v1432, 1.0
        %v1561 = vadd.f32 %v1433, 1.0
        %v1562 = vadd.f32 %v1434, 1.0
        %v1563 = vrcp.pop %v1435
        %v1564 = vmul.f32 1.0, %v1563
        %v1565 = vrcp.pop %v1436
        %v1566 = vmul.f32 1.0, %v1565
        %v1567 = vrcp.pop %v1437
        %v1568 = vmul.f32 1.0, %v1567
        %v1569 = vrcp.pop %v1438
        %v1570 = vmul.f32 1.0, %v1569
        %v1571 = vrcp.pop %v1439
        %v1572 = vmul.f32 1.0, %v1571
        %v1573 = vrcp.pop %v1440
        %v1574 = vmul.f32 1.0, %v1573
        %v1575 = vrcp.pop %v1441
        %v1576 = vmul.f32 1.0, %v1575
        %v1577 = vrcp.pop %v1442
        %v1578 = vmul.f32 1.0, %v1577
        %v1579 = vrcp.pop %v1443
        %v1580 = vmul.f32 1.0, %v1579
        %v1581 = vrcp.pop %v1444
        %v1582 = vmul.f32 1.0, %v1581
        %v1583 = vrcp.pop %v1445
        %v1584 = vmul.f32 1.0, %v1583
        %v1585 = vrcp.pop %v1446
        %v1586 = vmul.f32 1.0, %v1585
        %v1587 = vrcp.pop %v1447
        %v1588 = vmul.f32 1.0, %v1587
        %v1589 = vrcp.pop %v1448
        %v1590 = vmul.f32 1.0, %v1589
        %v1591 = vrcp.pop %v1449
        %v1592 = vmul.f32 1.0, %v1591
        %v1593 = vrcp.pop %v1450
        %v1594 = vmul.f32 1.0, %v1593
        %v1595 = vrcp.pop %v1451
        %v1596 = vmul.f32 1.0, %v1595
        %v1597 = vrcp.pop %v1452
        %v1598 = vmul.f32 1.0, %v1597
        %v1599 = vrcp.pop %v1453
        %v1600 = vmul.f32 1.0, %v1599
        %v1601 = vrcp.pop %v1454
        %v1602 = vmul.f32 1.0, %v1601
        %v1603 = vrcp.pop %v1455
        %v1604 = vmul.f32 1.0, %v1603
        %v1605 = vrcp.pop %v1456
        %v1606 = vmul.f32 1.0, %v1605
        %v1607 = vrcp.pop %v1457
        %v1608 = vmul.f32 1.0, %v1607
        %v1609 = vrcp.pop %v1458
        %v1610 = vmul.f32 1.0, %v1609
        %v1611 = vrcp.pop %v1459
        %v1612 = vmul.f32 1.0, %v1611
        %v1613 = vrcp.pop %v1460
        %v1614 = vmul.f32 1.0, %v1613
        %v1615 = vrcp.pop %v1461
        %v1616 = vmul.f32 1.0, %v1615
        %v1617 = vrcp.pop %v1462
        %v1618 = vmul.f32 1.0, %v1617
        %v1619 = vrcp.pop %v1463
        %v1620 = vmul.f32 1.0, %v1619
        %v1621 = vrcp.pop %v1464
        %v1622 = vmul.f32 1.0, %v1621
        %v1623 = vrcp.pop %v1465
        %v1624 = vmul.f32 1.0, %v1623
        %v1625 = vrcp.pop %v1466
        %v1626 = vmul.f32 1.0, %v1625
        %v1627 = vrcp.pop %v1467
        %v1628 = vmul.f32 1.0, %v1627
        %v1629 = vrcp.pop %v1468
        %v1630 = vmul.f32 1.0, %v1629
        %v1631 = vrcp.pop %v1469
        %v1632 = vmul.f32 1.0, %v1631
        %v1633 = vrcp.pop %v1470
        %v1634 = vmul.f32 1.0, %v1633
        %v1635 = vrcp.pop %v1471
        %v1636 = vmul.f32 1.0, %v1635
        %v1637 = vrcp.pop %v1472
        %v1638 = vmul.f32 1.0, %v1637
        %v1639 = vrcp.pop %v1473
        %v1640 = vmul.f32 1.0, %v1639
        %v1641 = vrcp.pop %v1474
        %v1642 = vmul.f32 1.0, %v1641
        %v1643 = vrcp.pop %v1475
        %v1644 = vmul.f32 1.0, %v1643
        %v1645 = vrcp.pop %v1476
        %v1646 = vmul.f32 1.0, %v1645
        %v1647 = vrcp.pop %v1477
        %v1648 = vmul.f32 1.0, %v1647
        %v1649 = vrcp.pop %v1478
        %v1650 = vmul.f32 1.0, %v1649
        %v1651 = vrcp.pop %v1479
        %v1652 = vmul.f32 1.0, %v1651
        %v1653 = vrcp.pop %v1480
        %v1654 = vmul.f32 1.0, %v1653
        %v1655 = vrcp.pop %v1481
        %v1656 = vmul.f32 1.0, %v1655
        %v1657 = vrcp.pop %v1482
        %v1658 = vmul.f32 1.0, %v1657
        %v1659 = vrcp.pop %v1483
        %v1660 = vmul.f32 1.0, %v1659
        %v1661 = vrcp.pop %v1484
        %v1662 = vmul.f32 1.0, %v1661
        %v1663 = vrcp.pop %v1485
        %v1664 = vmul.f32 1.0, %v1663
        %v1665 = vrcp.pop %v1486
        %v1666 = vmul.f32 1.0, %v1665
        %v1667 = vrcp.pop %v1487
        %v1668 = vmul.f32 1.0, %v1667
        %v1669 = vrcp.pop %v1488
        %v1670 = vmul.f32 1.0, %v1669
        %v1671 = vrcp.pop %v1489
        %v1672 = vmul.f32 1.0, %v1671
        %v1673 = vrcp.pop %v1490
        %v1674 = vmul.f32 1.0, %v1673
        %v1675 = vrcp.pop %v1491
        %v1676 = vmul.f32 1.0, %v1675
        %v1677 = vrcp.pop %v1492
        %v1678 = vmul.f32 1.0, %v1677
        %v1679 = vrcp.pop %v1493
        %v1680 = vmul.f32 1.0, %v1679
        %v1681 = vrcp.pop %v1494
        %v1682 = vmul.f32 1.0, %v1681
        %v1683 = vrcp.pop %v1495
        %v1684 = vmul.f32 1.0, %v1683
        %v1685 = vrcp.pop %v1496
        %v1686 = vmul.f32 1.0, %v1685
        %v1687 = vrcp.pop %v1497
        %v1688 = vmul.f32 1.0, %v1687
        %v1689 = vrcp.pop %v1498
        %v1690 = vmul.f32 1.0, %v1689
        %v1691 = vrcp.pop %v1499
        %v1692 = vmul.f32 1.0, %v1691
        %v1693 = vrcp.pop %v1500
        %v1694 = vmul.f32 1.0, %v1693
        %v1695 = vrcp.pop %v1501
        %v1696 = vmul.f32 1.0, %v1695
        %v1697 = vrcp.pop %v1502
        %v1698 = vmul.f32 1.0, %v1697
        %v1699 = vrcp.pop %v1503
        %v1700 = vmul.f32 1.0, %v1699
        %v1701 = vrcp.pop %v1504
        %v1702 = vmul.f32 1.0, %v1701
        %v1703 = vrcp.pop %v1505
        %v1704 = vmul.f32 1.0, %v1703
        %v1705 = vrcp.pop %v1506
        %v1706 = vmul.f32 1.0, %v1705
        %v1707 = vrcp.pop %v1507
        %v1708 = vmul.f32 1.0, %v1707
        %v1709 = vrcp.pop %v1508
        %v1710 = vmul.f32 1.0, %v1709
        %v1711 = vrcp.pop %v1509
        %v1712 = vmul.f32 1.0, %v1711
        %v1713 = vrcp.pop %v1510
        %v1714 = vmul.f32 1.0, %v1713
        %v1715 = vrcp.pop %v1511
        %v1716 = vmul.f32 1.0, %v1715
        %v1717 = vrcp.pop %v1512
        %v1718 = vmul.f32 1.0, %v1717
        %v1719 = vrcp.pop %v1513
        %v1720 = vmul.f32 1.0, %v1719
        %v1721 = vrcp.pop %v1514
        %v1722 = vmul.f32 1.0, %v1721
        %v1723 = vrcp.pop %v1515
        %v1724 = vmul.f32 1.0, %v1723
        %v1725 = vrcp.pop %v1516
        %v1726 = vmul.f32 1.0, %v1725
        %v1727 = vrcp.pop %v1517
        %v1728 = vmul.f32 1.0, %v1727
        %v1729 = vrcp.pop %v1518
        %v1730 = vmul.f32 1.0, %v1729
        %v1731 = vrcp.pop %v1519
        %v1732 = vmul.f32 1.0, %v1731
        %v1733 = vrcp.pop %v1520
        %v1734 = vmul.f32 1.0, %v1733
        %v1735 = vrcp.pop %v1521
        %v1736 = vmul.f32 1.0, %v1735
        %v1737 = vrcp.pop %v1522
        %v1738 = vmul.f32 1.0, %v1737
        %v1739 = vrcp.pop %v1523
        %v1740 = vmul.f32 1.0, %v1739
        %v1741 = vrcp.pop %v1524
        %v1742 = vmul.f32 1.0, %v1741
        %v1743 = vrcp.pop %v1525
        %v1744 = vmul.f32 1.0, %v1743
        %v1745 = vrcp.pop %v1526
        %v1746 = vmul.f32 1.0, %v1745
        %v1747 = vrcp.pop %v1527
        %v1748 = vmul.f32 1.0, %v1747
        %v1749 = vrcp.pop %v1528
        %v1750 = vmul.f32 1.0, %v1749
        %v1751 = vrcp.pop %v1529
        %v1752 = vmul.f32 1.0, %v1751
        %v1753 = vrcp.pop %v1530
        %v1754 = vmul.f32 1.0, %v1753
        %v1755 = vrcp.pop %v1531
        %v1756 = vmul.f32 1.0, %v1755
        %v1757 = vrcp.pop %v1532
        %v1758 = vmul.f32 1.0, %v1757
        %v1759 = vrcp.pop %v1533
        %v1760 = vmul.f32 1.0, %v1759
        %v1761 = vrcp.pop %v1534
        %v1762 = vmul.f32 1.0, %v1761
        %v1763 = vrcp.pop %v1535
        %v1764 = vmul.f32 1.0, %v1763
        %v1765 = vrcp.pop %v1536
        %v1766 = vmul.f32 1.0, %v1765
        %v1767 = vrcp.pop %v1537
        %v1768 = vmul.f32 1.0, %v1767
        %v1769 = vrcp.pop %v1538
        %v1770 = vmul.f32 1.0, %v1769
        %v1771 = vrcp.pop %v1539
        %v1772 = vmul.f32 1.0, %v1771
        %v1773 = vrcp.pop %v1540
        %v1774 = vmul.f32 1.0, %v1773
        %v1775 = vrcp.pop %v1541
        %v1776 = vmul.f32 1.0, %v1775
        %v1777 = vrcp.pop %v1542
        %v1778 = vmul.f32 1.0, %v1777
        %v1779 = vrcp.pop %v1543
        %v1780 = vmul.f32 1.0, %v1779
        %v1781 = vrcp.pop %v1544
        %v1782 = vmul.f32 1.0, %v1781
        %v1783 = vrcp.pop %v1545
        %v1784 = vmul.f32 1.0, %v1783
        %v1785 = vrcp.pop %v1546
        %v1786 = vmul.f32 1.0, %v1785
        %v1787 = vrcp.pop %v1547
        %v1788 = vmul.f32 1.0, %v1787
        %v1789 = vrcp.pop %v1548
        %v1790 = vmul.f32 1.0, %v1789
        %v1791 = vrcp.pop %v1549
        %v1792 = vmul.f32 1.0, %v1791
        %v1793 = vrcp.pop %v1550
        %v1794 = vmul.f32 1.0, %v1793
        %v1795 = vrcp.pop %v1551
        %v1796 = vmul.f32 1.0, %v1795
        %v1797 = vrcp.pop %v1552
        %v1798 = vmul.f32 1.0, %v1797
        %v1799 = vrcp.pop %v1553
        %v1800 = vmul.f32 1.0, %v1799
        %v1801 = vrcp.pop %v1554
        %v1802 = vmul.f32 1.0, %v1801
        %v1803 = vrcp.pop %v1555
        %v1804 = vmul.f32 1.0, %v1803
        %v1805 = vrcp.pop %v1556
        %v1806 = vmul.f32 1.0, %v1805
        %v1807 = vrcp.pop %v1557
        %v1808 = vmul.f32 1.0, %v1807
        %v1809 = vrcp.pop %v1558
        %v1810 = vmul.f32 1.0, %v1809
        %v1811 = vrcp.pop %v1559
        %v1812 = vmul.f32 1.0, %v1811
        %v1813 = vrcp.pop %v1560
        %v1814 = vmul.f32 1.0, %v1813
        %v1815 = vrcp.pop %v1561
        %v1816 = vmul.f32 1.0, %v1815
        %v1817 = vrcp.pop %v1562
        %v1818 = vmul.f32 1.0, %v1817
        %v1819 = vmul.f32 %v1564, 1.0614054
        %v1820 = vmul.f32 %v1566, 1.0614054
        %v1821 = vmul.f32 %v1568, 1.0614054
        %v1822 = vmul.f32 %v1570, 1.0614054
        %v1823 = vmul.f32 %v1572, 1.0614054
        %v1824 = vmul.f32 %v1574, 1.0614054
        %v1825 = vmul.f32 %v1576, 1.0614054
        %v1826 = vmul.f32 %v1578, 1.0614054
        %v1827 = vmul.f32 %v1580, 1.0614054
        %v1828 = vmul.f32 %v1582, 1.0614054
        %v1829 = vmul.f32 %v1584, 1.0614054
        %v1830 = vmul.f32 %v1586, 1.0614054
        %v1831 = vmul.f32 %v1588, 1.0614054
        %v1832 = vmul.f32 %v1590, 1.0614054
        %v1833 = vmul.f32 %v1592, 1.0614054
        %v1834 = vmul.f32 %v1594, 1.0614054
        %v1835 = vmul.f32 %v1596, 1.0614054
        %v1836 = vmul.f32 %v1598, 1.0614054
        %v1837 = vmul.f32 %v1600, 1.0614054
        %v1838 = vmul.f32 %v1602, 1.0614054
        %v1839 = vmul.f32 %v1604, 1.0614054
        %v1840 = vmul.f32 %v1606, 1.0614054
        %v1841 = vmul.f32 %v1608, 1.0614054
        %v1842 = vmul.f32 %v1610, 1.0614054
        %v1843 = vmul.f32 %v1612, 1.0614054
        %v1844 = vmul.f32 %v1614, 1.0614054
        %v1845 = vmul.f32 %v1616, 1.0614054
        %v1846 = vmul.f32 %v1618, 1.0614054
        %v1847 = vmul.f32 %v1620, 1.0614054
        %v1848 = vmul.f32 %v1622, 1.0614054
        %v1849 = vmul.f32 %v1624, 1.0614054
        %v1850 = vmul.f32 %v1626, 1.0614054
        %v1851 = vmul.f32 %v1628, 1.0614054
        %v1852 = vmul.f32 %v1630, 1.0614054
        %v1853 = vmul.f32 %v1632, 1.0614054
        %v1854 = vmul.f32 %v1634, 1.0614054
        %v1855 = vmul.f32 %v1636, 1.0614054
        %v1856 = vmul.f32 %v1638, 1.0614054
        %v1857 = vmul.f32 %v1640, 1.0614054
        %v1858 = vmul.f32 %v1642, 1.0614054
        %v1859 = vmul.f32 %v1644, 1.0614054
        %v1860 = vmul.f32 %v1646, 1.0614054
        %v1861 = vmul.f32 %v1648, 1.0614054
        %v1862 = vmul.f32 %v1650, 1.0614054
        %v1863 = vmul.f32 %v1652, 1.0614054
        %v1864 = vmul.f32 %v1654, 1.0614054
        %v1865 = vmul.f32 %v1656, 1.0614054
        %v1866 = vmul.f32 %v1658, 1.0614054
        %v1867 = vmul.f32 %v1660, 1.0614054
        %v1868 = vmul.f32 %v1662, 1.0614054
        %v1869 = vmul.f32 %v1664, 1.0614054
        %v1870 = vmul.f32 %v1666, 1.0614054
        %v1871 = vmul.f32 %v1668, 1.0614054
        %v1872 = vmul.f32 %v1670, 1.0614054
        %v1873 = vmul.f32 %v1672, 1.0614054
        %v1874 = vmul.f32 %v1674, 1.0614054
        %v1875 = vmul.f32 %v1676, 1.0614054
        %v1876 = vmul.f32 %v1678, 1.0614054
        %v1877 = vmul.f32 %v1680, 1.0614054
        %v1878 = vmul.f32 %v1682, 1.0614054
        %v1879 = vmul.f32 %v1684, 1.0614054
        %v1880 = vmul.f32 %v1686, 1.0614054
        %v1881 = vmul.f32 %v1688, 1.0614054
        %v1882 = vmul.f32 %v1690, 1.0614054
        %v1883 = vmul.f32 %v1692, 1.0614054
        %v1884 = vmul.f32 %v1694, 1.0614054
        %v1885 = vmul.f32 %v1696, 1.0614054
        %v1886 = vmul.f32 %v1698, 1.0614054
        %v1887 = vmul.f32 %v1700, 1.0614054
        %v1888 = vmul.f32 %v1702, 1.0614054
        %v1889 = vmul.f32 %v1704, 1.0614054
        %v1890 = vmul.f32 %v1706, 1.0614054
        %v1891 = vmul.f32 %v1708, 1.0614054
        %v1892 = vmul.f32 %v1710, 1.0614054
        %v1893 = vmul.f32 %v1712, 1.0614054
        %v1894 = vmul.f32 %v1714, 1.0614054
        %v1895 = vmul.f32 %v1716, 1.0614054
        %v1896 = vmul.f32 %v1718, 1.0614054
        %v1897 = vmul.f32 %v1720, 1.0614054
        %v1898 = vmul.f32 %v1722, 1.0614054
        %v1899 = vmul.f32 %v1724, 1.0614054
        %v1900 = vmul.f32 %v1726, 1.0614054
        %v1901 = vmul.f32 %v1728, 1.0614054
        %v1902 = vmul.f32 %v1730, 1.0614054
        %v1903 = vmul.f32 %v1732, 1.0614054
        %v1904 = vmul.f32 %v1734, 1.0614054
        %v1905 = vmul.f32 %v1736, 1.0614054
        %v1906 = vmul.f32 %v1738, 1.0614054
        %v1907 = vmul.f32 %v1740, 1.0614054
        %v1908 = vmul.f32 %v1742, 1.0614054
        %v1909 = vmul.f32 %v1744, 1.0614054
        %v1910 = vmul.f32 %v1746, 1.0614054
        %v1911 = vmul.f32 %v1748, 1.0614054
        %v1912 = vmul.f32 %v1750, 1.0614054
        %v1913 = vmul.f32 %v1752, 1.0614054
        %v1914 = vmul.f32 %v1754, 1.0614054
        %v1915 = vmul.f32 %v1756, 1.0614054
        %v1916 = vmul.f32 %v1758, 1.0614054
        %v1917 = vmul.f32 %v1760, 1.0614054
        %v1918 = vmul.f32 %v1762, 1.0614054
        %v1919 = vmul.f32 %v1764, 1.0614054
        %v1920 = vmul.f32 %v1766, 1.0614054
        %v1921 = vmul.f32 %v1768, 1.0614054
        %v1922 = vmul.f32 %v1770, 1.0614054
        %v1923 = vmul.f32 %v1772, 1.0614054
        %v1924 = vmul.f32 %v1774, 1.0614054
        %v1925 = vmul.f32 %v1776, 1.0614054
        %v1926 = vmul.f32 %v1778, 1.0614054
        %v1927 = vmul.f32 %v1780, 1.0614054
        %v1928 = vmul.f32 %v1782, 1.0614054
        %v1929 = vmul.f32 %v1784, 1.0614054
        %v1930 = vmul.f32 %v1786, 1.0614054
        %v1931 = vmul.f32 %v1788, 1.0614054
        %v1932 = vmul.f32 %v1790, 1.0614054
        %v1933 = vmul.f32 %v1792, 1.0614054
        %v1934 = vmul.f32 %v1794, 1.0614054
        %v1935 = vmul.f32 %v1796, 1.0614054
        %v1936 = vmul.f32 %v1798, 1.0614054
        %v1937 = vmul.f32 %v1800, 1.0614054
        %v1938 = vmul.f32 %v1802, 1.0614054
        %v1939 = vmul.f32 %v1804, 1.0614054
        %v1940 = vmul.f32 %v1806, 1.0614054
        %v1941 = vmul.f32 %v1808, 1.0614054
        %v1942 = vmul.f32 %v1810, 1.0614054
        %v1943 = vmul.f32 %v1812, 1.0614054
        %v1944 = vmul.f32 %v1814, 1.0614054
        %v1945 = vmul.f32 %v1816, 1.0614054
        %v1946 = vmul.f32 %v1818, 1.0614054
        %v1947 = vadd.f32 %v1819, -1.4531521
        %v1948 = vadd.f32 %v1820, -1.4531521
        %v1949 = vadd.f32 %v1821, -1.4531521
        %v1950 = vadd.f32 %v1822, -1.4531521
        %v1951 = vadd.f32 %v1823, -1.4531521
        %v1952 = vadd.f32 %v1824, -1.4531521
        %v1953 = vadd.f32 %v1825, -1.4531521
        %v1954 = vadd.f32 %v1826, -1.4531521
        %v1955 = vadd.f32 %v1827, -1.4531521
        %v1956 = vadd.f32 %v1828, -1.4531521
        %v1957 = vadd.f32 %v1829, -1.4531521
        %v1958 = vadd.f32 %v1830, -1.4531521
        %v1959 = vadd.f32 %v1831, -1.4531521
        %v1960 = vadd.f32 %v1832, -1.4531521
        %v1961 = vadd.f32 %v1833, -1.4531521
        %v1962 = vadd.f32 %v1834, -1.4531521
        %v1963 = vadd.f32 %v1835, -1.4531521
        %v1964 = vadd.f32 %v1836, -1.4531521
        %v1965 = vadd.f32 %v1837, -1.4531521
        %v1966 = vadd.f32 %v1838, -1.4531521
        %v1967 = vadd.f32 %v1839, -1.4531521
        %v1968 = vadd.f32 %v1840, -1.4531521
        %v1969 = vadd.f32 %v1841, -1.4531521
        %v1970 = vadd.f32 %v1842, -1.4531521
        %v1971 = vadd.f32 %v1843, -1.4531521
        %v1972 = vadd.f32 %v1844, -1.4531521
        %v1973 = vadd.f32 %v1845, -1.4531521
        %v1974 = vadd.f32 %v1846, -1.4531521
        %v1975 = vadd.f32 %v1847, -1.4531521
        %v1976 = vadd.f32 %v1848, -1.4531521
        %v1977 = vadd.f32 %v1849, -1.4531521
        %v1978 = vadd.f32 %v1850, -1.4531521
        %v1979 = vadd.f32 %v1851, -1.4531521
        %v1980 = vadd.f32 %v1852, -1.4531521
        %v1981 = vadd.f32 %v1853, -1.4531521
        %v1982 = vadd.f32 %v1854, -1.4531521
        %v1983 = vadd.f32 %v1855, -1.4531521
        %v1984 = vadd.f32 %v1856, -1.4531521
        %v1985 = vadd.f32 %v1857, -1.4531521
        %v1986 = vadd.f32 %v1858, -1.4531521
        %v1987 = vadd.f32 %v1859, -1.4531521
        %v1988 = vadd.f32 %v1860, -1.4531521
        %v1989 = vadd.f32 %v1861, -1.4531521
        %v1990 = vadd.f32 %v1862, -1.4531521
        %v1991 = vadd.f32 %v1863, -1.4531521
        %v1992 = vadd.f32 %v1864, -1.4531521
        %v1993 = vadd.f32 %v1865, -1.4531521
        %v1994 = vadd.f32 %v1866, -1.4531521
        %v1995 = vadd.f32 %v1867, -1.4531521
        %v1996 = vadd.f32 %v1868, -1.4531521
        %v1997 = vadd.f32 %v1869, -1.4531521
        %v1998 = vadd.f32 %v1870, -1.4531521
        %v1999 = vadd.f32 %v1871, -1.4531521
        %v2000 = vadd.f32 %v1872, -1.4531521
        %v2001 = vadd.f32 %v1873, -1.4531521
        %v2002 = vadd.f32 %v1874, -1.4531521
        %v2003 = vadd.f32 %v1875, -1.4531521
        %v2004 = vadd.f32 %v1876, -1.4531521
        %v2005 = vadd.f32 %v1877, -1.4531521
        %v2006 = vadd.f32 %v1878, -1.4531521
        %v2007 = vadd.f32 %v1879, -1.4531521
        %v2008 = vadd.f32 %v1880, -1.4531521
        %v2009 = vadd.f32 %v1881, -1.4531521
        %v2010 = vadd.f32 %v1882, -1.4531521
        %v2011 = vadd.f32 %v1883, -1.4531521
        %v2012 = vadd.f32 %v1884, -1.4531521
        %v2013 = vadd.f32 %v1885, -1.4531521
        %v2014 = vadd.f32 %v1886, -1.4531521
        %v2015 = vadd.f32 %v1887, -1.4531521
        %v2016 = vadd.f32 %v1888, -1.4531521
        %v2017 = vadd.f32 %v1889, -1.4531521
        %v2018 = vadd.f32 %v1890, -1.4531521
        %v2019 = vadd.f32 %v1891, -1.4531521
        %v2020 = vadd.f32 %v1892, -1.4531521
        %v2021 = vadd.f32 %v1893, -1.4531521
        %v2022 = vadd.f32 %v1894, -1.4531521
        %v2023 = vadd.f32 %v1895, -1.4531521
        %v2024 = vadd.f32 %v1896, -1.4531521
        %v2025 = vadd.f32 %v1897, -1.4531521
        %v2026 = vadd.f32 %v1898, -1.4531521
        %v2027 = vadd.f32 %v1899, -1.4531521
        %v2028 = vadd.f32 %v1900, -1.4531521
        %v2029 = vadd.f32 %v1901, -1.4531521
        %v2030 = vadd.f32 %v1902, -1.4531521
        %v2031 = vadd.f32 %v1903, -1.4531521
        %v2032 = vadd.f32 %v1904, -1.4531521
        %v2033 = vadd.f32 %v1905, -1.4531521
        %v2034 = vadd.f32 %v1906, -1.4531521
        %v2035 = vadd.f32 %v1907, -1.4531521
        %v2036 = vadd.f32 %v1908, -1.4531521
        %v2037 = vadd.f32 %v1909, -1.4531521
        %v2038 = vadd.f32 %v1910, -1.4531521
        %v2039 = vadd.f32 %v1911, -1.4531521
        %v2040 = vadd.f32 %v1912, -1.4531521
        %v2041 = vadd.f32 %v1913, -1.4531521
        %v2042 = vadd.f32 %v1914, -1.4531521
        %v2043 = vadd.f32 %v1915, -1.4531521
        %v2044 = vadd.f32 %v1916, -1.4531521
        %v2045 = vadd.f32 %v1917, -1.4531521
        %v2046 = vadd.f32 %v1918, -1.4531521
        %v2047 = vadd.f32 %v1919, -1.4531521
        %v2048 = vadd.f32 %v1920, -1.4531521
        %v2049 = vadd.f32 %v1921, -1.4531521
        %v2050 = vadd.f32 %v1922, -1.4531521
        %v2051 = vadd.f32 %v1923, -1.4531521
        %v2052 = vadd.f32 %v1924, -1.4531521
        %v2053 = vadd.f32 %v1925, -1.4531521
        %v2054 = vadd.f32 %v1926, -1.4531521
        %v2055 = vadd.f32 %v1927, -1.4531521
        %v2056 = vadd.f32 %v1928, -1.4531521
        %v2057 = vadd.f32 %v1929, -1.4531521
        %v2058 = vadd.f32 %v1930, -1.4531521
        %v2059 = vadd.f32 %v1931, -1.4531521
        %v2060 = vadd.f32 %v1932, -1.4531521
        %v2061 = vadd.f32 %v1933, -1.4531521
        %v2062 = vadd.f32 %v1934, -1.4531521
        %v2063 = vadd.f32 %v1935, -1.4531521
        %v2064 = vadd.f32 %v1936, -1.4531521
        %v2065 = vadd.f32 %v1937, -1.4531521
        %v2066 = vadd.f32 %v1938, -1.4531521
        %v2067 = vadd.f32 %v1939, -1.4531521
        %v2068 = vadd.f32 %v1940, -1.4531521
        %v2069 = vadd.f32 %v1941, -1.4531521
        %v2070 = vadd.f32 %v1942, -1.4531521
        %v2071 = vadd.f32 %v1943, -1.4531521
        %v2072 = vadd.f32 %v1944, -1.4531521
        %v2073 = vadd.f32 %v1945, -1.4531521
        %v2074 = vadd.f32 %v1946, -1.4531521
        %v2075 = vmul.f32 %v1947, %v1564
        %v2076 = vmul.f32 %v1948, %v1566
        %v2077 = vmul.f32 %v1949, %v1568
        %v2078 = vmul.f32 %v1950, %v1570
        %v2079 = vmul.f32 %v1951, %v1572
        %v2080 = vmul.f32 %v1952, %v1574
        %v2081 = vmul.f32 %v1953, %v1576
        %v2082 = vmul.f32 %v1954, %v1578
        %v2083 = vmul.f32 %v1955, %v1580
        %v2084 = vmul.f32 %v1956, %v1582
        %v2085 = vmul.f32 %v1957, %v1584
        %v2086 = vmul.f32 %v1958, %v1586
        %v2087 = vmul.f32 %v1959, %v1588
        %v2088 = vmul.f32 %v1960, %v1590
        %v2089 = vmul.f32 %v1961, %v1592
        %v2090 = vmul.f32 %v1962, %v1594
        %v2091 = vmul.f32 %v1963, %v1596
        %v2092 = vmul.f32 %v1964, %v1598
        %v2093 = vmul.f32 %v1965, %v1600
        %v2094 = vmul.f32 %v1966, %v1602
        %v2095 = vmul.f32 %v1967, %v1604
        %v2096 = vmul.f32 %v1968, %v1606
        %v2097 = vmul.f32 %v1969, %v1608
        %v2098 = vmul.f32 %v1970, %v1610
        %v2099 = vmul.f32 %v1971, %v1612
        %v2100 = vmul.f32 %v1972, %v1614
        %v2101 = vmul.f32 %v1973, %v1616
        %v2102 = vmul.f32 %v1974, %v1618
        %v2103 = vmul.f32 %v1975, %v1620
        %v2104 = vmul.f32 %v1976, %v1622
        %v2105 = vmul.f32 %v1977, %v1624
        %v2106 = vmul.f32 %v1978, %v1626
        %v2107 = vmul.f32 %v1979, %v1628
        %v2108 = vmul.f32 %v1980, %v1630
        %v2109 = vmul.f32 %v1981, %v1632
        %v2110 = vmul.f32 %v1982, %v1634
        %v2111 = vmul.f32 %v1983, %v1636
        %v2112 = vmul.f32 %v1984, %v1638
        %v2113 = vmul.f32 %v1985, %v1640
        %v2114 = vmul.f32 %v1986, %v1642
        %v2115 = vmul.f32 %v1987, %v1644
        %v2116 = vmul.f32 %v1988, %v1646
        %v2117 = vmul.f32 %v1989, %v1648
        %v2118 = vmul.f32 %v1990, %v1650
        %v2119 = vmul.f32 %v1991, %v1652
        %v2120 = vmul.f32 %v1992, %v1654
        %v2121 = vmul.f32 %v1993, %v1656
        %v2122 = vmul.f32 %v1994, %v1658
        %v2123 = vmul.f32 %v1995, %v1660
        %v2124 = vmul.f32 %v1996, %v1662
        %v2125 = vmul.f32 %v1997, %v1664
        %v2126 = vmul.f32 %v1998, %v1666
        %v2127 = vmul.f32 %v1999, %v1668
        %v2128 = vmul.f32 %v2000, %v1670
        %v2129 = vmul.f32 %v2001, %v1672
        %v2130 = vmul.f32 %v2002, %v1674
        %v2131 = vmul.f32 %v2003, %v1676
        %v2132 = vmul.f32 %v2004, %v1678
        %v2133 = vmul.f32 %v2005, %v1680
        %v2134 = vmul.f32 %v2006, %v1682
        %v2135 = vmul.f32 %v2007, %v1684
        %v2136 = vmul.f32 %v2008, %v1686
        %v2137 = vmul.f32 %v2009, %v1688
        %v2138 = vmul.f32 %v2010, %v1690
        %v2139 = vmul.f32 %v2011, %v1692
        %v2140 = vmul.f32 %v2012, %v1694
        %v2141 = vmul.f32 %v2013, %v1696
        %v2142 = vmul.f32 %v2014, %v1698
        %v2143 = vmul.f32 %v2015, %v1700
        %v2144 = vmul.f32 %v2016, %v1702
        %v2145 = vmul.f32 %v2017, %v1704
        %v2146 = vmul.f32 %v2018, %v1706
        %v2147 = vmul.f32 %v2019, %v1708
        %v2148 = vmul.f32 %v2020, %v1710
        %v2149 = vmul.f32 %v2021, %v1712
        %v2150 = vmul.f32 %v2022, %v1714
        %v2151 = vmul.f32 %v2023, %v1716
        %v2152 = vmul.f32 %v2024, %v1718
        %v2153 = vmul.f32 %v2025, %v1720
        %v2154 = vmul.f32 %v2026, %v1722
        %v2155 = vmul.f32 %v2027, %v1724
        %v2156 = vmul.f32 %v2028, %v1726
        %v2157 = vmul.f32 %v2029, %v1728
        %v2158 = vmul.f32 %v2030, %v1730
        %v2159 = vmul.f32 %v2031, %v1732
        %v2160 = vmul.f32 %v2032, %v1734
        %v2161 = vmul.f32 %v2033, %v1736
        %v2162 = vmul.f32 %v2034, %v1738
        %v2163 = vmul.f32 %v2035, %v1740
        %v2164 = vmul.f32 %v2036, %v1742
        %v2165 = vmul.f32 %v2037, %v1744
        %v2166 = vmul.f32 %v2038, %v1746
        %v2167 = vmul.f32 %v2039, %v1748
        %v2168 = vmul.f32 %v2040, %v1750
        %v2169 = vmul.f32 %v2041, %v1752
        %v2170 = vmul.f32 %v2042, %v1754
        %v2171 = vmul.f32 %v2043, %v1756
        %v2172 = vmul.f32 %v2044, %v1758
        %v2173 = vmul.f32 %v2045, %v1760
        %v2174 = vmul.f32 %v2046, %v1762
        %v2175 = vmul.f32 %v2047, %v1764
        %v2176 = vmul.f32 %v2048, %v1766
        %v2177 = vmul.f32 %v2049, %v1768
        %v2178 = vmul.f32 %v2050, %v1770
        %v2179 = vmul.f32 %v2051, %v1772
        %v2180 = vmul.f32 %v2052, %v1774
        %v2181 = vmul.f32 %v2053, %v1776
        %v2182 = vmul.f32 %v2054, %v1778
        %v2183 = vmul.f32 %v2055, %v1780
        %v2184 = vmul.f32 %v2056, %v1782
        %v2185 = vmul.f32 %v2057, %v1784
        %v2186 = vmul.f32 %v2058, %v1786
        %v2187 = vmul.f32 %v2059, %v1788
        %v2188 = vmul.f32 %v2060, %v1790
        %v2189 = vmul.f32 %v2061, %v1792
        %v2190 = vmul.f32 %v2062, %v1794
        %v2191 = vmul.f32 %v2063, %v1796
        %v2192 = vmul.f32 %v2064, %v1798
        %v2193 = vmul.f32 %v2065, %v1800
        %v2194 = vmul.f32 %v2066, %v1802
        %v2195 = vmul.f32 %v2067, %v1804
        %v2196 = vmul.f32 %v2068, %v1806
        %v2197 = vmul.f32 %v2069, %v1808
        %v2198 = vmul.f32 %v2070, %v1810
        %v2199 = vmul.f32 %v2071, %v1812
        %v2200 = vmul.f32 %v2072, %v1814
        %v2201 = vmul.f32 %v2073, %v1816
        %v2202 = vmul.f32 %v2074, %v1818
        %v2203 = vadd.f32 %v2075, 1.4214138
        %v2204 = vadd.f32 %v2076, 1.4214138
        %v2205 = vadd.f32 %v2077, 1.4214138
        %v2206 = vadd.f32 %v2078, 1.4214138
        %v2207 = vadd.f32 %v2079, 1.4214138
        %v2208 = vadd.f32 %v2080, 1.4214138
        %v2209 = vadd.f32 %v2081, 1.4214138
        %v2210 = vadd.f32 %v2082, 1.4214138
        %v2211 = vadd.f32 %v2083, 1.4214138
        %v2212 = vadd.f32 %v2084, 1.4214138
        %v2213 = vadd.f32 %v2085, 1.4214138
        %v2214 = vadd.f32 %v2086, 1.4214138
        %v2215 = vadd.f32 %v2087, 1.4214138
        %v2216 = vadd.f32 %v2088, 1.4214138
        %v2217 = vadd.f32 %v2089, 1.4214138
        %v2218 = vadd.f32 %v2090, 1.4214138
        %v2219 = vadd.f32 %v2091, 1.4214138
        %v2220 = vadd.f32 %v2092, 1.4214138
        %v2221 = vadd.f32 %v2093, 1.4214138
        %v2222 = vadd.f32 %v2094, 1.4214138
        %v2223 = vadd.f32 %v2095, 1.4214138
        %v2224 = vadd.f32 %v2096, 1.4214138
        %v2225 = vadd.f32 %v2097, 1.4214138
        %v2226 = vadd.f32 %v2098, 1.4214138
        %v2227 = vadd.f32 %v2099, 1.4214138
        %v2228 = vadd.f32 %v2100, 1.4214138
        %v2229 = vadd.f32 %v2101, 1.4214138
        %v2230 = vadd.f32 %v2102, 1.4214138
        %v2231 = vadd.f32 %v2103, 1.4214138
        %v2232 = vadd.f32 %v2104, 1.4214138
        %v2233 = vadd.f32 %v2105, 1.4214138
        %v2234 = vadd.f32 %v2106, 1.4214138
        %v2235 = vadd.f32 %v2107, 1.4214138
        %v2236 = vadd.f32 %v2108, 1.4214138
        %v2237 = vadd.f32 %v2109, 1.4214138
        %v2238 = vadd.f32 %v2110, 1.4214138
        %v2239 = vadd.f32 %v2111, 1.4214138
        %v2240 = vadd.f32 %v2112, 1.4214138
        %v2241 = vadd.f32 %v2113, 1.4214138
        %v2242 = vadd.f32 %v2114, 1.4214138
        %v2243 = vadd.f32 %v2115, 1.4214138
        %v2244 = vadd.f32 %v2116, 1.4214138
        %v2245 = vadd.f32 %v2117, 1.4214138
        %v2246 = vadd.f32 %v2118, 1.4214138
        %v2247 = vadd.f32 %v2119, 1.4214138
        %v2248 = vadd.f32 %v2120, 1.4214138
        %v2249 = vadd.f32 %v2121, 1.4214138
        %v2250 = vadd.f32 %v2122, 1.4214138
        %v2251 = vadd.f32 %v2123, 1.4214138
        %v2252 = vadd.f32 %v2124, 1.4214138
        %v2253 = vadd.f32 %v2125, 1.4214138
        %v2254 = vadd.f32 %v2126, 1.4214138
        %v2255 = vadd.f32 %v2127, 1.4214138
        %v2256 = vadd.f32 %v2128, 1.4214138
        %v2257 = vadd.f32 %v2129, 1.4214138
        %v2258 = vadd.f32 %v2130, 1.4214138
        %v2259 = vadd.f32 %v2131, 1.4214138
        %v2260 = vadd.f32 %v2132, 1.4214138
        %v2261 = vadd.f32 %v2133, 1.4214138
        %v2262 = vadd.f32 %v2134, 1.4214138
        %v2263 = vadd.f32 %v2135, 1.4214138
        %v2264 = vadd.f32 %v2136, 1.4214138
        %v2265 = vadd.f32 %v2137, 1.4214138
        %v2266 = vadd.f32 %v2138, 1.4214138
        %v2267 = vadd.f32 %v2139, 1.4214138
        %v2268 = vadd.f32 %v2140, 1.4214138
        %v2269 = vadd.f32 %v2141, 1.4214138
        %v2270 = vadd.f32 %v2142, 1.4214138
        %v2271 = vadd.f32 %v2143, 1.4214138
        %v2272 = vadd.f32 %v2144, 1.4214138
        %v2273 = vadd.f32 %v2145, 1.4214138
        %v2274 = vadd.f32 %v2146, 1.4214138
        %v2275 = vadd.f32 %v2147, 1.4214138
        %v2276 = vadd.f32 %v2148, 1.4214138
        %v2277 = vadd.f32 %v2149, 1.4214138
        %v2278 = vadd.f32 %v2150, 1.4214138
        %v2279 = vadd.f32 %v2151, 1.4214138
        %v2280 = vadd.f32 %v2152, 1.4214138
        %v2281 = vadd.f32 %v2153, 1.4214138
        %v2282 = vadd.f32 %v2154, 1.4214138
        %v2283 = vadd.f32 %v2155, 1.4214138
        %v2284 = vadd.f32 %v2156, 1.4214138
        %v2285 = vadd.f32 %v2157, 1.4214138
        %v2286 = vadd.f32 %v2158, 1.4214138
        %v2287 = vadd.f32 %v2159, 1.4214138
        %v2288 = vadd.f32 %v2160, 1.4214138
        %v2289 = vadd.f32 %v2161, 1.4214138
        %v2290 = vadd.f32 %v2162, 1.4214138
        %v2291 = vadd.f32 %v2163, 1.4214138
        %v2292 = vadd.f32 %v2164, 1.4214138
        %v2293 = vadd.f32 %v2165, 1.4214138
        %v2294 = vadd.f32 %v2166, 1.4214138
        %v2295 = vadd.f32 %v2167, 1.4214138
        %v2296 = vadd.f32 %v2168, 1.4214138
        %v2297 = vadd.f32 %v2169, 1.4214138
        %v2298 = vadd.f32 %v2170, 1.4214138
        %v2299 = vadd.f32 %v2171, 1.4214138
        %v2300 = vadd.f32 %v2172, 1.4214138
        %v2301 = vadd.f32 %v2173, 1.4214138
        %v2302 = vadd.f32 %v2174, 1.4214138
        %v2303 = vadd.f32 %v2175, 1.4214138
        %v2304 = vadd.f32 %v2176, 1.4214138
        %v2305 = vadd.f32 %v2177, 1.4214138
        %v2306 = vadd.f32 %v2178, 1.4214138
        %v2307 = vadd.f32 %v2179, 1.4214138
        %v2308 = vadd.f32 %v2180, 1.4214138
        %v2309 = vadd.f32 %v2181, 1.4214138
        %v2310 = vadd.f32 %v2182, 1.4214138
        %v2311 = vadd.f32 %v2183, 1.4214138
        %v2312 = vadd.f32 %v2184, 1.4214138
        %v2313 = vadd.f32 %v2185, 1.4214138
        %v2314 = vadd.f32 %v2186, 1.4214138
        %v2315 = vadd.f32 %v2187, 1.4214138
        %v2316 = vadd.f32 %v2188, 1.4214138
        %v2317 = vadd.f32 %v2189, 1.4214138
        %v2318 = vadd.f32 %v2190, 1.4214138
        %v2319 = vadd.f32 %v2191, 1.4214138
        %v2320 = vadd.f32 %v2192, 1.4214138
        %v2321 = vadd.f32 %v2193, 1.4214138
        %v2322 = vadd.f32 %v2194, 1.4214138
        %v2323 = vadd.f32 %v2195, 1.4214138
        %v2324 = vadd.f32 %v2196, 1.4214138
        %v2325 = vadd.f32 %v2197, 1.4214138
        %v2326 = vadd.f32 %v2198, 1.4214138
        %v2327 = vadd.f32 %v2199, 1.4214138
        %v2328 = vadd.f32 %v2200, 1.4214138
        %v2329 = vadd.f32 %v2201, 1.4214138
        %v2330 = vadd.f32 %v2202, 1.4214138
        %v2331 = vmul.f32 %v2203, %v1564
        %v2332 = vmul.f32 %v2204, %v1566
        %v2333 = vmul.f32 %v2205, %v1568
        %v2334 = vmul.f32 %v2206, %v1570
        %v2335 = vmul.f32 %v2207, %v1572
        %v2336 = vmul.f32 %v2208, %v1574
        %v2337 = vmul.f32 %v2209, %v1576
        %v2338 = vmul.f32 %v2210, %v1578
        %v2339 = vmul.f32 %v2211, %v1580
        %v2340 = vmul.f32 %v2212, %v1582
        %v2341 = vmul.f32 %v2213, %v1584
        %v2342 = vmul.f32 %v2214, %v1586
        %v2343 = vmul.f32 %v2215, %v1588
        %v2344 = vmul.f32 %v2216, %v1590
        %v2345 = vmul.f32 %v2217, %v1592
        %v2346 = vmul.f32 %v2218, %v1594
        %v2347 = vmul.f32 %v2219, %v1596
        %v2348 = vmul.f32 %v2220, %v1598
        %v2349 = vmul.f32 %v2221, %v1600
        %v2350 = vmul.f32 %v2222, %v1602
        %v2351 = vmul.f32 %v2223, %v1604
        %v2352 = vmul.f32 %v2224, %v1606
        %v2353 = vmul.f32 %v2225, %v1608
        %v2354 = vmul.f32 %v2226, %v1610
        %v2355 = vmul.f32 %v2227, %v1612
        %v2356 = vmul.f32 %v2228, %v1614
        %v2357 = vmul.f32 %v2229, %v1616
        %v2358 = vmul.f32 %v2230, %v1618
        %v2359 = vmul.f32 %v2231, %v1620
        %v2360 = vmul.f32 %v2232, %v1622
        %v2361 = vmul.f32 %v2233, %v1624
        %v2362 = vmul.f32 %v2234, %v1626
        %v2363 = vmul.f32 %v2235, %v1628
        %v2364 = vmul.f32 %v2236, %v1630
        %v2365 = vmul.f32 %v2237, %v1632
        %v2366 = vmul.f32 %v2238, %v1634
        %v2367 = vmul.f32 %v2239, %v1636
        %v2368 = vmul.f32 %v2240, %v1638
        %v2369 = vmul.f32 %v2241, %v1640
        %v2370 = vmul.f32 %v2242, %v1642
        %v2371 = vmul.f32 %v2243, %v1644
        %v2372 = vmul.f32 %v2244, %v1646
        %v2373 = vmul.f32 %v2245, %v1648
        %v2374 = vmul.f32 %v2246, %v1650
        %v2375 = vmul.f32 %v2247, %v1652
        %v2376 = vmul.f32 %v2248, %v1654
        %v2377 = vmul.f32 %v2249, %v1656
        %v2378 = vmul.f32 %v2250, %v1658
        %v2379 = vmul.f32 %v2251, %v1660
        %v2380 = vmul.f32 %v2252, %v1662
        %v2381 = vmul.f32 %v2253, %v1664
        %v2382 = vmul.f32 %v2254, %v1666
        %v2383 = vmul.f32 %v2255, %v1668
        %v2384 = vmul.f32 %v2256, %v1670
        %v2385 = vmul.f32 %v2257, %v1672
        %v2386 = vmul.f32 %v2258, %v1674
        %v2387 = vmul.f32 %v2259, %v1676
        %v2388 = vmul.f32 %v2260, %v1678
        %v2389 = vmul.f32 %v2261, %v1680
        %v2390 = vmul.f32 %v2262, %v1682
        %v2391 = vmul.f32 %v2263, %v1684
        %v2392 = vmul.f32 %v2264, %v1686
        %v2393 = vmul.f32 %v2265, %v1688
        %v2394 = vmul.f32 %v2266, %v1690
        %v2395 = vmul.f32 %v2267, %v1692
        %v2396 = vmul.f32 %v2268, %v1694
        %v2397 = vmul.f32 %v2269, %v1696
        %v2398 = vmul.f32 %v2270, %v1698
        %v2399 = vmul.f32 %v2271, %v1700
        %v2400 = vmul.f32 %v2272, %v1702
        %v2401 = vmul.f32 %v2273, %v1704
        %v2402 = vmul.f32 %v2274, %v1706
        %v2403 = vmul.f32 %v2275, %v1708
        %v2404 = vmul.f32 %v2276, %v1710
        %v2405 = vmul.f32 %v2277, %v1712
        %v2406 = vmul.f32 %v2278, %v1714
        %v2407 = vmul.f32 %v2279, %v1716
        %v2408 = vmul.f32 %v2280, %v1718
        %v2409 = vmul.f32 %v2281, %v1720
        %v2410 = vmul.f32 %v2282, %v1722
        %v2411 = vmul.f32 %v2283, %v1724
        %v2412 = vmul.f32 %v2284, %v1726
        %v2413 = vmul.f32 %v2285, %v1728
        %v2414 = vmul.f32 %v2286, %v1730
        %v2415 = vmul.f32 %v2287, %v1732
        %v2416 = vmul.f32 %v2288, %v1734
        %v2417 = vmul.f32 %v2289, %v1736
        %v2418 = vmul.f32 %v2290, %v1738
        %v2419 = vmul.f32 %v2291, %v1740
        %v2420 = vmul.f32 %v2292, %v1742
        %v2421 = vmul.f32 %v2293, %v1744
        %v2422 = vmul.f32 %v2294, %v1746
        %v2423 = vmul.f32 %v2295, %v1748
        %v2424 = vmul.f32 %v2296, %v1750
        %v2425 = vmul.f32 %v2297, %v1752
        %v2426 = vmul.f32 %v2298, %v1754
        %v2427 = vmul.f32 %v2299, %v1756
        %v2428 = vmul.f32 %v2300, %v1758
        %v2429 = vmul.f32 %v2301, %v1760
        %v2430 = vmul.f32 %v2302, %v1762
        %v2431 = vmul.f32 %v2303, %v1764
        %v2432 = vmul.f32 %v2304, %v1766
        %v2433 = vmul.f32 %v2305, %v1768
        %v2434 = vmul.f32 %v2306, %v1770
        %v2435 = vmul.f32 %v2307, %v1772
        %v2436 = vmul.f32 %v2308, %v1774
        %v2437 = vmul.f32 %v2309, %v1776
        %v2438 = vmul.f32 %v2310, %v1778
        %v2439 = vmul.f32 %v2311, %v1780
        %v2440 = vmul.f32 %v2312, %v1782
        %v2441 = vmul.f32 %v2313, %v1784
        %v2442 = vmul.f32 %v2314, %v1786
        %v2443 = vmul.f32 %v2315, %v1788
        %v2444 = vmul.f32 %v2316, %v1790
        %v2445 = vmul.f32 %v2317, %v1792
        %v2446 = vmul.f32 %v2318, %v1794
        %v2447 = vmul.f32 %v2319, %v1796
        %v2448 = vmul.f32 %v2320, %v1798
        %v2449 = vmul.f32 %v2321, %v1800
        %v2450 = vmul.f32 %v2322, %v1802
        %v2451 = vmul.f32 %v2323, %v1804
        %v2452 = vmul.f32 %v2324, %v1806
        %v2453 = vmul.f32 %v2325, %v1808
        %v2454 = vmul.f32 %v2326, %v1810
        %v2455 = vmul.f32 %v2327, %v1812
        %v2456 = vmul.f32 %v2328, %v1814
        %v2457 = vmul.f32 %v2329, %v1816
        %v2458 = vmul.f32 %v2330, %v1818
        %v2459 = vadd.f32 %v2331, -0.28449672
        %v2460 = vadd.f32 %v2332, -0.28449672
        %v2461 = vadd.f32 %v2333, -0.28449672
        %v2462 = vadd.f32 %v2334, -0.28449672
        %v2463 = vadd.f32 %v2335, -0.28449672
        %v2464 = vadd.f32 %v2336, -0.28449672
        %v2465 = vadd.f32 %v2337, -0.28449672
        %v2466 = vadd.f32 %v2338, -0.28449672
        %v2467 = vadd.f32 %v2339, -0.28449672
        %v2468 = vadd.f32 %v2340, -0.28449672
        %v2469 = vadd.f32 %v2341, -0.28449672
        %v2470 = vadd.f32 %v2342, -0.28449672
        %v2471 = vadd.f32 %v2343, -0.28449672
        %v2472 = vadd.f32 %v2344, -0.28449672
        %v2473 = vadd.f32 %v2345, -0.28449672
        %v2474 = vadd.f32 %v2346, -0.28449672
        %v2475 = vadd.f32 %v2347, -0.28449672
        %v2476 = vadd.f32 %v2348, -0.28449672
        %v2477 = vadd.f32 %v2349, -0.28449672
        %v2478 = vadd.f32 %v2350, -0.28449672
        %v2479 = vadd.f32 %v2351, -0.28449672
        %v2480 = vadd.f32 %v2352, -0.28449672
        %v2481 = vadd.f32 %v2353, -0.28449672
        %v2482 = vadd.f32 %v2354, -0.28449672
        %v2483 = vadd.f32 %v2355, -0.28449672
        %v2484 = vadd.f32 %v2356, -0.28449672
        %v2485 = vadd.f32 %v2357, -0.28449672
        %v2486 = vadd.f32 %v2358, -0.28449672
        %v2487 = vadd.f32 %v2359, -0.28449672
        %v2488 = vadd.f32 %v2360, -0.28449672
        %v2489 = vadd.f32 %v2361, -0.28449672
        %v2490 = vadd.f32 %v2362, -0.28449672
        %v2491 = vadd.f32 %v2363, -0.28449672
        %v2492 = vadd.f32 %v2364, -0.28449672
        %v2493 = vadd.f32 %v2365, -0.28449672
        %v2494 = vadd.f32 %v2366, -0.28449672
        %v2495 = vadd.f32 %v2367, -0.28449672
        %v2496 = vadd.f32 %v2368, -0.28449672
        %v2497 = vadd.f32 %v2369, -0.28449672
        %v2498 = vadd.f32 %v2370, -0.28449672
        %v2499 = vadd.f32 %v2371, -0.28449672
        %v2500 = vadd.f32 %v2372, -0.28449672
        %v2501 = vadd.f32 %v2373, -0.28449672
        %v2502 = vadd.f32 %v2374, -0.28449672
        %v2503 = vadd.f32 %v2375, -0.28449672
        %v2504 = vadd.f32 %v2376, -0.28449672
        %v2505 = vadd.f32 %v2377, -0.28449672
        %v2506 = vadd.f32 %v2378, -0.28449672
        %v2507 = vadd.f32 %v2379, -0.28449672
        %v2508 = vadd.f32 %v2380, -0.28449672
        %v2509 = vadd.f32 %v2381, -0.28449672
        %v2510 = vadd.f32 %v2382, -0.28449672
        %v2511 = vadd.f32 %v2383, -0.28449672
        %v2512 = vadd.f32 %v2384, -0.28449672
        %v2513 = vadd.f32 %v2385, -0.28449672
        %v2514 = vadd.f32 %v2386, -0.28449672
        %v2515 = vadd.f32 %v2387, -0.28449672
        %v2516 = vadd.f32 %v2388, -0.28449672
        %v2517 = vadd.f32 %v2389, -0.28449672
        %v2518 = vadd.f32 %v2390, -0.28449672
        %v2519 = vadd.f32 %v2391, -0.28449672
        %v2520 = vadd.f32 %v2392, -0.28449672
        %v2521 = vadd.f32 %v2393, -0.28449672
        %v2522 = vadd.f32 %v2394, -0.28449672
        %v2523 = vadd.f32 %v2395, -0.28449672
        %v2524 = vadd.f32 %v2396, -0.28449672
        %v2525 = vadd.f32 %v2397, -0.28449672
        %v2526 = vadd.f32 %v2398, -0.28449672
        %v2527 = vadd.f32 %v2399, -0.28449672
        %v2528 = vadd.f32 %v2400, -0.28449672
        %v2529 = vadd.f32 %v2401, -0.28449672
        %v2530 = vadd.f32 %v2402, -0.28449672
        %v2531 = vadd.f32 %v2403, -0.28449672
        %v2532 = vadd.f32 %v2404, -0.28449672
        %v2533 = vadd.f32 %v2405, -0.28449672
        %v2534 = vadd.f32 %v2406, -0.28449672
        %v2535 = vadd.f32 %v2407, -0.28449672
        %v2536 = vadd.f32 %v2408, -0.28449672
        %v2537 = vadd.f32 %v2409, -0.28449672
        %v2538 = vadd.f32 %v2410, -0.28449672
        %v2539 = vadd.f32 %v2411, -0.28449672
        %v2540 = vadd.f32 %v2412, -0.28449672
        %v2541 = vadd.f32 %v2413, -0.28449672
        %v2542 = vadd.f32 %v2414, -0.28449672
        %v2543 = vadd.f32 %v2415, -0.28449672
        %v2544 = vadd.f32 %v2416, -0.28449672
        %v2545 = vadd.f32 %v2417, -0.28449672
        %v2546 = vadd.f32 %v2418, -0.28449672
        %v2547 = vadd.f32 %v2419, -0.28449672
        %v2548 = vadd.f32 %v2420, -0.28449672
        %v2549 = vadd.f32 %v2421, -0.28449672
        %v2550 = vadd.f32 %v2422, -0.28449672
        %v2551 = vadd.f32 %v2423, -0.28449672
        %v2552 = vadd.f32 %v2424, -0.28449672
        %v2553 = vadd.f32 %v2425, -0.28449672
        %v2554 = vadd.f32 %v2426, -0.28449672
        %v2555 = vadd.f32 %v2427, -0.28449672
        %v2556 = vadd.f32 %v2428, -0.28449672
        %v2557 = vadd.f32 %v2429, -0.28449672
        %v2558 = vadd.f32 %v2430, -0.28449672
        %v2559 = vadd.f32 %v2431, -0.28449672
        %v2560 = vadd.f32 %v2432, -0.28449672
        %v2561 = vadd.f32 %v2433, -0.28449672
        %v2562 = vadd.f32 %v2434, -0.28449672
        %v2563 = vadd.f32 %v2435, -0.28449672
        %v2564 = vadd.f32 %v2436, -0.28449672
        %v2565 = vadd.f32 %v2437, -0.28449672
        %v2566 = vadd.f32 %v2438, -0.28449672
        %v2567 = vadd.f32 %v2439, -0.28449672
        %v2568 = vadd.f32 %v2440, -0.28449672
        %v2569 = vadd.f32 %v2441, -0.28449672
        %v2570 = vadd.f32 %v2442, -0.28449672
        %v2571 = vadd.f32 %v2443, -0.28449672
        %v2572 = vadd.f32 %v2444, -0.28449672
        %v2573 = vadd.f32 %v2445, -0.28449672
        %v2574 = vadd.f32 %v2446, -0.28449672
        %v2575 = vadd.f32 %v2447, -0.28449672
        %v2576 = vadd.f32 %v2448, -0.28449672
        %v2577 = vadd.f32 %v2449, -0.28449672
        %v2578 = vadd.f32 %v2450, -0.28449672
        %v2579 = vadd.f32 %v2451, -0.28449672
        %v2580 = vadd.f32 %v2452, -0.28449672
        %v2581 = vadd.f32 %v2453, -0.28449672
        %v2582 = vadd.f32 %v2454, -0.28449672
        %v2583 = vadd.f32 %v2455, -0.28449672
        %v2584 = vadd.f32 %v2456, -0.28449672
        %v2585 = vadd.f32 %v2457, -0.28449672
        %v2586 = vadd.f32 %v2458, -0.28449672
        %v2587 = vmul.f32 %v2459, %v1564
        %v2588 = vmul.f32 %v2460, %v1566
        %v2589 = vmul.f32 %v2461, %v1568
        %v2590 = vmul.f32 %v2462, %v1570
        %v2591 = vmul.f32 %v2463, %v1572
        %v2592 = vmul.f32 %v2464, %v1574
        %v2593 = vmul.f32 %v2465, %v1576
        %v2594 = vmul.f32 %v2466, %v1578
        %v2595 = vmul.f32 %v2467, %v1580
        %v2596 = vmul.f32 %v2468, %v1582
        %v2597 = vmul.f32 %v2469, %v1584
        %v2598 = vmul.f32 %v2470, %v1586
        %v2599 = vmul.f32 %v2471, %v1588
        %v2600 = vmul.f32 %v2472, %v1590
        %v2601 = vmul.f32 %v2473, %v1592
        %v2602 = vmul.f32 %v2474, %v1594
        %v2603 = vmul.f32 %v2475, %v1596
        %v2604 = vmul.f32 %v2476, %v1598
        %v2605 = vmul.f32 %v2477, %v1600
        %v2606 = vmul.f32 %v2478, %v1602
        %v2607 = vmul.f32 %v2479, %v1604
        %v2608 = vmul.f32 %v2480, %v1606
        %v2609 = vmul.f32 %v2481, %v1608
        %v2610 = vmul.f32 %v2482, %v1610
        %v2611 = vmul.f32 %v2483, %v1612
        %v2612 = vmul.f32 %v2484, %v1614
        %v2613 = vmul.f32 %v2485, %v1616
        %v2614 = vmul.f32 %v2486, %v1618
        %v2615 = vmul.f32 %v2487, %v1620
        %v2616 = vmul.f32 %v2488, %v1622
        %v2617 = vmul.f32 %v2489, %v1624
        %v2618 = vmul.f32 %v2490, %v1626
        %v2619 = vmul.f32 %v2491, %v1628
        %v2620 = vmul.f32 %v2492, %v1630
        %v2621 = vmul.f32 %v2493, %v1632
        %v2622 = vmul.f32 %v2494, %v1634
        %v2623 = vmul.f32 %v2495, %v1636
        %v2624 = vmul.f32 %v2496, %v1638
        %v2625 = vmul.f32 %v2497, %v1640
        %v2626 = vmul.f32 %v2498, %v1642
        %v2627 = vmul.f32 %v2499, %v1644
        %v2628 = vmul.f32 %v2500, %v1646
        %v2629 = vmul.f32 %v2501, %v1648
        %v2630 = vmul.f32 %v2502, %v1650
        %v2631 = vmul.f32 %v2503, %v1652
        %v2632 = vmul.f32 %v2504, %v1654
        %v2633 = vmul.f32 %v2505, %v1656
        %v2634 = vmul.f32 %v2506, %v1658
        %v2635 = vmul.f32 %v2507, %v1660
        %v2636 = vmul.f32 %v2508, %v1662
        %v2637 = vmul.f32 %v2509, %v1664
        %v2638 = vmul.f32 %v2510, %v1666
        %v2639 = vmul.f32 %v2511, %v1668
        %v2640 = vmul.f32 %v2512, %v1670
        %v2641 = vmul.f32 %v2513, %v1672
        %v2642 = vmul.f32 %v2514, %v1674
        %v2643 = vmul.f32 %v2515, %v1676
        %v2644 = vmul.f32 %v2516, %v1678
        %v2645 = vmul.f32 %v2517, %v1680
        %v2646 = vmul.f32 %v2518, %v1682
        %v2647 = vmul.f32 %v2519, %v1684
        %v2648 = vmul.f32 %v2520, %v1686
        %v2649 = vmul.f32 %v2521, %v1688
        %v2650 = vmul.f32 %v2522, %v1690
        %v2651 = vmul.f32 %v2523, %v1692
        %v2652 = vmul.f32 %v2524, %v1694
        %v2653 = vmul.f32 %v2525, %v1696
        %v2654 = vmul.f32 %v2526, %v1698
        %v2655 = vmul.f32 %v2527, %v1700
        %v2656 = vmul.f32 %v2528, %v1702
        %v2657 = vmul.f32 %v2529, %v1704
        %v2658 = vmul.f32 %v2530, %v1706
        %v2659 = vmul.f32 %v2531, %v1708
        %v2660 = vmul.f32 %v2532, %v1710
        %v2661 = vmul.f32 %v2533, %v1712
        %v2662 = vmul.f32 %v2534, %v1714
        %v2663 = vmul.f32 %v2535, %v1716
        %v2664 = vmul.f32 %v2536, %v1718
        %v2665 = vmul.f32 %v2537, %v1720
        %v2666 = vmul.f32 %v2538, %v1722
        %v2667 = vmul.f32 %v2539, %v1724
        %v2668 = vmul.f32 %v2540, %v1726
        %v2669 = vmul.f32 %v2541, %v1728
        %v2670 = vmul.f32 %v2542, %v1730
        %v2671 = vmul.f32 %v2543, %v1732
        %v2672 = vmul.f32 %v2544, %v1734
        %v2673 = vmul.f32 %v2545, %v1736
        %v2674 = vmul.f32 %v2546, %v1738
        %v2675 = vmul.f32 %v2547, %v1740
        %v2676 = vmul.f32 %v2548, %v1742
        %v2677 = vmul.f32 %v2549, %v1744
        %v2678 = vmul.f32 %v2550, %v1746
        %v2679 = vmul.f32 %v2551, %v1748
        %v2680 = vmul.f32 %v2552, %v1750
        %v2681 = vmul.f32 %v2553, %v1752
        %v2682 = vmul.f32 %v2554, %v1754
        %v2683 = vmul.f32 %v2555, %v1756
        %v2684 = vmul.f32 %v2556, %v1758
        %v2685 = vmul.f32 %v2557, %v1760
        %v2686 = vmul.f32 %v2558, %v1762
        %v2687 = vmul.f32 %v2559, %v1764
        %v2688 = vmul.f32 %v2560, %v1766
        %v2689 = vmul.f32 %v2561, %v1768
        %v2690 = vmul.f32 %v2562, %v1770
        %v2691 = vmul.f32 %v2563, %v1772
        %v2692 = vmul.f32 %v2564, %v1774
        %v2693 = vmul.f32 %v2565, %v1776
        %v2694 = vmul.f32 %v2566, %v1778
        %v2695 = vmul.f32 %v2567, %v1780
        %v2696 = vmul.f32 %v2568, %v1782
        %v2697 = vmul.f32 %v2569, %v1784
        %v2698 = vmul.f32 %v2570, %v1786
        %v2699 = vmul.f32 %v2571, %v1788
        %v2700 = vmul.f32 %v2572, %v1790
        %v2701 = vmul.f32 %v2573, %v1792
        %v2702 = vmul.f32 %v2574, %v1794
        %v2703 = vmul.f32 %v2575, %v1796
        %v2704 = vmul.f32 %v2576, %v1798
        %v2705 = vmul.f32 %v2577, %v1800
        %v2706 = vmul.f32 %v2578, %v1802
        %v2707 = vmul.f32 %v2579, %v1804
        %v2708 = vmul.f32 %v2580, %v1806
        %v2709 = vmul.f32 %v2581, %v1808
        %v2710 = vmul.f32 %v2582, %v1810
        %v2711 = vmul.f32 %v2583, %v1812
        %v2712 = vmul.f32 %v2584, %v1814
        %v2713 = vmul.f32 %v2585, %v1816
        %v2714 = vmul.f32 %v2586, %v1818
        %v2715 = vadd.f32 %v2587, 0.2548296
        %v2716 = vadd.f32 %v2588, 0.2548296
        %v2717 = vadd.f32 %v2589, 0.2548296
        %v2718 = vadd.f32 %v2590, 0.2548296
        %v2719 = vadd.f32 %v2591, 0.2548296
        %v2720 = vadd.f32 %v2592, 0.2548296
        %v2721 = vadd.f32 %v2593, 0.2548296
        %v2722 = vadd.f32 %v2594, 0.2548296
        %v2723 = vadd.f32 %v2595, 0.2548296
        %v2724 = vadd.f32 %v2596, 0.2548296
        %v2725 = vadd.f32 %v2597, 0.2548296
        %v2726 = vadd.f32 %v2598, 0.2548296
        %v2727 = vadd.f32 %v2599, 0.2548296
        %v2728 = vadd.f32 %v2600, 0.2548296
        %v2729 = vadd.f32 %v2601, 0.2548296
        %v2730 = vadd.f32 %v2602, 0.2548296
        %v2731 = vadd.f32 %v2603, 0.2548296
        %v2732 = vadd.f32 %v2604, 0.2548296
        %v2733 = vadd.f32 %v2605, 0.2548296
        %v2734 = vadd.f32 %v2606, 0.2548296
        %v2735 = vadd.f32 %v2607, 0.2548296
        %v2736 = vadd.f32 %v2608, 0.2548296
        %v2737 = vadd.f32 %v2609, 0.2548296
        %v2738 = vadd.f32 %v2610, 0.2548296
        %v2739 = vadd.f32 %v2611, 0.2548296
        %v2740 = vadd.f32 %v2612, 0.2548296
        %v2741 = vadd.f32 %v2613, 0.2548296
        %v2742 = vadd.f32 %v2614, 0.2548296
        %v2743 = vadd.f32 %v2615, 0.2548296
        %v2744 = vadd.f32 %v2616, 0.2548296
        %v2745 = vadd.f32 %v2617, 0.2548296
        %v2746 = vadd.f32 %v2618, 0.2548296
        %v2747 = vadd.f32 %v2619, 0.2548296
        %v2748 = vadd.f32 %v2620, 0.2548296
        %v2749 = vadd.f32 %v2621, 0.2548296
        %v2750 = vadd.f32 %v2622, 0.2548296
        %v2751 = vadd.f32 %v2623, 0.2548296
        %v2752 = vadd.f32 %v2624, 0.2548296
        %v2753 = vadd.f32 %v2625, 0.2548296
        %v2754 = vadd.f32 %v2626, 0.2548296
        %v2755 = vadd.f32 %v2627, 0.2548296
        %v2756 = vadd.f32 %v2628, 0.2548296
        %v2757 = vadd.f32 %v2629, 0.2548296
        %v2758 = vadd.f32 %v2630, 0.2548296
        %v2759 = vadd.f32 %v2631, 0.2548296
        %v2760 = vadd.f32 %v2632, 0.2548296
        %v2761 = vadd.f32 %v2633, 0.2548296
        %v2762 = vadd.f32 %v2634, 0.2548296
        %v2763 = vadd.f32 %v2635, 0.2548296
        %v2764 = vadd.f32 %v2636, 0.2548296
        %v2765 = vadd.f32 %v2637, 0.2548296
        %v2766 = vadd.f32 %v2638, 0.2548296
        %v2767 = vadd.f32 %v2639, 0.2548296
        %v2768 = vadd.f32 %v2640, 0.2548296
        %v2769 = vadd.f32 %v2641, 0.2548296
        %v2770 = vadd.f32 %v2642, 0.2548296
        %v2771 = vadd.f32 %v2643, 0.2548296
        %v2772 = vadd.f32 %v2644, 0.2548296
        %v2773 = vadd.f32 %v2645, 0.2548296
        %v2774 = vadd.f32 %v2646, 0.2548296
        %v2775 = vadd.f32 %v2647, 0.2548296
        %v2776 = vadd.f32 %v2648, 0.2548296
        %v2777 = vadd.f32 %v2649, 0.2548296
        %v2778 = vadd.f32 %v2650, 0.2548296
        %v2779 = vadd.f32 %v2651, 0.2548296
        %v2780 = vadd.f32 %v2652, 0.2548296
        %v2781 = vadd.f32 %v2653, 0.2548296
        %v2782 = vadd.f32 %v2654, 0.2548296
        %v2783 = vadd.f32 %v2655, 0.2548296
        %v2784 = vadd.f32 %v2656, 0.2548296
        %v2785 = vadd.f32 %v2657, 0.2548296
        %v2786 = vadd.f32 %v2658, 0.2548296
        %v2787 = vadd.f32 %v2659, 0.2548296
        %v2788 = vadd.f32 %v2660, 0.2548296
        %v2789 = vadd.f32 %v2661, 0.2548296
        %v2790 = vadd.f32 %v2662, 0.2548296
        %v2791 = vadd.f32 %v2663, 0.2548296
        %v2792 = vadd.f32 %v2664, 0.2548296
        %v2793 = vadd.f32 %v2665, 0.2548296
        %v2794 = vadd.f32 %v2666, 0.2548296
        %v2795 = vadd.f32 %v2667, 0.2548296
        %v2796 = vadd.f32 %v2668, 0.2548296
        %v2797 = vadd.f32 %v2669, 0.2548296
        %v2798 = vadd.f32 %v2670, 0.2548296
        %v2799 = vadd.f32 %v2671, 0.2548296
        %v2800 = vadd.f32 %v2672, 0.2548296
        %v2801 = vadd.f32 %v2673, 0.2548296
        %v2802 = vadd.f32 %v2674, 0.2548296
        %v2803 = vadd.f32 %v2675, 0.2548296
        %v2804 = vadd.f32 %v2676, 0.2548296
        %v2805 = vadd.f32 %v2677, 0.2548296
        %v2806 = vadd.f32 %v2678, 0.2548296
        %v2807 = vadd.f32 %v2679, 0.2548296
        %v2808 = vadd.f32 %v2680, 0.2548296
        %v2809 = vadd.f32 %v2681, 0.2548296
        %v2810 = vadd.f32 %v2682, 0.2548296
        %v2811 = vadd.f32 %v2683, 0.2548296
        %v2812 = vadd.f32 %v2684, 0.2548296
        %v2813 = vadd.f32 %v2685, 0.2548296
        %v2814 = vadd.f32 %v2686, 0.2548296
        %v2815 = vadd.f32 %v2687, 0.2548296
        %v2816 = vadd.f32 %v2688, 0.2548296
        %v2817 = vadd.f32 %v2689, 0.2548296
        %v2818 = vadd.f32 %v2690, 0.2548296
        %v2819 = vadd.f32 %v2691, 0.2548296
        %v2820 = vadd.f32 %v2692, 0.2548296
        %v2821 = vadd.f32 %v2693, 0.2548296
        %v2822 = vadd.f32 %v2694, 0.2548296
        %v2823 = vadd.f32 %v2695, 0.2548296
        %v2824 = vadd.f32 %v2696, 0.2548296
        %v2825 = vadd.f32 %v2697, 0.2548296
        %v2826 = vadd.f32 %v2698, 0.2548296
        %v2827 = vadd.f32 %v2699, 0.2548296
        %v2828 = vadd.f32 %v2700, 0.2548296
        %v2829 = vadd.f32 %v2701, 0.2548296
        %v2830 = vadd.f32 %v2702, 0.2548296
        %v2831 = vadd.f32 %v2703, 0.2548296
        %v2832 = vadd.f32 %v2704, 0.2548296
        %v2833 = vadd.f32 %v2705, 0.2548296
        %v2834 = vadd.f32 %v2706, 0.2548296
        %v2835 = vadd.f32 %v2707, 0.2548296
        %v2836 = vadd.f32 %v2708, 0.2548296
        %v2837 = vadd.f32 %v2709, 0.2548296
        %v2838 = vadd.f32 %v2710, 0.2548296
        %v2839 = vadd.f32 %v2711, 0.2548296
        %v2840 = vadd.f32 %v2712, 0.2548296
        %v2841 = vadd.f32 %v2713, 0.2548296
        %v2842 = vadd.f32 %v2714, 0.2548296
        %v2843 = vmul.f32 %v2715, %v1564
        %v2844 = vmul.f32 %v2716, %v1566
        %v2845 = vmul.f32 %v2717, %v1568
        %v2846 = vmul.f32 %v2718, %v1570
        %v2847 = vmul.f32 %v2719, %v1572
        %v2848 = vmul.f32 %v2720, %v1574
        %v2849 = vmul.f32 %v2721, %v1576
        %v2850 = vmul.f32 %v2722, %v1578
        %v2851 = vmul.f32 %v2723, %v1580
        %v2852 = vmul.f32 %v2724, %v1582
        %v2853 = vmul.f32 %v2725, %v1584
        %v2854 = vmul.f32 %v2726, %v1586
        %v2855 = vmul.f32 %v2727, %v1588
        %v2856 = vmul.f32 %v2728, %v1590
        %v2857 = vmul.f32 %v2729, %v1592
        %v2858 = vmul.f32 %v2730, %v1594
        %v2859 = vmul.f32 %v2731, %v1596
        %v2860 = vmul.f32 %v2732, %v1598
        %v2861 = vmul.f32 %v2733, %v1600
        %v2862 = vmul.f32 %v2734, %v1602
        %v2863 = vmul.f32 %v2735, %v1604
        %v2864 = vmul.f32 %v2736, %v1606
        %v2865 = vmul.f32 %v2737, %v1608
        %v2866 = vmul.f32 %v2738, %v1610
        %v2867 = vmul.f32 %v2739, %v1612
        %v2868 = vmul.f32 %v2740, %v1614
        %v2869 = vmul.f32 %v2741, %v1616
        %v2870 = vmul.f32 %v2742, %v1618
        %v2871 = vmul.f32 %v2743, %v1620
        %v2872 = vmul.f32 %v2744, %v1622
        %v2873 = vmul.f32 %v2745, %v1624
        %v2874 = vmul.f32 %v2746, %v1626
        %v2875 = vmul.f32 %v2747, %v1628
        %v2876 = vmul.f32 %v2748, %v1630
        %v2877 = vmul.f32 %v2749, %v1632
        %v2878 = vmul.f32 %v2750, %v1634
        %v2879 = vmul.f32 %v2751, %v1636
        %v2880 = vmul.f32 %v2752, %v1638
        %v2881 = vmul.f32 %v2753, %v1640
        %v2882 = vmul.f32 %v2754, %v1642
        %v2883 = vmul.f32 %v2755, %v1644
        %v2884 = vmul.f32 %v2756, %v1646
        %v2885 = vmul.f32 %v2757, %v1648
        %v2886 = vmul.f32 %v2758, %v1650
        %v2887 = vmul.f32 %v2759, %v1652
        %v2888 = vmul.f32 %v2760, %v1654
        %v2889 = vmul.f32 %v2761, %v1656
        %v2890 = vmul.f32 %v2762, %v1658
        %v2891 = vmul.f32 %v2763, %v1660
        %v2892 = vmul.f32 %v2764, %v1662
        %v2893 = vmul.f32 %v2765, %v1664
        %v2894 = vmul.f32 %v2766, %v1666
        %v2895 = vmul.f32 %v2767, %v1668
        %v2896 = vmul.f32 %v2768, %v1670
        %v2897 = vmul.f32 %v2769, %v1672
        %v2898 = vmul.f32 %v2770, %v1674
        %v2899 = vmul.f32 %v2771, %v1676
        %v2900 = vmul.f32 %v2772, %v1678
        %v2901 = vmul.f32 %v2773, %v1680
        %v2902 = vmul.f32 %v2774, %v1682
        %v2903 = vmul.f32 %v2775, %v1684
        %v2904 = vmul.f32 %v2776, %v1686
        %v2905 = vmul.f32 %v2777, %v1688
        %v2906 = vmul.f32 %v2778, %v1690
        %v2907 = vmul.f32 %v2779, %v1692
        %v2908 = vmul.f32 %v2780, %v1694
        %v2909 = vmul.f32 %v2781, %v1696
        %v2910 = vmul.f32 %v2782, %v1698
        %v2911 = vmul.f32 %v2783, %v1700
        %v2912 = vmul.f32 %v2784, %v1702
        %v2913 = vmul.f32 %v2785, %v1704
        %v2914 = vmul.f32 %v2786, %v1706
        %v2915 = vmul.f32 %v2787, %v1708
        %v2916 = vmul.f32 %v2788, %v1710
        %v2917 = vmul.f32 %v2789, %v1712
        %v2918 = vmul.f32 %v2790, %v1714
        %v2919 = vmul.f32 %v2791, %v1716
        %v2920 = vmul.f32 %v2792, %v1718
        %v2921 = vmul.f32 %v2793, %v1720
        %v2922 = vmul.f32 %v2794, %v1722
        %v2923 = vmul.f32 %v2795, %v1724
        %v2924 = vmul.f32 %v2796, %v1726
        %v2925 = vmul.f32 %v2797, %v1728
        %v2926 = vmul.f32 %v2798, %v1730
        %v2927 = vmul.f32 %v2799, %v1732
        %v2928 = vmul.f32 %v2800, %v1734
        %v2929 = vmul.f32 %v2801, %v1736
        %v2930 = vmul.f32 %v2802, %v1738
        %v2931 = vmul.f32 %v2803, %v1740
        %v2932 = vmul.f32 %v2804, %v1742
        %v2933 = vmul.f32 %v2805, %v1744
        %v2934 = vmul.f32 %v2806, %v1746
        %v2935 = vmul.f32 %v2807, %v1748
        %v2936 = vmul.f32 %v2808, %v1750
        %v2937 = vmul.f32 %v2809, %v1752
        %v2938 = vmul.f32 %v2810, %v1754
        %v2939 = vmul.f32 %v2811, %v1756
        %v2940 = vmul.f32 %v2812, %v1758
        %v2941 = vmul.f32 %v2813, %v1760
        %v2942 = vmul.f32 %v2814, %v1762
        %v2943 = vmul.f32 %v2815, %v1764
        %v2944 = vmul.f32 %v2816, %v1766
        %v2945 = vmul.f32 %v2817, %v1768
        %v2946 = vmul.f32 %v2818, %v1770
        %v2947 = vmul.f32 %v2819, %v1772
        %v2948 = vmul.f32 %v2820, %v1774
        %v2949 = vmul.f32 %v2821, %v1776
        %v2950 = vmul.f32 %v2822, %v1778
        %v2951 = vmul.f32 %v2823, %v1780
        %v2952 = vmul.f32 %v2824, %v1782
        %v2953 = vmul.f32 %v2825, %v1784
        %v2954 = vmul.f32 %v2826, %v1786
        %v2955 = vmul.f32 %v2827, %v1788
        %v2956 = vmul.f32 %v2828, %v1790
        %v2957 = vmul.f32 %v2829, %v1792
        %v2958 = vmul.f32 %v2830, %v1794
        %v2959 = vmul.f32 %v2831, %v1796
        %v2960 = vmul.f32 %v2832, %v1798
        %v2961 = vmul.f32 %v2833, %v1800
        %v2962 = vmul.f32 %v2834, %v1802
        %v2963 = vmul.f32 %v2835, %v1804
        %v2964 = vmul.f32 %v2836, %v1806
        %v2965 = vmul.f32 %v2837, %v1808
        %v2966 = vmul.f32 %v2838, %v1810
        %v2967 = vmul.f32 %v2839, %v1812
        %v2968 = vmul.f32 %v2840, %v1814
        %v2969 = vmul.f32 %v2841, %v1816
        %v2970 = vmul.f32 %v2842, %v1818
        %v2971 = vmul.f32 %v1179, %v1179
        %v2972 = vmul.f32 %v1180, %v1180
        %v2973 = vmul.f32 %v1181, %v1181
        %v2974 = vmul.f32 %v1182, %v1182
        %v2975 = vmul.f32 %v1183, %v1183
        %v2976 = vmul.f32 %v1184, %v1184
        %v2977 = vmul.f32 %v1185, %v1185
        %v2978 = vmul.f32 %v1186, %v1186
        %v2979 = vmul.f32 %v1187, %v1187
        %v2980 = vmul.f32 %v1188, %v1188
        %v2981 = vmul.f32 %v1189, %v1189
        %v2982 = vmul.f32 %v1190, %v1190
        %v2983 = vmul.f32 %v1191, %v1191
        %v2984 = vmul.f32 %v1192, %v1192
        %v2985 = vmul.f32 %v1193, %v1193
        %v2986 = vmul.f32 %v1194, %v1194
        %v2987 = vmul.f32 %v1195, %v1195
        %v2988 = vmul.f32 %v1196, %v1196
        %v2989 = vmul.f32 %v1197, %v1197
        %v2990 = vmul.f32 %v1198, %v1198
        %v2991 = vmul.f32 %v1199, %v1199
        %v2992 = vmul.f32 %v1200, %v1200
        %v2993 = vmul.f32 %v1201, %v1201
        %v2994 = vmul.f32 %v1202, %v1202
        %v2995 = vmul.f32 %v1203, %v1203
        %v2996 = vmul.f32 %v1204, %v1204
        %v2997 = vmul.f32 %v1205, %v1205
        %v2998 = vmul.f32 %v1206, %v1206
        %v2999 = vmul.f32 %v1207, %v1207
        %v3000 = vmul.f32 %v1208, %v1208
        %v3001 = vmul.f32 %v1209, %v1209
        %v3002 = vmul.f32 %v1210, %v1210
        %v3003 = vmul.f32 %v1211, %v1211
        %v3004 = vmul.f32 %v1212, %v1212
        %v3005 = vmul.f32 %v1213, %v1213
        %v3006 = vmul.f32 %v1214, %v1214
        %v3007 = vmul.f32 %v1215, %v1215
        %v3008 = vmul.f32 %v1216, %v1216
        %v3009 = vmul.f32 %v1217, %v1217
        %v3010 = vmul.f32 %v1218, %v1218
        %v3011 = vmul.f32 %v1219, %v1219
        %v3012 = vmul.f32 %v1220, %v1220
        %v3013 = vmul.f32 %v1221, %v1221
        %v3014 = vmul.f32 %v1222, %v1222
        %v3015 = vmul.f32 %v1223, %v1223
        %v3016 = vmul.f32 %v1224, %v1224
        %v3017 = vmul.f32 %v1225, %v1225
        %v3018 = vmul.f32 %v1226, %v1226
        %v3019 = vmul.f32 %v1227, %v1227
        %v3020 = vmul.f32 %v1228, %v1228
        %v3021 = vmul.f32 %v1229, %v1229
        %v3022 = vmul.f32 %v1230, %v1230
        %v3023 = vmul.f32 %v1231, %v1231
        %v3024 = vmul.f32 %v1232, %v1232
        %v3025 = vmul.f32 %v1233, %v1233
        %v3026 = vmul.f32 %v1234, %v1234
        %v3027 = vmul.f32 %v1235, %v1235
        %v3028 = vmul.f32 %v1236, %v1236
        %v3029 = vmul.f32 %v1237, %v1237
        %v3030 = vmul.f32 %v1238, %v1238
        %v3031 = vmul.f32 %v1239, %v1239
        %v3032 = vmul.f32 %v1240, %v1240
        %v3033 = vmul.f32 %v1241, %v1241
        %v3034 = vmul.f32 %v1242, %v1242
        %v3035 = vmul.f32 %v1243, %v1243
        %v3036 = vmul.f32 %v1244, %v1244
        %v3037 = vmul.f32 %v1245, %v1245
        %v3038 = vmul.f32 %v1246, %v1246
        %v3039 = vmul.f32 %v1247, %v1247
        %v3040 = vmul.f32 %v1248, %v1248
        %v3041 = vmul.f32 %v1249, %v1249
        %v3042 = vmul.f32 %v1250, %v1250
        %v3043 = vmul.f32 %v1251, %v1251
        %v3044 = vmul.f32 %v1252, %v1252
        %v3045 = vmul.f32 %v1253, %v1253
        %v3046 = vmul.f32 %v1254, %v1254
        %v3047 = vmul.f32 %v1255, %v1255
        %v3048 = vmul.f32 %v1256, %v1256
        %v3049 = vmul.f32 %v1257, %v1257
        %v3050 = vmul.f32 %v1258, %v1258
        %v3051 = vmul.f32 %v1259, %v1259
        %v3052 = vmul.f32 %v1260, %v1260
        %v3053 = vmul.f32 %v1261, %v1261
        %v3054 = vmul.f32 %v1262, %v1262
        %v3055 = vmul.f32 %v1263, %v1263
        %v3056 = vmul.f32 %v1264, %v1264
        %v3057 = vmul.f32 %v1265, %v1265
        %v3058 = vmul.f32 %v1266, %v1266
        %v3059 = vmul.f32 %v1267, %v1267
        %v3060 = vmul.f32 %v1268, %v1268
        %v3061 = vmul.f32 %v1269, %v1269
        %v3062 = vmul.f32 %v1270, %v1270
        %v3063 = vmul.f32 %v1271, %v1271
        %v3064 = vmul.f32 %v1272, %v1272
        %v3065 = vmul.f32 %v1273, %v1273
        %v3066 = vmul.f32 %v1274, %v1274
        %v3067 = vmul.f32 %v1275, %v1275
        %v3068 = vmul.f32 %v1276, %v1276
        %v3069 = vmul.f32 %v1277, %v1277
        %v3070 = vmul.f32 %v1278, %v1278
        %v3071 = vmul.f32 %v1279, %v1279
        %v3072 = vmul.f32 %v1280, %v1280
        %v3073 = vmul.f32 %v1281, %v1281
        %v3074 = vmul.f32 %v1282, %v1282
        %v3075 = vmul.f32 %v1283, %v1283
        %v3076 = vmul.f32 %v1284, %v1284
        %v3077 = vmul.f32 %v1285, %v1285
        %v3078 = vmul.f32 %v1286, %v1286
        %v3079 = vmul.f32 %v1287, %v1287
        %v3080 = vmul.f32 %v1288, %v1288
        %v3081 = vmul.f32 %v1289, %v1289
        %v3082 = vmul.f32 %v1290, %v1290
        %v3083 = vmul.f32 %v1291, %v1291
        %v3084 = vmul.f32 %v1292, %v1292
        %v3085 = vmul.f32 %v1293, %v1293
        %v3086 = vmul.f32 %v1294, %v1294
        %v3087 = vmul.f32 %v1295, %v1295
        %v3088 = vmul.f32 %v1296, %v1296
        %v3089 = vmul.f32 %v1297, %v1297
        %v3090 = vmul.f32 %v1298, %v1298
        %v3091 = vmul.f32 %v1299, %v1299
        %v3092 = vmul.f32 %v1300, %v1300
        %v3093 = vmul.f32 %v1301, %v1301
        %v3094 = vmul.f32 %v1302, %v1302
        %v3095 = vmul.f32 %v1303, %v1303
        %v3096 = vmul.f32 %v1304, %v1304
        %v3097 = vmul.f32 %v1305, %v1305
        %v3098 = vmul.f32 %v1306, %v1306
        %v3099 = vsub.f32 0.0, %v2971
        %v3100 = vsub.f32 0.0, %v2972
        %v3101 = vsub.f32 0.0, %v2973
        %v3102 = vsub.f32 0.0, %v2974
        %v3103 = vsub.f32 0.0, %v2975
        %v3104 = vsub.f32 0.0, %v2976
        %v3105 = vsub.f32 0.0, %v2977
        %v3106 = vsub.f32 0.0, %v2978
        %v3107 = vsub.f32 0.0, %v2979
        %v3108 = vsub.f32 0.0, %v2980
        %v3109 = vsub.f32 0.0, %v2981
        %v3110 = vsub.f32 0.0, %v2982
        %v3111 = vsub.f32 0.0, %v2983
        %v3112 = vsub.f32 0.0, %v2984
        %v3113 = vsub.f32 0.0, %v2985
        %v3114 = vsub.f32 0.0, %v2986
        %v3115 = vsub.f32 0.0, %v2987
        %v3116 = vsub.f32 0.0, %v2988
        %v3117 = vsub.f32 0.0, %v2989
        %v3118 = vsub.f32 0.0, %v2990
        %v3119 = vsub.f32 0.0, %v2991
        %v3120 = vsub.f32 0.0, %v2992
        %v3121 = vsub.f32 0.0, %v2993
        %v3122 = vsub.f32 0.0, %v2994
        %v3123 = vsub.f32 0.0, %v2995
        %v3124 = vsub.f32 0.0, %v2996
        %v3125 = vsub.f32 0.0, %v2997
        %v3126 = vsub.f32 0.0, %v2998
        %v3127 = vsub.f32 0.0, %v2999
        %v3128 = vsub.f32 0.0, %v3000
        %v3129 = vsub.f32 0.0, %v3001
        %v3130 = vsub.f32 0.0, %v3002
        %v3131 = vsub.f32 0.0, %v3003
        %v3132 = vsub.f32 0.0, %v3004
        %v3133 = vsub.f32 0.0, %v3005
        %v3134 = vsub.f32 0.0, %v3006
        %v3135 = vsub.f32 0.0, %v3007
        %v3136 = vsub.f32 0.0, %v3008
        %v3137 = vsub.f32 0.0, %v3009
        %v3138 = vsub.f32 0.0, %v3010
        %v3139 = vsub.f32 0.0, %v3011
        %v3140 = vsub.f32 0.0, %v3012
        %v3141 = vsub.f32 0.0, %v3013
        %v3142 = vsub.f32 0.0, %v3014
        %v3143 = vsub.f32 0.0, %v3015
        %v3144 = vsub.f32 0.0, %v3016
        %v3145 = vsub.f32 0.0, %v3017
        %v3146 = vsub.f32 0.0, %v3018
        %v3147 = vsub.f32 0.0, %v3019
        %v3148 = vsub.f32 0.0, %v3020
        %v3149 = vsub.f32 0.0, %v3021
        %v3150 = vsub.f32 0.0, %v3022
        %v3151 = vsub.f32 0.0, %v3023
        %v3152 = vsub.f32 0.0, %v3024
        %v3153 = vsub.f32 0.0, %v3025
        %v3154 = vsub.f32 0.0, %v3026
        %v3155 = vsub.f32 0.0, %v3027
        %v3156 = vsub.f32 0.0, %v3028
        %v3157 = vsub.f32 0.0, %v3029
        %v3158 = vsub.f32 0.0, %v3030
        %v3159 = vsub.f32 0.0, %v3031
        %v3160 = vsub.f32 0.0, %v3032
        %v3161 = vsub.f32 0.0, %v3033
        %v3162 = vsub.f32 0.0, %v3034
        %v3163 = vsub.f32 0.0, %v3035
        %v3164 = vsub.f32 0.0, %v3036
        %v3165 = vsub.f32 0.0, %v3037
        %v3166 = vsub.f32 0.0, %v3038
        %v3167 = vsub.f32 0.0, %v3039
        %v3168 = vsub.f32 0.0, %v3040
        %v3169 = vsub.f32 0.0, %v3041
        %v3170 = vsub.f32 0.0, %v3042
        %v3171 = vsub.f32 0.0, %v3043
        %v3172 = vsub.f32 0.0, %v3044
        %v3173 = vsub.f32 0.0, %v3045
        %v3174 = vsub.f32 0.0, %v3046
        %v3175 = vsub.f32 0.0, %v3047
        %v3176 = vsub.f32 0.0, %v3048
        %v3177 = vsub.f32 0.0, %v3049
        %v3178 = vsub.f32 0.0, %v3050
        %v3179 = vsub.f32 0.0, %v3051
        %v3180 = vsub.f32 0.0, %v3052
        %v3181 = vsub.f32 0.0, %v3053
        %v3182 = vsub.f32 0.0, %v3054
        %v3183 = vsub.f32 0.0, %v3055
        %v3184 = vsub.f32 0.0, %v3056
        %v3185 = vsub.f32 0.0, %v3057
        %v3186 = vsub.f32 0.0, %v3058
        %v3187 = vsub.f32 0.0, %v3059
        %v3188 = vsub.f32 0.0, %v3060
        %v3189 = vsub.f32 0.0, %v3061
        %v3190 = vsub.f32 0.0, %v3062
        %v3191 = vsub.f32 0.0, %v3063
        %v3192 = vsub.f32 0.0, %v3064
        %v3193 = vsub.f32 0.0, %v3065
        %v3194 = vsub.f32 0.0, %v3066
        %v3195 = vsub.f32 0.0, %v3067
        %v3196 = vsub.f32 0.0, %v3068
        %v3197 = vsub.f32 0.0, %v3069
        %v3198 = vsub.f32 0.0, %v3070
        %v3199 = vsub.f32 0.0, %v3071
        %v3200 = vsub.f32 0.0, %v3072
        %v3201 = vsub.f32 0.0, %v3073
        %v3202 = vsub.f32 0.0, %v3074
        %v3203 = vsub.f32 0.0, %v3075
        %v3204 = vsub.f32 0.0, %v3076
        %v3205 = vsub.f32 0.0, %v3077
        %v3206 = vsub.f32 0.0, %v3078
        %v3207 = vsub.f32 0.0, %v3079
        %v3208 = vsub.f32 0.0, %v3080
        %v3209 = vsub.f32 0.0, %v3081
        %v3210 = vsub.f32 0.0, %v3082
        %v3211 = vsub.f32 0.0, %v3083
        %v3212 = vsub.f32 0.0, %v3084
        %v3213 = vsub.f32 0.0, %v3085
        %v3214 = vsub.f32 0.0, %v3086
        %v3215 = vsub.f32 0.0, %v3087
        %v3216 = vsub.f32 0.0, %v3088
        %v3217 = vsub.f32 0.0, %v3089
        %v3218 = vsub.f32 0.0, %v3090
        %v3219 = vsub.f32 0.0, %v3091
        %v3220 = vsub.f32 0.0, %v3092
        %v3221 = vsub.f32 0.0, %v3093
        %v3222 = vsub.f32 0.0, %v3094
        %v3223 = vsub.f32 0.0, %v3095
        %v3224 = vsub.f32 0.0, %v3096
        %v3225 = vsub.f32 0.0, %v3097
        %v3226 = vsub.f32 0.0, %v3098
        %v3227 = vmul.f32 %v3099, 1.442695
        %v3228 = vpow.pop %v3227
        %v3229 = vmul.f32 %v3100, 1.442695
        %v3230 = vpow.pop %v3229
        %v3231 = vmul.f32 %v3101, 1.442695
        %v3232 = vpow.pop %v3231
        %v3233 = vmul.f32 %v3102, 1.442695
        %v3234 = vpow.pop %v3233
        %v3235 = vmul.f32 %v3103, 1.442695
        %v3236 = vpow.pop %v3235
        %v3237 = vmul.f32 %v3104, 1.442695
        %v3238 = vpow.pop %v3237
        %v3239 = vmul.f32 %v3105, 1.442695
        %v3240 = vpow.pop %v3239
        %v3241 = vmul.f32 %v3106, 1.442695
        %v3242 = vpow.pop %v3241
        %v3243 = vmul.f32 %v3107, 1.442695
        %v3244 = vpow.pop %v3243
        %v3245 = vmul.f32 %v3108, 1.442695
        %v3246 = vpow.pop %v3245
        %v3247 = vmul.f32 %v3109, 1.442695
        %v3248 = vpow.pop %v3247
        %v3249 = vmul.f32 %v3110, 1.442695
        %v3250 = vpow.pop %v3249
        %v3251 = vmul.f32 %v3111, 1.442695
        %v3252 = vpow.pop %v3251
        %v3253 = vmul.f32 %v3112, 1.442695
        %v3254 = vpow.pop %v3253
        %v3255 = vmul.f32 %v3113, 1.442695
        %v3256 = vpow.pop %v3255
        %v3257 = vmul.f32 %v3114, 1.442695
        %v3258 = vpow.pop %v3257
        %v3259 = vmul.f32 %v3115, 1.442695
        %v3260 = vpow.pop %v3259
        %v3261 = vmul.f32 %v3116, 1.442695
        %v3262 = vpow.pop %v3261
        %v3263 = vmul.f32 %v3117, 1.442695
        %v3264 = vpow.pop %v3263
        %v3265 = vmul.f32 %v3118, 1.442695
        %v3266 = vpow.pop %v3265
        %v3267 = vmul.f32 %v3119, 1.442695
        %v3268 = vpow.pop %v3267
        %v3269 = vmul.f32 %v3120, 1.442695
        %v3270 = vpow.pop %v3269
        %v3271 = vmul.f32 %v3121, 1.442695
        %v3272 = vpow.pop %v3271
        %v3273 = vmul.f32 %v3122, 1.442695
        %v3274 = vpow.pop %v3273
        %v3275 = vmul.f32 %v3123, 1.442695
        %v3276 = vpow.pop %v3275
        %v3277 = vmul.f32 %v3124, 1.442695
        %v3278 = vpow.pop %v3277
        %v3279 = vmul.f32 %v3125, 1.442695
        %v3280 = vpow.pop %v3279
        %v3281 = vmul.f32 %v3126, 1.442695
        %v3282 = vpow.pop %v3281
        %v3283 = vmul.f32 %v3127, 1.442695
        %v3284 = vpow.pop %v3283
        %v3285 = vmul.f32 %v3128, 1.442695
        %v3286 = vpow.pop %v3285
        %v3287 = vmul.f32 %v3129, 1.442695
        %v3288 = vpow.pop %v3287
        %v3289 = vmul.f32 %v3130, 1.442695
        %v3290 = vpow.pop %v3289
        %v3291 = vmul.f32 %v3131, 1.442695
        %v3292 = vpow.pop %v3291
        %v3293 = vmul.f32 %v3132, 1.442695
        %v3294 = vpow.pop %v3293
        %v3295 = vmul.f32 %v3133, 1.442695
        %v3296 = vpow.pop %v3295
        %v3297 = vmul.f32 %v3134, 1.442695
        %v3298 = vpow.pop %v3297
        %v3299 = vmul.f32 %v3135, 1.442695
        %v3300 = vpow.pop %v3299
        %v3301 = vmul.f32 %v3136, 1.442695
        %v3302 = vpow.pop %v3301
        %v3303 = vmul.f32 %v3137, 1.442695
        %v3304 = vpow.pop %v3303
        %v3305 = vmul.f32 %v3138, 1.442695
        %v3306 = vpow.pop %v3305
        %v3307 = vmul.f32 %v3139, 1.442695
        %v3308 = vpow.pop %v3307
        %v3309 = vmul.f32 %v3140, 1.442695
        %v3310 = vpow.pop %v3309
        %v3311 = vmul.f32 %v3141, 1.442695
        %v3312 = vpow.pop %v3311
        %v3313 = vmul.f32 %v3142, 1.442695
        %v3314 = vpow.pop %v3313
        %v3315 = vmul.f32 %v3143, 1.442695
        %v3316 = vpow.pop %v3315
        %v3317 = vmul.f32 %v3144, 1.442695
        %v3318 = vpow.pop %v3317
        %v3319 = vmul.f32 %v3145, 1.442695
        %v3320 = vpow.pop %v3319
        %v3321 = vmul.f32 %v3146, 1.442695
        %v3322 = vpow.pop %v3321
        %v3323 = vmul.f32 %v3147, 1.442695
        %v3324 = vpow.pop %v3323
        %v3325 = vmul.f32 %v3148, 1.442695
        %v3326 = vpow.pop %v3325
        %v3327 = vmul.f32 %v3149, 1.442695
        %v3328 = vpow.pop %v3327
        %v3329 = vmul.f32 %v3150, 1.442695
        %v3330 = vpow.pop %v3329
        %v3331 = vmul.f32 %v3151, 1.442695
        %v3332 = vpow.pop %v3331
        %v3333 = vmul.f32 %v3152, 1.442695
        %v3334 = vpow.pop %v3333
        %v3335 = vmul.f32 %v3153, 1.442695
        %v3336 = vpow.pop %v3335
        %v3337 = vmul.f32 %v3154, 1.442695
        %v3338 = vpow.pop %v3337
        %v3339 = vmul.f32 %v3155, 1.442695
        %v3340 = vpow.pop %v3339
        %v3341 = vmul.f32 %v3156, 1.442695
        %v3342 = vpow.pop %v3341
        %v3343 = vmul.f32 %v3157, 1.442695
        %v3344 = vpow.pop %v3343
        %v3345 = vmul.f32 %v3158, 1.442695
        %v3346 = vpow.pop %v3345
        %v3347 = vmul.f32 %v3159, 1.442695
        %v3348 = vpow.pop %v3347
        %v3349 = vmul.f32 %v3160, 1.442695
        %v3350 = vpow.pop %v3349
        %v3351 = vmul.f32 %v3161, 1.442695
        %v3352 = vpow.pop %v3351
        %v3353 = vmul.f32 %v3162, 1.442695
        %v3354 = vpow.pop %v3353
        %v3355 = vmul.f32 %v3163, 1.442695
        %v3356 = vpow.pop %v3355
        %v3357 = vmul.f32 %v3164, 1.442695
        %v3358 = vpow.pop %v3357
        %v3359 = vmul.f32 %v3165, 1.442695
        %v3360 = vpow.pop %v3359
        %v3361 = vmul.f32 %v3166, 1.442695
        %v3362 = vpow.pop %v3361
        %v3363 = vmul.f32 %v3167, 1.442695
        %v3364 = vpow.pop %v3363
        %v3365 = vmul.f32 %v3168, 1.442695
        %v3366 = vpow.pop %v3365
        %v3367 = vmul.f32 %v3169, 1.442695
        %v3368 = vpow.pop %v3367
        %v3369 = vmul.f32 %v3170, 1.442695
        %v3370 = vpow.pop %v3369
        %v3371 = vmul.f32 %v3171, 1.442695
        %v3372 = vpow.pop %v3371
        %v3373 = vmul.f32 %v3172, 1.442695
        %v3374 = vpow.pop %v3373
        %v3375 = vmul.f32 %v3173, 1.442695
        %v3376 = vpow.pop %v3375
        %v3377 = vmul.f32 %v3174, 1.442695
        %v3378 = vpow.pop %v3377
        %v3379 = vmul.f32 %v3175, 1.442695
        %v3380 = vpow.pop %v3379
        %v3381 = vmul.f32 %v3176, 1.442695
        %v3382 = vpow.pop %v3381
        %v3383 = vmul.f32 %v3177, 1.442695
        %v3384 = vpow.pop %v3383
        %v3385 = vmul.f32 %v3178, 1.442695
        %v3386 = vpow.pop %v3385
        %v3387 = vmul.f32 %v3179, 1.442695
        %v3388 = vpow.pop %v3387
        %v3389 = vmul.f32 %v3180, 1.442695
        %v3390 = vpow.pop %v3389
        %v3391 = vmul.f32 %v3181, 1.442695
        %v3392 = vpow.pop %v3391
        %v3393 = vmul.f32 %v3182, 1.442695
        %v3394 = vpow.pop %v3393
        %v3395 = vmul.f32 %v3183, 1.442695
        %v3396 = vpow.pop %v3395
        %v3397 = vmul.f32 %v3184, 1.442695
        %v3398 = vpow.pop %v3397
        %v3399 = vmul.f32 %v3185, 1.442695
        %v3400 = vpow.pop %v3399
        %v3401 = vmul.f32 %v3186, 1.442695
        %v3402 = vpow.pop %v3401
        %v3403 = vmul.f32 %v3187, 1.442695
        %v3404 = vpow.pop %v3403
        %v3405 = vmul.f32 %v3188, 1.442695
        %v3406 = vpow.pop %v3405
        %v3407 = vmul.f32 %v3189, 1.442695
        %v3408 = vpow.pop %v3407
        %v3409 = vmul.f32 %v3190, 1.442695
        %v3410 = vpow.pop %v3409
        %v3411 = vmul.f32 %v3191, 1.442695
        %v3412 = vpow.pop %v3411
        %v3413 = vmul.f32 %v3192, 1.442695
        %v3414 = vpow.pop %v3413
        %v3415 = vmul.f32 %v3193, 1.442695
        %v3416 = vpow.pop %v3415
        %v3417 = vmul.f32 %v3194, 1.442695
        %v3418 = vpow.pop %v3417
        %v3419 = vmul.f32 %v3195, 1.442695
        %v3420 = vpow.pop %v3419
        %v3421 = vmul.f32 %v3196, 1.442695
        %v3422 = vpow.pop %v3421
        %v3423 = vmul.f32 %v3197, 1.442695
        %v3424 = vpow.pop %v3423
        %v3425 = vmul.f32 %v3198, 1.442695
        %v3426 = vpow.pop %v3425
        %v3427 = vmul.f32 %v3199, 1.442695
        %v3428 = vpow.pop %v3427
        %v3429 = vmul.f32 %v3200, 1.442695
        %v3430 = vpow.pop %v3429
        %v3431 = vmul.f32 %v3201, 1.442695
        %v3432 = vpow.pop %v3431
        %v3433 = vmul.f32 %v3202, 1.442695
        %v3434 = vpow.pop %v3433
        %v3435 = vmul.f32 %v3203, 1.442695
        %v3436 = vpow.pop %v3435
        %v3437 = vmul.f32 %v3204, 1.442695
        %v3438 = vpow.pop %v3437
        %v3439 = vmul.f32 %v3205, 1.442695
        %v3440 = vpow.pop %v3439
        %v3441 = vmul.f32 %v3206, 1.442695
        %v3442 = vpow.pop %v3441
        %v3443 = vmul.f32 %v3207, 1.442695
        %v3444 = vpow.pop %v3443
        %v3445 = vmul.f32 %v3208, 1.442695
        %v3446 = vpow.pop %v3445
        %v3447 = vmul.f32 %v3209, 1.442695
        %v3448 = vpow.pop %v3447
        %v3449 = vmul.f32 %v3210, 1.442695
        %v3450 = vpow.pop %v3449
        %v3451 = vmul.f32 %v3211, 1.442695
        %v3452 = vpow.pop %v3451
        %v3453 = vmul.f32 %v3212, 1.442695
        %v3454 = vpow.pop %v3453
        %v3455 = vmul.f32 %v3213, 1.442695
        %v3456 = vpow.pop %v3455
        %v3457 = vmul.f32 %v3214, 1.442695
        %v3458 = vpow.pop %v3457
        %v3459 = vmul.f32 %v3215, 1.442695
        %v3460 = vpow.pop %v3459
        %v3461 = vmul.f32 %v3216, 1.442695
        %v3462 = vpow.pop %v3461
        %v3463 = vmul.f32 %v3217, 1.442695
        %v3464 = vpow.pop %v3463
        %v3465 = vmul.f32 %v3218, 1.442695
        %v3466 = vpow.pop %v3465
        %v3467 = vmul.f32 %v3219, 1.442695
        %v3468 = vpow.pop %v3467
        %v3469 = vmul.f32 %v3220, 1.442695
        %v3470 = vpow.pop %v3469
        %v3471 = vmul.f32 %v3221, 1.442695
        %v3472 = vpow.pop %v3471
        %v3473 = vmul.f32 %v3222, 1.442695
        %v3474 = vpow.pop %v3473
        %v3475 = vmul.f32 %v3223, 1.442695
        %v3476 = vpow.pop %v3475
        %v3477 = vmul.f32 %v3224, 1.442695
        %v3478 = vpow.pop %v3477
        %v3479 = vmul.f32 %v3225, 1.442695
        %v3480 = vpow.pop %v3479
        %v3481 = vmul.f32 %v3226, 1.442695
        %v3482 = vpow.pop %v3481
        %v3483 = vmul.f32 %v2843, %v3228
        %v3484 = vmul.f32 %v2844, %v3230
        %v3485 = vmul.f32 %v2845, %v3232
        %v3486 = vmul.f32 %v2846, %v3234
        %v3487 = vmul.f32 %v2847, %v3236
        %v3488 = vmul.f32 %v2848, %v3238
        %v3489 = vmul.f32 %v2849, %v3240
        %v3490 = vmul.f32 %v2850, %v3242
        %v3491 = vmul.f32 %v2851, %v3244
        %v3492 = vmul.f32 %v2852, %v3246
        %v3493 = vmul.f32 %v2853, %v3248
        %v3494 = vmul.f32 %v2854, %v3250
        %v3495 = vmul.f32 %v2855, %v3252
        %v3496 = vmul.f32 %v2856, %v3254
        %v3497 = vmul.f32 %v2857, %v3256
        %v3498 = vmul.f32 %v2858, %v3258
        %v3499 = vmul.f32 %v2859, %v3260
        %v3500 = vmul.f32 %v2860, %v3262
        %v3501 = vmul.f32 %v2861, %v3264
        %v3502 = vmul.f32 %v2862, %v3266
        %v3503 = vmul.f32 %v2863, %v3268
        %v3504 = vmul.f32 %v2864, %v3270
        %v3505 = vmul.f32 %v2865, %v3272
        %v3506 = vmul.f32 %v2866, %v3274
        %v3507 = vmul.f32 %v2867, %v3276
        %v3508 = vmul.f32 %v2868, %v3278
        %v3509 = vmul.f32 %v2869, %v3280
        %v3510 = vmul.f32 %v2870, %v3282
        %v3511 = vmul.f32 %v2871, %v3284
        %v3512 = vmul.f32 %v2872, %v3286
        %v3513 = vmul.f32 %v2873, %v3288
        %v3514 = vmul.f32 %v2874, %v3290
        %v3515 = vmul.f32 %v2875, %v3292
        %v3516 = vmul.f32 %v2876, %v3294
        %v3517 = vmul.f32 %v2877, %v3296
        %v3518 = vmul.f32 %v2878, %v3298
        %v3519 = vmul.f32 %v2879, %v3300
        %v3520 = vmul.f32 %v2880, %v3302
        %v3521 = vmul.f32 %v2881, %v3304
        %v3522 = vmul.f32 %v2882, %v3306
        %v3523 = vmul.f32 %v2883, %v3308
        %v3524 = vmul.f32 %v2884, %v3310
        %v3525 = vmul.f32 %v2885, %v3312
        %v3526 = vmul.f32 %v2886, %v3314
        %v3527 = vmul.f32 %v2887, %v3316
        %v3528 = vmul.f32 %v2888, %v3318
        %v3529 = vmul.f32 %v2889, %v3320
        %v3530 = vmul.f32 %v2890, %v3322
        %v3531 = vmul.f32 %v2891, %v3324
        %v3532 = vmul.f32 %v2892, %v3326
        %v3533 = vmul.f32 %v2893, %v3328
        %v3534 = vmul.f32 %v2894, %v3330
        %v3535 = vmul.f32 %v2895, %v3332
        %v3536 = vmul.f32 %v2896, %v3334
        %v3537 = vmul.f32 %v2897, %v3336
        %v3538 = vmul.f32 %v2898, %v3338
        %v3539 = vmul.f32 %v2899, %v3340
        %v3540 = vmul.f32 %v2900, %v3342
        %v3541 = vmul.f32 %v2901, %v3344
        %v3542 = vmul.f32 %v2902, %v3346
        %v3543 = vmul.f32 %v2903, %v3348
        %v3544 = vmul.f32 %v2904, %v3350
        %v3545 = vmul.f32 %v2905, %v3352
        %v3546 = vmul.f32 %v2906, %v3354
        %v3547 = vmul.f32 %v2907, %v3356
        %v3548 = vmul.f32 %v2908, %v3358
        %v3549 = vmul.f32 %v2909, %v3360
        %v3550 = vmul.f32 %v2910, %v3362
        %v3551 = vmul.f32 %v2911, %v3364
        %v3552 = vmul.f32 %v2912, %v3366
        %v3553 = vmul.f32 %v2913, %v3368
        %v3554 = vmul.f32 %v2914, %v3370
        %v3555 = vmul.f32 %v2915, %v3372
        %v3556 = vmul.f32 %v2916, %v3374
        %v3557 = vmul.f32 %v2917, %v3376
        %v3558 = vmul.f32 %v2918, %v3378
        %v3559 = vmul.f32 %v2919, %v3380
        %v3560 = vmul.f32 %v2920, %v3382
        %v3561 = vmul.f32 %v2921, %v3384
        %v3562 = vmul.f32 %v2922, %v3386
        %v3563 = vmul.f32 %v2923, %v3388
        %v3564 = vmul.f32 %v2924, %v3390
        %v3565 = vmul.f32 %v2925, %v3392
        %v3566 = vmul.f32 %v2926, %v3394
        %v3567 = vmul.f32 %v2927, %v3396
        %v3568 = vmul.f32 %v2928, %v3398
        %v3569 = vmul.f32 %v2929, %v3400
        %v3570 = vmul.f32 %v2930, %v3402
        %v3571 = vmul.f32 %v2931, %v3404
        %v3572 = vmul.f32 %v2932, %v3406
        %v3573 = vmul.f32 %v2933, %v3408
        %v3574 = vmul.f32 %v2934, %v3410
        %v3575 = vmul.f32 %v2935, %v3412
        %v3576 = vmul.f32 %v2936, %v3414
        %v3577 = vmul.f32 %v2937, %v3416
        %v3578 = vmul.f32 %v2938, %v3418
        %v3579 = vmul.f32 %v2939, %v3420
        %v3580 = vmul.f32 %v2940, %v3422
        %v3581 = vmul.f32 %v2941, %v3424
        %v3582 = vmul.f32 %v2942, %v3426
        %v3583 = vmul.f32 %v2943, %v3428
        %v3584 = vmul.f32 %v2944, %v3430
        %v3585 = vmul.f32 %v2945, %v3432
        %v3586 = vmul.f32 %v2946, %v3434
        %v3587 = vmul.f32 %v2947, %v3436
        %v3588 = vmul.f32 %v2948, %v3438
        %v3589 = vmul.f32 %v2949, %v3440
        %v3590 = vmul.f32 %v2950, %v3442
        %v3591 = vmul.f32 %v2951, %v3444
        %v3592 = vmul.f32 %v2952, %v3446
        %v3593 = vmul.f32 %v2953, %v3448
        %v3594 = vmul.f32 %v2954, %v3450
        %v3595 = vmul.f32 %v2955, %v3452
        %v3596 = vmul.f32 %v2956, %v3454
        %v3597 = vmul.f32 %v2957, %v3456
        %v3598 = vmul.f32 %v2958, %v3458
        %v3599 = vmul.f32 %v2959, %v3460
        %v3600 = vmul.f32 %v2960, %v3462
        %v3601 = vmul.f32 %v2961, %v3464
        %v3602 = vmul.f32 %v2962, %v3466
        %v3603 = vmul.f32 %v2963, %v3468
        %v3604 = vmul.f32 %v2964, %v3470
        %v3605 = vmul.f32 %v2965, %v3472
        %v3606 = vmul.f32 %v2966, %v3474
        %v3607 = vmul.f32 %v2967, %v3476
        %v3608 = vmul.f32 %v2968, %v3478
        %v3609 = vmul.f32 %v2969, %v3480
        %v3610 = vmul.f32 %v2970, %v3482
        %v3611 = vsub.f32 1.0, %v3483
        %v3612 = vsub.f32 1.0, %v3484
        %v3613 = vsub.f32 1.0, %v3485
        %v3614 = vsub.f32 1.0, %v3486
        %v3615 = vsub.f32 1.0, %v3487
        %v3616 = vsub.f32 1.0, %v3488
        %v3617 = vsub.f32 1.0, %v3489
        %v3618 = vsub.f32 1.0, %v3490
        %v3619 = vsub.f32 1.0, %v3491
        %v3620 = vsub.f32 1.0, %v3492
        %v3621 = vsub.f32 1.0, %v3493
        %v3622 = vsub.f32 1.0, %v3494
        %v3623 = vsub.f32 1.0, %v3495
        %v3624 = vsub.f32 1.0, %v3496
        %v3625 = vsub.f32 1.0, %v3497
        %v3626 = vsub.f32 1.0, %v3498
        %v3627 = vsub.f32 1.0, %v3499
        %v3628 = vsub.f32 1.0, %v3500
        %v3629 = vsub.f32 1.0, %v3501
        %v3630 = vsub.f32 1.0, %v3502
        %v3631 = vsub.f32 1.0, %v3503
        %v3632 = vsub.f32 1.0, %v3504
        %v3633 = vsub.f32 1.0, %v3505
        %v3634 = vsub.f32 1.0, %v3506
        %v3635 = vsub.f32 1.0, %v3507
        %v3636 = vsub.f32 1.0, %v3508
        %v3637 = vsub.f32 1.0, %v3509
        %v3638 = vsub.f32 1.0, %v3510
        %v3639 = vsub.f32 1.0, %v3511
        %v3640 = vsub.f32 1.0, %v3512
        %v3641 = vsub.f32 1.0, %v3513
        %v3642 = vsub.f32 1.0, %v3514
        %v3643 = vsub.f32 1.0, %v3515
        %v3644 = vsub.f32 1.0, %v3516
        %v3645 = vsub.f32 1.0, %v3517
        %v3646 = vsub.f32 1.0, %v3518
        %v3647 = vsub.f32 1.0, %v3519
        %v3648 = vsub.f32 1.0, %v3520
        %v3649 = vsub.f32 1.0, %v3521
        %v3650 = vsub.f32 1.0, %v3522
        %v3651 = vsub.f32 1.0, %v3523
        %v3652 = vsub.f32 1.0, %v3524
        %v3653 = vsub.f32 1.0, %v3525
        %v3654 = vsub.f32 1.0, %v3526
        %v3655 = vsub.f32 1.0, %v3527
        %v3656 = vsub.f32 1.0, %v3528
        %v3657 = vsub.f32 1.0, %v3529
        %v3658 = vsub.f32 1.0, %v3530
        %v3659 = vsub.f32 1.0, %v3531
        %v3660 = vsub.f32 1.0, %v3532
        %v3661 = vsub.f32 1.0, %v3533
        %v3662 = vsub.f32 1.0, %v3534
        %v3663 = vsub.f32 1.0, %v3535
        %v3664 = vsub.f32 1.0, %v3536
        %v3665 = vsub.f32 1.0, %v3537
        %v3666 = vsub.f32 1.0, %v3538
        %v3667 = vsub.f32 1.0, %v3539
        %v3668 = vsub.f32 1.0, %v3540
        %v3669 = vsub.f32 1.0, %v3541
        %v3670 = vsub.f32 1.0, %v3542
        %v3671 = vsub.f32 1.0, %v3543
        %v3672 = vsub.f32 1.0, %v3544
        %v3673 = vsub.f32 1.0, %v3545
        %v3674 = vsub.f32 1.0, %v3546
        %v3675 = vsub.f32 1.0, %v3547
        %v3676 = vsub.f32 1.0, %v3548
        %v3677 = vsub.f32 1.0, %v3549
        %v3678 = vsub.f32 1.0, %v3550
        %v3679 = vsub.f32 1.0, %v3551
        %v3680 = vsub.f32 1.0, %v3552
        %v3681 = vsub.f32 1.0, %v3553
        %v3682 = vsub.f32 1.0, %v3554
        %v3683 = vsub.f32 1.0, %v3555
        %v3684 = vsub.f32 1.0, %v3556
        %v3685 = vsub.f32 1.0, %v3557
        %v3686 = vsub.f32 1.0, %v3558
        %v3687 = vsub.f32 1.0, %v3559
        %v3688 = vsub.f32 1.0, %v3560
        %v3689 = vsub.f32 1.0, %v3561
        %v3690 = vsub.f32 1.0, %v3562
        %v3691 = vsub.f32 1.0, %v3563
        %v3692 = vsub.f32 1.0, %v3564
        %v3693 = vsub.f32 1.0, %v3565
        %v3694 = vsub.f32 1.0, %v3566
        %v3695 = vsub.f32 1.0, %v3567
        %v3696 = vsub.f32 1.0, %v3568
        %v3697 = vsub.f32 1.0, %v3569
        %v3698 = vsub.f32 1.0, %v3570
        %v3699 = vsub.f32 1.0, %v3571
        %v3700 = vsub.f32 1.0, %v3572
        %v3701 = vsub.f32 1.0, %v3573
        %v3702 = vsub.f32 1.0, %v3574
        %v3703 = vsub.f32 1.0, %v3575
        %v3704 = vsub.f32 1.0, %v3576
        %v3705 = vsub.f32 1.0, %v3577
        %v3706 = vsub.f32 1.0, %v3578
        %v3707 = vsub.f32 1.0, %v3579
        %v3708 = vsub.f32 1.0, %v3580
        %v3709 = vsub.f32 1.0, %v3581
        %v3710 = vsub.f32 1.0, %v3582
        %v3711 = vsub.f32 1.0, %v3583
        %v3712 = vsub.f32 1.0, %v3584
        %v3713 = vsub.f32 1.0, %v3585
        %v3714 = vsub.f32 1.0, %v3586
        %v3715 = vsub.f32 1.0, %v3587
        %v3716 = vsub.f32 1.0, %v3588
        %v3717 = vsub.f32 1.0, %v3589
        %v3718 = vsub.f32 1.0, %v3590
        %v3719 = vsub.f32 1.0, %v3591
        %v3720 = vsub.f32 1.0, %v3592
        %v3721 = vsub.f32 1.0, %v3593
        %v3722 = vsub.f32 1.0, %v3594
        %v3723 = vsub.f32 1.0, %v3595
        %v3724 = vsub.f32 1.0, %v3596
        %v3725 = vsub.f32 1.0, %v3597
        %v3726 = vsub.f32 1.0, %v3598
        %v3727 = vsub.f32 1.0, %v3599
        %v3728 = vsub.f32 1.0, %v3600
        %v3729 = vsub.f32 1.0, %v3601
        %v3730 = vsub.f32 1.0, %v3602
        %v3731 = vsub.f32 1.0, %v3603
        %v3732 = vsub.f32 1.0, %v3604
        %v3733 = vsub.f32 1.0, %v3605
        %v3734 = vsub.f32 1.0, %v3606
        %v3735 = vsub.f32 1.0, %v3607
        %v3736 = vsub.f32 1.0, %v3608
        %v3737 = vsub.f32 1.0, %v3609
        %v3738 = vsub.f32 1.0, %v3610
        %vm3739 = vcmp.lt.f32.partialorder %v1051, 0.0
        %vm3740 = vcmp.lt.f32.partialorder %v1052, 0.0
        %vm3741 = vcmp.lt.f32.partialorder %v1053, 0.0
        %vm3742 = vcmp.lt.f32.partialorder %v1054, 0.0
        %vm3743 = vcmp.lt.f32.partialorder %v1055, 0.0
        %vm3744 = vcmp.lt.f32.partialorder %v1056, 0.0
        %vm3745 = vcmp.lt.f32.partialorder %v1057, 0.0
        %vm3746 = vcmp.lt.f32.partialorder %v1058, 0.0
        %vm3747 = vcmp.lt.f32.partialorder %v1059, 0.0
        %vm3748 = vcmp.lt.f32.partialorder %v1060, 0.0
        %vm3749 = vcmp.lt.f32.partialorder %v1061, 0.0
        %vm3750 = vcmp.lt.f32.partialorder %v1062, 0.0
        %vm3751 = vcmp.lt.f32.partialorder %v1063, 0.0
        %vm3752 = vcmp.lt.f32.partialorder %v1064, 0.0
        %vm3753 = vcmp.lt.f32.partialorder %v1065, 0.0
        %vm3754 = vcmp.lt.f32.partialorder %v1066, 0.0
        %vm3755 = vcmp.lt.f32.partialorder %v1067, 0.0
        %vm3756 = vcmp.lt.f32.partialorder %v1068, 0.0
        %vm3757 = vcmp.lt.f32.partialorder %v1069, 0.0
        %vm3758 = vcmp.lt.f32.partialorder %v1070, 0.0
        %vm3759 = vcmp.lt.f32.partialorder %v1071, 0.0
        %vm3760 = vcmp.lt.f32.partialorder %v1072, 0.0
        %vm3761 = vcmp.lt.f32.partialorder %v1073, 0.0
        %vm3762 = vcmp.lt.f32.partialorder %v1074, 0.0
        %vm3763 = vcmp.lt.f32.partialorder %v1075, 0.0
        %vm3764 = vcmp.lt.f32.partialorder %v1076, 0.0
        %vm3765 = vcmp.lt.f32.partialorder %v1077, 0.0
        %vm3766 = vcmp.lt.f32.partialorder %v1078, 0.0
        %vm3767 = vcmp.lt.f32.partialorder %v1079, 0.0
        %vm3768 = vcmp.lt.f32.partialorder %v1080, 0.0
        %vm3769 = vcmp.lt.f32.partialorder %v1081, 0.0
        %vm3770 = vcmp.lt.f32.partialorder %v1082, 0.0
        %vm3771 = vcmp.lt.f32.partialorder %v1083, 0.0
        %vm3772 = vcmp.lt.f32.partialorder %v1084, 0.0
        %vm3773 = vcmp.lt.f32.partialorder %v1085, 0.0
        %vm3774 = vcmp.lt.f32.partialorder %v1086, 0.0
        %vm3775 = vcmp.lt.f32.partialorder %v1087, 0.0
        %vm3776 = vcmp.lt.f32.partialorder %v1088, 0.0
        %vm3777 = vcmp.lt.f32.partialorder %v1089, 0.0
        %vm3778 = vcmp.lt.f32.partialorder %v1090, 0.0
        %vm3779 = vcmp.lt.f32.partialorder %v1091, 0.0
        %vm3780 = vcmp.lt.f32.partialorder %v1092, 0.0
        %vm3781 = vcmp.lt.f32.partialorder %v1093, 0.0
        %vm3782 = vcmp.lt.f32.partialorder %v1094, 0.0
        %vm3783 = vcmp.lt.f32.partialorder %v1095, 0.0
        %vm3784 = vcmp.lt.f32.partialorder %v1096, 0.0
        %vm3785 = vcmp.lt.f32.partialorder %v1097, 0.0
        %vm3786 = vcmp.lt.f32.partialorder %v1098, 0.0
        %vm3787 = vcmp.lt.f32.partialorder %v1099, 0.0
        %vm3788 = vcmp.lt.f32.partialorder %v1100, 0.0
        %vm3789 = vcmp.lt.f32.partialorder %v1101, 0.0
        %vm3790 = vcmp.lt.f32.partialorder %v1102, 0.0
        %vm3791 = vcmp.lt.f32.partialorder %v1103, 0.0
        %vm3792 = vcmp.lt.f32.partialorder %v1104, 0.0
        %vm3793 = vcmp.lt.f32.partialorder %v1105, 0.0
        %vm3794 = vcmp.lt.f32.partialorder %v1106, 0.0
        %vm3795 = vcmp.lt.f32.partialorder %v1107, 0.0
        %vm3796 = vcmp.lt.f32.partialorder %v1108, 0.0
        %vm3797 = vcmp.lt.f32.partialorder %v1109, 0.0
        %vm3798 = vcmp.lt.f32.partialorder %v1110, 0.0
        %vm3799 = vcmp.lt.f32.partialorder %v1111, 0.0
        %vm3800 = vcmp.lt.f32.partialorder %v1112, 0.0
        %vm3801 = vcmp.lt.f32.partialorder %v1113, 0.0
        %vm3802 = vcmp.lt.f32.partialorder %v1114, 0.0
        %vm3803 = vcmp.lt.f32.partialorder %v1115, 0.0
        %vm3804 = vcmp.lt.f32.partialorder %v1116, 0.0
        %vm3805 = vcmp.lt.f32.partialorder %v1117, 0.0
        %vm3806 = vcmp.lt.f32.partialorder %v1118, 0.0
        %vm3807 = vcmp.lt.f32.partialorder %v1119, 0.0
        %vm3808 = vcmp.lt.f32.partialorder %v1120, 0.0
        %vm3809 = vcmp.lt.f32.partialorder %v1121, 0.0
        %vm3810 = vcmp.lt.f32.partialorder %v1122, 0.0
        %vm3811 = vcmp.lt.f32.partialorder %v1123, 0.0
        %vm3812 = vcmp.lt.f32.partialorder %v1124, 0.0
        %vm3813 = vcmp.lt.f32.partialorder %v1125, 0.0
        %vm3814 = vcmp.lt.f32.partialorder %v1126, 0.0
        %vm3815 = vcmp.lt.f32.partialorder %v1127, 0.0
        %vm3816 = vcmp.lt.f32.partialorder %v1128, 0.0
        %vm3817 = vcmp.lt.f32.partialorder %v1129, 0.0
        %vm3818 = vcmp.lt.f32.partialorder %v1130, 0.0
        %vm3819 = vcmp.lt.f32.partialorder %v1131, 0.0
        %vm3820 = vcmp.lt.f32.partialorder %v1132, 0.0
        %vm3821 = vcmp.lt.f32.partialorder %v1133, 0.0
        %vm3822 = vcmp.lt.f32.partialorder %v1134, 0.0
        %vm3823 = vcmp.lt.f32.partialorder %v1135, 0.0
        %vm3824 = vcmp.lt.f32.partialorder %v1136, 0.0
        %vm3825 = vcmp.lt.f32.partialorder %v1137, 0.0
        %vm3826 = vcmp.lt.f32.partialorder %v1138, 0.0
        %vm3827 = vcmp.lt.f32.partialorder %v1139, 0.0
        %vm3828 = vcmp.lt.f32.partialorder %v1140, 0.0
        %vm3829 = vcmp.lt.f32.partialorder %v1141, 0.0
        %vm3830 = vcmp.lt.f32.partialorder %v1142, 0.0
        %vm3831 = vcmp.lt.f32.partialorder %v1143, 0.0
        %vm3832 = vcmp.lt.f32.partialorder %v1144, 0.0
        %vm3833 = vcmp.lt.f32.partialorder %v1145, 0.0
        %vm3834 = vcmp.lt.f32.partialorder %v1146, 0.0
        %vm3835 = vcmp.lt.f32.partialorder %v1147, 0.0
        %vm3836 = vcmp.lt.f32.partialorder %v1148, 0.0
        %vm3837 = vcmp.lt.f32.partialorder %v1149, 0.0
        %vm3838 = vcmp.lt.f32.partialorder %v1150, 0.0
        %vm3839 = vcmp.lt.f32.partialorder %v1151, 0.0
        %vm3840 = vcmp.lt.f32.partialorder %v1152, 0.0
        %vm3841 = vcmp.lt.f32.partialorder %v1153, 0.0
        %vm3842 = vcmp.lt.f32.partialorder %v1154, 0.0
        %vm3843 = vcmp.lt.f32.partialorder %v1155, 0.0
        %vm3844 = vcmp.lt.f32.partialorder %v1156, 0.0
        %vm3845 = vcmp.lt.f32.partialorder %v1157, 0.0
        %vm3846 = vcmp.lt.f32.partialorder %v1158, 0.0
        %vm3847 = vcmp.lt.f32.partialorder %v1159, 0.0
        %vm3848 = vcmp.lt.f32.partialorder %v1160, 0.0
        %vm3849 = vcmp.lt.f32.partialorder %v1161, 0.0
        %vm3850 = vcmp.lt.f32.partialorder %v1162, 0.0
        %vm3851 = vcmp.lt.f32.partialorder %v1163, 0.0
        %vm3852 = vcmp.lt.f32.partialorder %v1164, 0.0
        %vm3853 = vcmp.lt.f32.partialorder %v1165, 0.0
        %vm3854 = vcmp.lt.f32.partialorder %v1166, 0.0
        %vm3855 = vcmp.lt.f32.partialorder %v1167, 0.0
        %vm3856 = vcmp.lt.f32.partialorder %v1168, 0.0
        %vm3857 = vcmp.lt.f32.partialorder %v1169, 0.0
        %vm3858 = vcmp.lt.f32.partialorder %v1170, 0.0
        %vm3859 = vcmp.lt.f32.partialorder %v1171, 0.0
        %vm3860 = vcmp.lt.f32.partialorder %v1172, 0.0
        %vm3861 = vcmp.lt.f32.partialorder %v1173, 0.0
        %vm3862 = vcmp.lt.f32.partialorder %v1174, 0.0
        %vm3863 = vcmp.lt.f32.partialorder %v1175, 0.0
        %vm3864 = vcmp.lt.f32.partialorder %v1176, 0.0
        %vm3865 = vcmp.lt.f32.partialorder %v1177, 0.0
        %vm3866 = vcmp.lt.f32.partialorder %v1178, 0.0
        %v3867 = vsub.f32 0.0, %v3611
        %v3868 = vsub.f32 0.0, %v3612
        %v3869 = vsub.f32 0.0, %v3613
        %v3870 = vsub.f32 0.0, %v3614
        %v3871 = vsub.f32 0.0, %v3615
        %v3872 = vsub.f32 0.0, %v3616
        %v3873 = vsub.f32 0.0, %v3617
        %v3874 = vsub.f32 0.0, %v3618
        %v3875 = vsub.f32 0.0, %v3619
        %v3876 = vsub.f32 0.0, %v3620
        %v3877 = vsub.f32 0.0, %v3621
        %v3878 = vsub.f32 0.0, %v3622
        %v3879 = vsub.f32 0.0, %v3623
        %v3880 = vsub.f32 0.0, %v3624
        %v3881 = vsub.f32 0.0, %v3625
        %v3882 = vsub.f32 0.0, %v3626
        %v3883 = vsub.f32 0.0, %v3627
        %v3884 = vsub.f32 0.0, %v3628
        %v3885 = vsub.f32 0.0, %v3629
        %v3886 = vsub.f32 0.0, %v3630
        %v3887 = vsub.f32 0.0, %v3631
        %v3888 = vsub.f32 0.0, %v3632
        %v3889 = vsub.f32 0.0, %v3633
        %v3890 = vsub.f32 0.0, %v3634
        %v3891 = vsub.f32 0.0, %v3635
        %v3892 = vsub.f32 0.0, %v3636
        %v3893 = vsub.f32 0.0, %v3637
        %v3894 = vsub.f32 0.0, %v3638
        %v3895 = vsub.f32 0.0, %v3639
        %v3896 = vsub.f32 0.0, %v3640
        %v3897 = vsub.f32 0.0, %v3641
        %v3898 = vsub.f32 0.0, %v3642
        %v3899 = vsub.f32 0.0, %v3643
        %v3900 = vsub.f32 0.0, %v3644
        %v3901 = vsub.f32 0.0, %v3645
        %v3902 = vsub.f32 0.0, %v3646
        %v3903 = vsub.f32 0.0, %v3647
        %v3904 = vsub.f32 0.0, %v3648
        %v3905 = vsub.f32 0.0, %v3649
        %v3906 = vsub.f32 0.0, %v3650
        %v3907 = vsub.f32 0.0, %v3651
        %v3908 = vsub.f32 0.0, %v3652
        %v3909 = vsub.f32 0.0, %v3653
        %v3910 = vsub.f32 0.0, %v3654
        %v3911 = vsub.f32 0.0, %v3655
        %v3912 = vsub.f32 0.0, %v3656
        %v3913 = vsub.f32 0.0, %v3657
        %v3914 = vsub.f32 0.0, %v3658
        %v3915 = vsub.f32 0.0, %v3659
        %v3916 = vsub.f32 0.0, %v3660
        %v3917 = vsub.f32 0.0, %v3661
        %v3918 = vsub.f32 0.0, %v3662
        %v3919 = vsub.f32 0.0, %v3663
        %v3920 = vsub.f32 0.0, %v3664
        %v3921 = vsub.f32 0.0, %v3665
        %v3922 = vsub.f32 0.0, %v3666
        %v3923 = vsub.f32 0.0, %v3667
        %v3924 = vsub.f32 0.0, %v3668
        %v3925 = vsub.f32 0.0, %v3669
        %v3926 = vsub.f32 0.0, %v3670
        %v3927 = vsub.f32 0.0, %v3671
        %v3928 = vsub.f32 0.0, %v3672
        %v3929 = vsub.f32 0.0, %v3673
        %v3930 = vsub.f32 0.0, %v3674
        %v3931 = vsub.f32 0.0, %v3675
        %v3932 = vsub.f32 0.0, %v3676
        %v3933 = vsub.f32 0.0, %v3677
        %v3934 = vsub.f32 0.0, %v3678
        %v3935 = vsub.f32 0.0, %v3679
        %v3936 = vsub.f32 0.0, %v3680
        %v3937 = vsub.f32 0.0, %v3681
        %v3938 = vsub.f32 0.0, %v3682
        %v3939 = vsub.f32 0.0, %v3683
        %v3940 = vsub.f32 0.0, %v3684
        %v3941 = vsub.f32 0.0, %v3685
        %v3942 = vsub.f32 0.0, %v3686
        %v3943 = vsub.f32 0.0, %v3687
        %v3944 = vsub.f32 0.0, %v3688
        %v3945 = vsub.f32 0.0, %v3689
        %v3946 = vsub.f32 0.0, %v3690
        %v3947 = vsub.f32 0.0, %v3691
        %v3948 = vsub.f32 0.0, %v3692
        %v3949 = vsub.f32 0.0, %v3693
        %v3950 = vsub.f32 0.0, %v3694
        %v3951 = vsub.f32 0.0, %v3695
        %v3952 = vsub.f32 0.0, %v3696
        %v3953 = vsub.f32 0.0, %v3697
        %v3954 = vsub.f32 0.0, %v3698
        %v3955 = vsub.f32 0.0, %v3699
        %v3956 = vsub.f32 0.0, %v3700
        %v3957 = vsub.f32 0.0, %v3701
        %v3958 = vsub.f32 0.0, %v3702
        %v3959 = vsub.f32 0.0, %v3703
        %v3960 = vsub.f32 0.0, %v3704
        %v3961 = vsub.f32 0.0, %v3705
        %v3962 = vsub.f32 0.0, %v3706
        %v3963 = vsub.f32 0.0, %v3707
        %v3964 = vsub.f32 0.0, %v3708
        %v3965 = vsub.f32 0.0, %v3709
        %v3966 = vsub.f32 0.0, %v3710
        %v3967 = vsub.f32 0.0, %v3711
        %v3968 = vsub.f32 0.0, %v3712
        %v3969 = vsub.f32 0.0, %v3713
        %v3970 = vsub.f32 0.0, %v3714
        %v3971 = vsub.f32 0.0, %v3715
        %v3972 = vsub.f32 0.0, %v3716
        %v3973 = vsub.f32 0.0, %v3717
        %v3974 = vsub.f32 0.0, %v3718
        %v3975 = vsub.f32 0.0, %v3719
        %v3976 = vsub.f32 0.0, %v3720
        %v3977 = vsub.f32 0.0, %v3721
        %v3978 = vsub.f32 0.0, %v3722
        %v3979 = vsub.f32 0.0, %v3723
        %v3980 = vsub.f32 0.0, %v3724
        %v3981 = vsub.f32 0.0, %v3725
        %v3982 = vsub.f32 0.0, %v3726
        %v3983 = vsub.f32 0.0, %v3727
        %v3984 = vsub.f32 0.0, %v3728
        %v3985 = vsub.f32 0.0, %v3729
        %v3986 = vsub.f32 0.0, %v3730
        %v3987 = vsub.f32 0.0, %v3731
        %v3988 = vsub.f32 0.0, %v3732
        %v3989 = vsub.f32 0.0, %v3733
        %v3990 = vsub.f32 0.0, %v3734
        %v3991 = vsub.f32 0.0, %v3735
        %v3992 = vsub.f32 0.0, %v3736
        %v3993 = vsub.f32 0.0, %v3737
        %v3994 = vsub.f32 0.0, %v3738
        %v3995 = vsel %vm3739, %v3867, %v3611
        %v3996 = vsel %vm3740, %v3868, %v3612
        %v3997 = vsel %vm3741, %v3869, %v3613
        %v3998 = vsel %vm3742, %v3870, %v3614
        %v3999 = vsel %vm3743, %v3871, %v3615
        %v4000 = vsel %vm3744, %v3872, %v3616
        %v4001 = vsel %vm3745, %v3873, %v3617
        %v4002 = vsel %vm3746, %v3874, %v3618
        %v4003 = vsel %vm3747, %v3875, %v3619
        %v4004 = vsel %vm3748, %v3876, %v3620
        %v4005 = vsel %vm3749, %v3877, %v3621
        %v4006 = vsel %vm3750, %v3878, %v3622
        %v4007 = vsel %vm3751, %v3879, %v3623
        %v4008 = vsel %vm3752, %v3880, %v3624
        %v4009 = vsel %vm3753, %v3881, %v3625
        %v4010 = vsel %vm3754, %v3882, %v3626
        %v4011 = vsel %vm3755, %v3883, %v3627
        %v4012 = vsel %vm3756, %v3884, %v3628
        %v4013 = vsel %vm3757, %v3885, %v3629
        %v4014 = vsel %vm3758, %v3886, %v3630
        %v4015 = vsel %vm3759, %v3887, %v3631
        %v4016 = vsel %vm3760, %v3888, %v3632
        %v4017 = vsel %vm3761, %v3889, %v3633
        %v4018 = vsel %vm3762, %v3890, %v3634
        %v4019 = vsel %vm3763, %v3891, %v3635
        %v4020 = vsel %vm3764, %v3892, %v3636
        %v4021 = vsel %vm3765, %v3893, %v3637
        %v4022 = vsel %vm3766, %v3894, %v3638
        %v4023 = vsel %vm3767, %v3895, %v3639
        %v4024 = vsel %vm3768, %v3896, %v3640
        %v4025 = vsel %vm3769, %v3897, %v3641
        %v4026 = vsel %vm3770, %v3898, %v3642
        %v4027 = vsel %vm3771, %v3899, %v3643
        %v4028 = vsel %vm3772, %v3900, %v3644
        %v4029 = vsel %vm3773, %v3901, %v3645
        %v4030 = vsel %vm3774, %v3902, %v3646
        %v4031 = vsel %vm3775, %v3903, %v3647
        %v4032 = vsel %vm3776, %v3904, %v3648
        %v4033 = vsel %vm3777, %v3905, %v3649
        %v4034 = vsel %vm3778, %v3906, %v3650
        %v4035 = vsel %vm3779, %v3907, %v3651
        %v4036 = vsel %vm3780, %v3908, %v3652
        %v4037 = vsel %vm3781, %v3909, %v3653
        %v4038 = vsel %vm3782, %v3910, %v3654
        %v4039 = vsel %vm3783, %v3911, %v3655
        %v4040 = vsel %vm3784, %v3912, %v3656
        %v4041 = vsel %vm3785, %v3913, %v3657
        %v4042 = vsel %vm3786, %v3914, %v3658
        %v4043 = vsel %vm3787, %v3915, %v3659
        %v4044 = vsel %vm3788, %v3916, %v3660
        %v4045 = vsel %vm3789, %v3917, %v3661
        %v4046 = vsel %vm3790, %v3918, %v3662
        %v4047 = vsel %vm3791, %v3919, %v3663
        %v4048 = vsel %vm3792, %v3920, %v3664
        %v4049 = vsel %vm3793, %v3921, %v3665
        %v4050 = vsel %vm3794, %v3922, %v3666
        %v4051 = vsel %vm3795, %v3923, %v3667
        %v4052 = vsel %vm3796, %v3924, %v3668
        %v4053 = vsel %vm3797, %v3925, %v3669
        %v4054 = vsel %vm3798, %v3926, %v3670
        %v4055 = vsel %vm3799, %v3927, %v3671
        %v4056 = vsel %vm3800, %v3928, %v3672
        %v4057 = vsel %vm3801, %v3929, %v3673
        %v4058 = vsel %vm3802, %v3930, %v3674
        %v4059 = vsel %vm3803, %v3931, %v3675
        %v4060 = vsel %vm3804, %v3932, %v3676
        %v4061 = vsel %vm3805, %v3933, %v3677
        %v4062 = vsel %vm3806, %v3934, %v3678
        %v4063 = vsel %vm3807, %v3935, %v3679
        %v4064 = vsel %vm3808, %v3936, %v3680
        %v4065 = vsel %vm3809, %v3937, %v3681
        %v4066 = vsel %vm3810, %v3938, %v3682
        %v4067 = vsel %vm3811, %v3939, %v3683
        %v4068 = vsel %vm3812, %v3940, %v3684
        %v4069 = vsel %vm3813, %v3941, %v3685
        %v4070 = vsel %vm3814, %v3942, %v3686
        %v4071 = vsel %vm3815, %v3943, %v3687
        %v4072 = vsel %vm3816, %v3944, %v3688
        %v4073 = vsel %vm3817, %v3945, %v3689
        %v4074 = vsel %vm3818, %v3946, %v3690
        %v4075 = vsel %vm3819, %v3947, %v3691
        %v4076 = vsel %vm3820, %v3948, %v3692
        %v4077 = vsel %vm3821, %v3949, %v3693
        %v4078 = vsel %vm3822, %v3950, %v3694
        %v4079 = vsel %vm3823, %v3951, %v3695
        %v4080 = vsel %vm3824, %v3952, %v3696
        %v4081 = vsel %vm3825, %v3953, %v3697
        %v4082 = vsel %vm3826, %v3954, %v3698
        %v4083 = vsel %vm3827, %v3955, %v3699
        %v4084 = vsel %vm3828, %v3956, %v3700
        %v4085 = vsel %vm3829, %v3957, %v3701
        %v4086 = vsel %vm3830, %v3958, %v3702
        %v4087 = vsel %vm3831, %v3959, %v3703
        %v4088 = vsel %vm3832, %v3960, %v3704
        %v4089 = vsel %vm3833, %v3961, %v3705
        %v4090 = vsel %vm3834, %v3962, %v3706
        %v4091 = vsel %vm3835, %v3963, %v3707
        %v4092 = vsel %vm3836, %v3964, %v3708
        %v4093 = vsel %vm3837, %v3965, %v3709
        %v4094 = vsel %vm3838, %v3966, %v3710
        %v4095 = vsel %vm3839, %v3967, %v3711
        %v4096 = vsel %vm3840, %v3968, %v3712
        %v4097 = vsel %vm3841, %v3969, %v3713
        %v4098 = vsel %vm3842, %v3970, %v3714
        %v4099 = vsel %vm3843, %v3971, %v3715
        %v4100 = vsel %vm3844, %v3972, %v3716
        %v4101 = vsel %vm3845, %v3973, %v3717
        %v4102 = vsel %vm3846, %v3974, %v3718
        %v4103 = vsel %vm3847, %v3975, %v3719
        %v4104 = vsel %vm3848, %v3976, %v3720
        %v4105 = vsel %vm3849, %v3977, %v3721
        %v4106 = vsel %vm3850, %v3978, %v3722
        %v4107 = vsel %vm3851, %v3979, %v3723
        %v4108 = vsel %vm3852, %v3980, %v3724
        %v4109 = vsel %vm3853, %v3981, %v3725
        %v4110 = vsel %vm3854, %v3982, %v3726
        %v4111 = vsel %vm3855, %v3983, %v3727
        %v4112 = vsel %vm3856, %v3984, %v3728
        %v4113 = vsel %vm3857, %v3985, %v3729
        %v4114 = vsel %vm3858, %v3986, %v3730
        %v4115 = vsel %vm3859, %v3987, %v3731
        %v4116 = vsel %vm3860, %v3988, %v3732
        %v4117 = vsel %vm3861, %v3989, %v3733
        %v4118 = vsel %vm3862, %v3990, %v3734
        %v4119 = vsel %vm3863, %v3991, %v3735
        %v4120 = vsel %vm3864, %v3992, %v3736
        %v4121 = vsel %vm3865, %v3993, %v3737
        %v4122 = vsel %vm3866, %v3994, %v3738
        %v4123 = vadd.f32 %v3995, 1.0
        %v4124 = vadd.f32 %v3996, 1.0
        %v4125 = vadd.f32 %v3997, 1.0
        %v4126 = vadd.f32 %v3998, 1.0
        %v4127 = vadd.f32 %v3999, 1.0
        %v4128 = vadd.f32 %v4000, 1.0
        %v4129 = vadd.f32 %v4001, 1.0
        %v4130 = vadd.f32 %v4002, 1.0
        %v4131 = vadd.f32 %v4003, 1.0
        %v4132 = vadd.f32 %v4004, 1.0
        %v4133 = vadd.f32 %v4005, 1.0
        %v4134 = vadd.f32 %v4006, 1.0
        %v4135 = vadd.f32 %v4007, 1.0
        %v4136 = vadd.f32 %v4008, 1.0
        %v4137 = vadd.f32 %v4009, 1.0
        %v4138 = vadd.f32 %v4010, 1.0
        %v4139 = vadd.f32 %v4011, 1.0
        %v4140 = vadd.f32 %v4012, 1.0
        %v4141 = vadd.f32 %v4013, 1.0
        %v4142 = vadd.f32 %v4014, 1.0
        %v4143 = vadd.f32 %v4015, 1.0
        %v4144 = vadd.f32 %v4016, 1.0
        %v4145 = vadd.f32 %v4017, 1.0
        %v4146 = vadd.f32 %v4018, 1.0
        %v4147 = vadd.f32 %v4019, 1.0
        %v4148 = vadd.f32 %v4020, 1.0
        %v4149 = vadd.f32 %v4021, 1.0
        %v4150 = vadd.f32 %v4022, 1.0
        %v4151 = vadd.f32 %v4023, 1.0
        %v4152 = vadd.f32 %v4024, 1.0
        %v4153 = vadd.f32 %v4025, 1.0
        %v4154 = vadd.f32 %v4026, 1.0
        %v4155 = vadd.f32 %v4027, 1.0
        %v4156 = vadd.f32 %v4028, 1.0
        %v4157 = vadd.f32 %v4029, 1.0
        %v4158 = vadd.f32 %v4030, 1.0
        %v4159 = vadd.f32 %v4031, 1.0
        %v4160 = vadd.f32 %v4032, 1.0
        %v4161 = vadd.f32 %v4033, 1.0
        %v4162 = vadd.f32 %v4034, 1.0
        %v4163 = vadd.f32 %v4035, 1.0
        %v4164 = vadd.f32 %v4036, 1.0
        %v4165 = vadd.f32 %v4037, 1.0
        %v4166 = vadd.f32 %v4038, 1.0
        %v4167 = vadd.f32 %v4039, 1.0
        %v4168 = vadd.f32 %v4040, 1.0
        %v4169 = vadd.f32 %v4041, 1.0
        %v4170 = vadd.f32 %v4042, 1.0
        %v4171 = vadd.f32 %v4043, 1.0
        %v4172 = vadd.f32 %v4044, 1.0
        %v4173 = vadd.f32 %v4045, 1.0
        %v4174 = vadd.f32 %v4046, 1.0
        %v4175 = vadd.f32 %v4047, 1.0
        %v4176 = vadd.f32 %v4048, 1.0
        %v4177 = vadd.f32 %v4049, 1.0
        %v4178 = vadd.f32 %v4050, 1.0
        %v4179 = vadd.f32 %v4051, 1.0
        %v4180 = vadd.f32 %v4052, 1.0
        %v4181 = vadd.f32 %v4053, 1.0
        %v4182 = vadd.f32 %v4054, 1.0
        %v4183 = vadd.f32 %v4055, 1.0
        %v4184 = vadd.f32 %v4056, 1.0
        %v4185 = vadd.f32 %v4057, 1.0
        %v4186 = vadd.f32 %v4058, 1.0
        %v4187 = vadd.f32 %v4059, 1.0
        %v4188 = vadd.f32 %v4060, 1.0
        %v4189 = vadd.f32 %v4061, 1.0
        %v4190 = vadd.f32 %v4062, 1.0
        %v4191 = vadd.f32 %v4063, 1.0
        %v4192 = vadd.f32 %v4064, 1.0
        %v4193 = vadd.f32 %v4065, 1.0
        %v4194 = vadd.f32 %v4066, 1.0
        %v4195 = vadd.f32 %v4067, 1.0
        %v4196 = vadd.f32 %v4068, 1.0
        %v4197 = vadd.f32 %v4069, 1.0
        %v4198 = vadd.f32 %v4070, 1.0
        %v4199 = vadd.f32 %v4071, 1.0
        %v4200 = vadd.f32 %v4072, 1.0
        %v4201 = vadd.f32 %v4073, 1.0
        %v4202 = vadd.f32 %v4074, 1.0
        %v4203 = vadd.f32 %v4075, 1.0
        %v4204 = vadd.f32 %v4076, 1.0
        %v4205 = vadd.f32 %v4077, 1.0
        %v4206 = vadd.f32 %v4078, 1.0
        %v4207 = vadd.f32 %v4079, 1.0
        %v4208 = vadd.f32 %v4080, 1.0
        %v4209 = vadd.f32 %v4081, 1.0
        %v4210 = vadd.f32 %v4082, 1.0
        %v4211 = vadd.f32 %v4083, 1.0
        %v4212 = vadd.f32 %v4084, 1.0
        %v4213 = vadd.f32 %v4085, 1.0
        %v4214 = vadd.f32 %v4086, 1.0
        %v4215 = vadd.f32 %v4087, 1.0
        %v4216 = vadd.f32 %v4088, 1.0
        %v4217 = vadd.f32 %v4089, 1.0
        %v4218 = vadd.f32 %v4090, 1.0
        %v4219 = vadd.f32 %v4091, 1.0
        %v4220 = vadd.f32 %v4092, 1.0
        %v4221 = vadd.f32 %v4093, 1.0
        %v4222 = vadd.f32 %v4094, 1.0
        %v4223 = vadd.f32 %v4095, 1.0
        %v4224 = vadd.f32 %v4096, 1.0
        %v4225 = vadd.f32 %v4097, 1.0
        %v4226 = vadd.f32 %v4098, 1.0
        %v4227 = vadd.f32 %v4099, 1.0
        %v4228 = vadd.f32 %v4100, 1.0
        %v4229 = vadd.f32 %v4101, 1.0
        %v4230 = vadd.f32 %v4102, 1.0
        %v4231 = vadd.f32 %v4103, 1.0
        %v4232 = vadd.f32 %v4104, 1.0
        %v4233 = vadd.f32 %v4105, 1.0
        %v4234 = vadd.f32 %v4106, 1.0
        %v4235 = vadd.f32 %v4107, 1.0
        %v4236 = vadd.f32 %v4108, 1.0
        %v4237 = vadd.f32 %v4109, 1.0
        %v4238 = vadd.f32 %v4110, 1.0
        %v4239 = vadd.f32 %v4111, 1.0
        %v4240 = vadd.f32 %v4112, 1.0
        %v4241 = vadd.f32 %v4113, 1.0
        %v4242 = vadd.f32 %v4114, 1.0
        %v4243 = vadd.f32 %v4115, 1.0
        %v4244 = vadd.f32 %v4116, 1.0
        %v4245 = vadd.f32 %v4117, 1.0
        %v4246 = vadd.f32 %v4118, 1.0
        %v4247 = vadd.f32 %v4119, 1.0
        %v4248 = vadd.f32 %v4120, 1.0
        %v4249 = vadd.f32 %v4121, 1.0
        %v4250 = vadd.f32 %v4122, 1.0
        %v4251 = vmul.f32 %v923, %v4123
        %v4252 = vmul.f32 %v924, %v4124
        %v4253 = vmul.f32 %v925, %v4125
        %v4254 = vmul.f32 %v926, %v4126
        %v4255 = vmul.f32 %v927, %v4127
        %v4256 = vmul.f32 %v928, %v4128
        %v4257 = vmul.f32 %v929, %v4129
        %v4258 = vmul.f32 %v930, %v4130
        %v4259 = vmul.f32 %v931, %v4131
        %v4260 = vmul.f32 %v932, %v4132
        %v4261 = vmul.f32 %v933, %v4133
        %v4262 = vmul.f32 %v934, %v4134
        %v4263 = vmul.f32 %v935, %v4135
        %v4264 = vmul.f32 %v936, %v4136
        %v4265 = vmul.f32 %v937, %v4137
        %v4266 = vmul.f32 %v938, %v4138
        %v4267 = vmul.f32 %v939, %v4139
        %v4268 = vmul.f32 %v940, %v4140
        %v4269 = vmul.f32 %v941, %v4141
        %v4270 = vmul.f32 %v942, %v4142
        %v4271 = vmul.f32 %v943, %v4143
        %v4272 = vmul.f32 %v944, %v4144
        %v4273 = vmul.f32 %v945, %v4145
        %v4274 = vmul.f32 %v946, %v4146
        %v4275 = vmul.f32 %v947, %v4147
        %v4276 = vmul.f32 %v948, %v4148
        %v4277 = vmul.f32 %v949, %v4149
        %v4278 = vmul.f32 %v950, %v4150
        %v4279 = vmul.f32 %v951, %v4151
        %v4280 = vmul.f32 %v952, %v4152
        %v4281 = vmul.f32 %v953, %v4153
        %v4282 = vmul.f32 %v954, %v4154
        %v4283 = vmul.f32 %v955, %v4155
        %v4284 = vmul.f32 %v956, %v4156
        %v4285 = vmul.f32 %v957, %v4157
        %v4286 = vmul.f32 %v958, %v4158
        %v4287 = vmul.f32 %v959, %v4159
        %v4288 = vmul.f32 %v960, %v4160
        %v4289 = vmul.f32 %v961, %v4161
        %v4290 = vmul.f32 %v962, %v4162
        %v4291 = vmul.f32 %v963, %v4163
        %v4292 = vmul.f32 %v964, %v4164
        %v4293 = vmul.f32 %v965, %v4165
        %v4294 = vmul.f32 %v966, %v4166
        %v4295 = vmul.f32 %v967, %v4167
        %v4296 = vmul.f32 %v968, %v4168
        %v4297 = vmul.f32 %v969, %v4169
        %v4298 = vmul.f32 %v970, %v4170
        %v4299 = vmul.f32 %v971, %v4171
        %v4300 = vmul.f32 %v972, %v4172
        %v4301 = vmul.f32 %v973, %v4173
        %v4302 = vmul.f32 %v974, %v4174
        %v4303 = vmul.f32 %v975, %v4175
        %v4304 = vmul.f32 %v976, %v4176
        %v4305 = vmul.f32 %v977, %v4177
        %v4306 = vmul.f32 %v978, %v4178
        %v4307 = vmul.f32 %v979, %v4179
        %v4308 = vmul.f32 %v980, %v4180
        %v4309 = vmul.f32 %v981, %v4181
        %v4310 = vmul.f32 %v982, %v4182
        %v4311 = vmul.f32 %v983, %v4183
        %v4312 = vmul.f32 %v984, %v4184
        %v4313 = vmul.f32 %v985, %v4185
        %v4314 = vmul.f32 %v986, %v4186
        %v4315 = vmul.f32 %v987, %v4187
        %v4316 = vmul.f32 %v988, %v4188
        %v4317 = vmul.f32 %v989, %v4189
        %v4318 = vmul.f32 %v990, %v4190
        %v4319 = vmul.f32 %v991, %v4191
        %v4320 = vmul.f32 %v992, %v4192
        %v4321 = vmul.f32 %v993, %v4193
        %v4322 = vmul.f32 %v994, %v4194
        %v4323 = vmul.f32 %v995, %v4195
        %v4324 = vmul.f32 %v996, %v4196
        %v4325 = vmul.f32 %v997, %v4197
        %v4326 = vmul.f32 %v998, %v4198
        %v4327 = vmul.f32 %v999, %v4199
        %v4328 = vmul.f32 %v1000, %v4200
        %v4329 = vmul.f32 %v1001, %v4201
        %v4330 = vmul.f32 %v1002, %v4202
        %v4331 = vmul.f32 %v1003, %v4203
        %v4332 = vmul.f32 %v1004, %v4204
        %v4333 = vmul.f32 %v1005, %v4205
        %v4334 = vmul.f32 %v1006, %v4206
        %v4335 = vmul.f32 %v1007, %v4207
        %v4336 = vmul.f32 %v1008, %v4208
        %v4337 = vmul.f32 %v1009, %v4209
        %v4338 = vmul.f32 %v1010, %v4210
        %v4339 = vmul.f32 %v1011, %v4211
        %v4340 = vmul.f32 %v1012, %v4212
        %v4341 = vmul.f32 %v1013, %v4213
        %v4342 = vmul.f32 %v1014, %v4214
        %v4343 = vmul.f32 %v1015, %v4215
        %v4344 = vmul.f32 %v1016, %v4216
        %v4345 = vmul.f32 %v1017, %v4217
        %v4346 = vmul.f32 %v1018, %v4218
        %v4347 = vmul.f32 %v1019, %v4219
        %v4348 = vmul.f32 %v1020, %v4220
        %v4349 = vmul.f32 %v1021, %v4221
        %v4350 = vmul.f32 %v1022, %v4222
        %v4351 = vmul.f32 %v1023, %v4223
        %v4352 = vmul.f32 %v1024, %v4224
        %v4353 = vmul.f32 %v1025, %v4225
        %v4354 = vmul.f32 %v1026, %v4226
        %v4355 = vmul.f32 %v1027, %v4227
        %v4356 = vmul.f32 %v1028, %v4228
        %v4357 = vmul.f32 %v1029, %v4229
        %v4358 = vmul.f32 %v1030, %v4230
        %v4359 = vmul.f32 %v1031, %v4231
        %v4360 = vmul.f32 %v1032, %v4232
        %v4361 = vmul.f32 %v1033, %v4233
        %v4362 = vmul.f32 %v1034, %v4234
        %v4363 = vmul.f32 %v1035, %v4235
        %v4364 = vmul.f32 %v1036, %v4236
        %v4365 = vmul.f32 %v1037, %v4237
        %v4366 = vmul.f32 %v1038, %v4238
        %v4367 = vmul.f32 %v1039, %v4239
        %v4368 = vmul.f32 %v1040, %v4240
        %v4369 = vmul.f32 %v1041, %v4241
        %v4370 = vmul.f32 %v1042, %v4242
        %v4371 = vmul.f32 %v1043, %v4243
        %v4372 = vmul.f32 %v1044, %v4244
        %v4373 = vmul.f32 %v1045, %v4245
        %v4374 = vmul.f32 %v1046, %v4246
        %v4375 = vmul.f32 %v1047, %v4247
        %v4376 = vmul.f32 %v1048, %v4248
        %v4377 = vmul.f32 %v1049, %v4249
        %v4378 = vmul.f32 %v1050, %v4250
        %v4379 = vpack.c.bf16 %v4255, %v4251
        %v4380 = vpack.c.bf16 %v4256, %v4252
        %v4381 = vpack.c.bf16 %v4257, %v4253
        %v4382 = vpack.c.bf16 %v4258, %v4254
        %v4383 = vpack.c.bf16 %v4263, %v4259
        %v4384 = vpack.c.bf16 %v4264, %v4260
        %v4385 = vpack.c.bf16 %v4265, %v4261
        %v4386 = vpack.c.bf16 %v4266, %v4262
        %v4387 = vpack.c.bf16 %v4271, %v4267
        %v4388 = vpack.c.bf16 %v4272, %v4268
        %v4389 = vpack.c.bf16 %v4273, %v4269
        %v4390 = vpack.c.bf16 %v4274, %v4270
        %v4391 = vpack.c.bf16 %v4279, %v4275
        %v4392 = vpack.c.bf16 %v4280, %v4276
        %v4393 = vpack.c.bf16 %v4281, %v4277
        %v4394 = vpack.c.bf16 %v4282, %v4278
        %v4395 = vpack.c.bf16 %v4287, %v4283
        %v4396 = vpack.c.bf16 %v4288, %v4284
        %v4397 = vpack.c.bf16 %v4289, %v4285
        %v4398 = vpack.c.bf16 %v4290, %v4286
        %v4399 = vpack.c.bf16 %v4295, %v4291
        %v4400 = vpack.c.bf16 %v4296, %v4292
        %v4401 = vpack.c.bf16 %v4297, %v4293
        %v4402 = vpack.c.bf16 %v4298, %v4294
        %v4403 = vpack.c.bf16 %v4303, %v4299
        %v4404 = vpack.c.bf16 %v4304, %v4300
        %v4405 = vpack.c.bf16 %v4305, %v4301
        %v4406 = vpack.c.bf16 %v4306, %v4302
        %v4407 = vpack.c.bf16 %v4311, %v4307
        %v4408 = vpack.c.bf16 %v4312, %v4308
        %v4409 = vpack.c.bf16 %v4313, %v4309
        %v4410 = vpack.c.bf16 %v4314, %v4310
        %v4411 = vpack.c.bf16 %v4319, %v4315
        %v4412 = vpack.c.bf16 %v4320, %v4316
        %v4413 = vpack.c.bf16 %v4321, %v4317
        %v4414 = vpack.c.bf16 %v4322, %v4318
        %v4415 = vpack.c.bf16 %v4327, %v4323
        %v4416 = vpack.c.bf16 %v4328, %v4324
        %v4417 = vpack.c.bf16 %v4329, %v4325
        %v4418 = vpack.c.bf16 %v4330, %v4326
        %v4419 = vpack.c.bf16 %v4335, %v4331
        %v4420 = vpack.c.bf16 %v4336, %v4332
        %v4421 = vpack.c.bf16 %v4337, %v4333
        %v4422 = vpack.c.bf16 %v4338, %v4334
        %v4423 = vpack.c.bf16 %v4343, %v4339
        %v4424 = vpack.c.bf16 %v4344, %v4340
        %v4425 = vpack.c.bf16 %v4345, %v4341
        %v4426 = vpack.c.bf16 %v4346, %v4342
        %v4427 = vpack.c.bf16 %v4351, %v4347
        %v4428 = vpack.c.bf16 %v4352, %v4348
        %v4429 = vpack.c.bf16 %v4353, %v4349
        %v4430 = vpack.c.bf16 %v4354, %v4350
        %v4431 = vpack.c.bf16 %v4359, %v4355
        %v4432 = vpack.c.bf16 %v4360, %v4356
        %v4433 = vpack.c.bf16 %v4361, %v4357
        %v4434 = vpack.c.bf16 %v4362, %v4358
        %v4435 = vpack.c.bf16 %v4367, %v4363
        %v4436 = vpack.c.bf16 %v4368, %v4364
        %v4437 = vpack.c.bf16 %v4369, %v4365
        %v4438 = vpack.c.bf16 %v4370, %v4366
        %v4439 = vpack.c.bf16 %v4375, %v4371
        %v4440 = vpack.c.bf16 %v4376, %v4372
        %v4441 = vpack.c.bf16 %v4377, %v4373
        %v4442 = vpack.c.bf16 %v4378, %v4374
        %v4443 = vld [vmem:[#allocation7] sm:$0xf]
        %v4444 = vld [vmem:[#allocation7 + $0x4] sm:$0xf]
        %v4445 = vld [vmem:[#allocation7 + $0x8] sm:$0xf]
        %v4446 = vld [vmem:[#allocation7 + $0xc] sm:$0xf]
        %v4447 = vld [vmem:[#allocation7 + $0x10] sm:$0xf]
        %v4448 = vld [vmem:[#allocation7 + $0x14] sm:$0xf]
        %v4449 = vld [vmem:[#allocation7 + $0x18] sm:$0xf]
        %v4450 = vld [vmem:[#allocation7 + $0x1c] sm:$0xf]
        %v4451 = vld [vmem:[#allocation7 + $0x20] sm:$0xf]
        %v4452 = vld [vmem:[#allocation7 + $0x24] sm:$0xf]
        %v4453 = vld [vmem:[#allocation7 + $0x28] sm:$0xf]
        %v4454 = vld [vmem:[#allocation7 + $0x2c] sm:$0xf]
        %v4455 = vld [vmem:[#allocation7 + $0x30] sm:$0xf]
        %v4456 = vld [vmem:[#allocation7 + $0x34] sm:$0xf]
        %v4457 = vld [vmem:[#allocation7 + $0x38] sm:$0xf]
        %v4458 = vld [vmem:[#allocation7 + $0x3c] sm:$0xf]
        %v4459 = vld [vmem:[#allocation7 + $0x40] sm:$0xf]
        %v4460 = vld [vmem:[#allocation7 + $0x44] sm:$0xf]
        %v4461 = vld [vmem:[#allocation7 + $0x48] sm:$0xf]
        %v4462 = vld [vmem:[#allocation7 + $0x4c] sm:$0xf]
        %v4463 = vld [vmem:[#allocation7 + $0x50] sm:$0xf]
        %v4464 = vld [vmem:[#allocation7 + $0x54] sm:$0xf]
        %v4465 = vld [vmem:[#allocation7 + $0x58] sm:$0xf]
        %v4466 = vld [vmem:[#allocation7 + $0x5c] sm:$0xf]
        %v4467 = vld [vmem:[#allocation7 + $0x60] sm:$0xf]
        %v4468 = vld [vmem:[#allocation7 + $0x64] sm:$0xf]
        %v4469 = vld [vmem:[#allocation7 + $0x68] sm:$0xf]
        %v4470 = vld [vmem:[#allocation7 + $0x6c] sm:$0xf]
        %v4471 = vld [vmem:[#allocation7 + $0x70] sm:$0xf]
        %v4472 = vld [vmem:[#allocation7 + $0x74] sm:$0xf]
        %v4473 = vld [vmem:[#allocation7 + $0x78] sm:$0xf]
        %v4474 = vld [vmem:[#allocation7 + $0x7c] sm:$0xf]
        %v4475 = vld [vmem:[#allocation7 + $0x80] sm:$0xf]
        %v4476 = vld [vmem:[#allocation7 + $0x84] sm:$0xf]
        %v4477 = vld [vmem:[#allocation7 + $0x88] sm:$0xf]
        %v4478 = vld [vmem:[#allocation7 + $0x8c] sm:$0xf]
        %v4479 = vld [vmem:[#allocation7 + $0x90] sm:$0xf]
        %v4480 = vld [vmem:[#allocation7 + $0x94] sm:$0xf]
        %v4481 = vld [vmem:[#allocation7 + $0x98] sm:$0xf]
        %v4482 = vld [vmem:[#allocation7 + $0x9c] sm:$0xf]
        %v4483 = vld [vmem:[#allocation7 + $0xa0] sm:$0xf]
        %v4484 = vld [vmem:[#allocation7 + $0xa4] sm:$0xf]
        %v4485 = vld [vmem:[#allocation7 + $0xa8] sm:$0xf]
        %v4486 = vld [vmem:[#allocation7 + $0xac] sm:$0xf]
        %v4487 = vld [vmem:[#allocation7 + $0xb0] sm:$0xf]
        %v4488 = vld [vmem:[#allocation7 + $0xb4] sm:$0xf]
        %v4489 = vld [vmem:[#allocation7 + $0xb8] sm:$0xf]
        %v4490 = vld [vmem:[#allocation7 + $0xbc] sm:$0xf]
        %v4491 = vld [vmem:[#allocation7 + $0xc0] sm:$0xf]
        %v4492 = vld [vmem:[#allocation7 + $0xc4] sm:$0xf]
        %v4493 = vld [vmem:[#allocation7 + $0xc8] sm:$0xf]
        %v4494 = vld [vmem:[#allocation7 + $0xcc] sm:$0xf]
        %v4495 = vld [vmem:[#allocation7 + $0xd0] sm:$0xf]
        %v4496 = vld [vmem:[#allocation7 + $0xd4] sm:$0xf]
        %v4497 = vld [vmem:[#allocation7 + $0xd8] sm:$0xf]
        %v4498 = vld [vmem:[#allocation7 + $0xdc] sm:$0xf]
        %v4499 = vld [vmem:[#allocation7 + $0xe0] sm:$0xf]
        %v4500 = vld [vmem:[#allocation7 + $0xe4] sm:$0xf]
        %v4501 = vld [vmem:[#allocation7 + $0xe8] sm:$0xf]
        %v4502 = vld [vmem:[#allocation7 + $0xec] sm:$0xf]
        %v4503 = vld [vmem:[#allocation7 + $0xf0] sm:$0xf]
        %v4504 = vld [vmem:[#allocation7 + $0xf4] sm:$0xf]
        %v4505 = vld [vmem:[#allocation7 + $0xf8] sm:$0xf]
        %v4506 = vld [vmem:[#allocation7 + $0xfc] sm:$0xf]
        %v4507 = vld [vmem:[%s4] sm:$0x1]
        %v4509 = vlaneseq
        %v4510 = vshrl.u32 %v4509, 7
        %v4511 = vsub.s32 0, %v4510
        %v4512 = vrot.slane %v4507, %v4511
        %v4578 = vunpack.c.l.b16 %v4443
        %v4579 = vunpack.c.l.b16 %v4444
        %v4580 = vunpack.c.l.b16 %v4445
        %v4581 = vunpack.c.l.b16 %v4446
        %v4582 = vunpack.c.l.b16 %v4447
        %v4583 = vunpack.c.l.b16 %v4448
        %v4584 = vunpack.c.l.b16 %v4449
        %v4585 = vunpack.c.l.b16 %v4450
        %v4586 = vunpack.c.l.b16 %v4451
        %v4587 = vunpack.c.l.b16 %v4452
        %v4588 = vunpack.c.l.b16 %v4453
        %v4589 = vunpack.c.l.b16 %v4454
        %v4590 = vunpack.c.l.b16 %v4455
        %v4591 = vunpack.c.l.b16 %v4456
        %v4592 = vunpack.c.l.b16 %v4457
        %v4593 = vunpack.c.l.b16 %v4458
        %v4594 = vunpack.c.l.b16 %v4459
        %v4595 = vunpack.c.l.b16 %v4460
        %v4596 = vunpack.c.l.b16 %v4461
        %v4597 = vunpack.c.l.b16 %v4462
        %v4598 = vunpack.c.l.b16 %v4463
        %v4599 = vunpack.c.l.b16 %v4464
        %v4600 = vunpack.c.l.b16 %v4465
        %v4601 = vunpack.c.l.b16 %v4466
        %v4602 = vunpack.c.l.b16 %v4467
        %v4603 = vunpack.c.l.b16 %v4468
        %v4604 = vunpack.c.l.b16 %v4469
        %v4605 = vunpack.c.l.b16 %v4470
        %v4606 = vunpack.c.l.b16 %v4471
        %v4607 = vunpack.c.l.b16 %v4472
        %v4608 = vunpack.c.l.b16 %v4473
        %v4609 = vunpack.c.l.b16 %v4474
        %v4610 = vunpack.c.l.b16 %v4475
        %v4611 = vunpack.c.l.b16 %v4476
        %v4612 = vunpack.c.l.b16 %v4477
        %v4613 = vunpack.c.l.b16 %v4478
        %v4614 = vunpack.c.l.b16 %v4479
        %v4615 = vunpack.c.l.b16 %v4480
        %v4616 = vunpack.c.l.b16 %v4481
        %v4617 = vunpack.c.l.b16 %v4482
        %v4618 = vunpack.c.l.b16 %v4483
        %v4619 = vunpack.c.l.b16 %v4484
        %v4620 = vunpack.c.l.b16 %v4485
        %v4621 = vunpack.c.l.b16 %v4486
        %v4622 = vunpack.c.l.b16 %v4487
        %v4623 = vunpack.c.l.b16 %v4488
        %v4624 = vunpack.c.l.b16 %v4489
        %v4625 = vunpack.c.l.b16 %v4490
        %v4626 = vunpack.c.l.b16 %v4491
        %v4627 = vunpack.c.l.b16 %v4492
        %v4628 = vunpack.c.l.b16 %v4493
        %v4629 = vunpack.c.l.b16 %v4494
        %v4630 = vunpack.c.l.b16 %v4495
        %v4631 = vunpack.c.l.b16 %v4496
        %v4632 = vunpack.c.l.b16 %v4497
        %v4633 = vunpack.c.l.b16 %v4498
        %v4634 = vunpack.c.l.b16 %v4499
        %v4635 = vunpack.c.l.b16 %v4500
        %v4636 = vunpack.c.l.b16 %v4501
        %v4637 = vunpack.c.l.b16 %v4502
        %v4638 = vunpack.c.l.b16 %v4503
        %v4639 = vunpack.c.l.b16 %v4504
        %v4640 = vunpack.c.l.b16 %v4505
        %v4641 = vunpack.c.l.b16 %v4506
        %v4642 = vpack.c.b16 %v4579, %v4578
        %v4643 = vpack.c.b16 %v4581, %v4580
        %v4644 = vpack.c.b16 %v4583, %v4582
        %v4645 = vpack.c.b16 %v4585, %v4584
        %v4646 = vpack.c.b16 %v4587, %v4586
        %v4647 = vpack.c.b16 %v4589, %v4588
        %v4648 = vpack.c.b16 %v4591, %v4590
        %v4649 = vpack.c.b16 %v4593, %v4592
        %v4650 = vpack.c.b16 %v4595, %v4594
        %v4651 = vpack.c.b16 %v4597, %v4596
        %v4652 = vpack.c.b16 %v4599, %v4598
        %v4653 = vpack.c.b16 %v4601, %v4600
        %v4654 = vpack.c.b16 %v4603, %v4602
        %v4655 = vpack.c.b16 %v4605, %v4604
        %v4656 = vpack.c.b16 %v4607, %v4606
        %v4657 = vpack.c.b16 %v4609, %v4608
        %v4658 = vpack.c.b16 %v4611, %v4610
        %v4659 = vpack.c.b16 %v4613, %v4612
        %v4660 = vpack.c.b16 %v4615, %v4614
        %v4661 = vpack.c.b16 %v4617, %v4616
        %v4662 = vpack.c.b16 %v4619, %v4618
        %v4663 = vpack.c.b16 %v4621, %v4620
        %v4664 = vpack.c.b16 %v4623, %v4622
        %v4665 = vpack.c.b16 %v4625, %v4624
        %v4666 = vpack.c.b16 %v4627, %v4626
        %v4667 = vpack.c.b16 %v4629, %v4628
        %v4668 = vpack.c.b16 %v4631, %v4630
        %v4669 = vpack.c.b16 %v4633, %v4632
        %v4670 = vpack.c.b16 %v4635, %v4634
        %v4671 = vpack.c.b16 %v4637, %v4636
        %v4672 = vpack.c.b16 %v4639, %v4638
        %v4673 = vpack.c.b16 %v4641, %v4640
        %4706 = vmatprep.subr.bf16.mxu0 0
        %4707 = vmatpush1.bf16.msra.mxu0 %v4642
        %4708 = vmatprep.subr.bf16.mxu0 0
        %4709 = vmatpush1.bf16.msra.mxu0 %v4643
        %4710 = vmatprep.subr.bf16.mxu0 0
        %4711 = vmatpush1.bf16.msra.mxu0 %v4644
        %4712 = vmatprep.subr.bf16.mxu0 0
        %4713 = vmatpush1.bf16.msra.mxu0 %v4645
        %4714 = vmatprep.subr.bf16.mxu0 0
        %4715 = vmatpush1.bf16.msra.mxu0 %v4646
        %4716 = vmatprep.subr.bf16.mxu0 0
        %4717 = vmatpush1.bf16.msra.mxu0 %v4647
        %4718 = vmatprep.subr.bf16.mxu0 0
        %4719 = vmatpush1.bf16.msra.mxu0 %v4648
        %4720 = vmatprep.subr.bf16.mxu0 0
        %4721 = vmatpush1.bf16.msra.mxu0 %v4649
        %4722 = vmatprep.subr.bf16.mxu0 0
        %4723 = vmatpush1.bf16.msra.mxu0 %v4650
        %4724 = vmatprep.subr.bf16.mxu0 0
        %4725 = vmatpush1.bf16.msra.mxu0 %v4651
        %4726 = vmatprep.subr.bf16.mxu0 0
        %4727 = vmatpush1.bf16.msra.mxu0 %v4652
        %4728 = vmatprep.subr.bf16.mxu0 0
        %4729 = vmatpush1.bf16.msra.mxu0 %v4653
        %4730 = vmatprep.subr.bf16.mxu0 0
        %4731 = vmatpush1.bf16.msra.mxu0 %v4654
        %4732 = vmatprep.subr.bf16.mxu0 0
        %4733 = vmatpush1.bf16.msra.mxu0 %v4655
        %4734 = vmatprep.subr.bf16.mxu0 0
        %4735 = vmatpush1.bf16.msra.mxu0 %v4656
        %4736 = vmatprep.subr.bf16.mxu0 0
        %4737 = vmatpush1.bf16.msra.mxu0 %v4657
        %4738 = vmatprep.mubr.bf16.mxu0 %v4380
        %4739 = vmatmul.mubr.bf16.gmra.mrb[0].mxu0 %v4379
        %v4740 = vpop.f32.mrb[0].mxu0
        %v4741 = vadd.f32 %v4512, %v4740
        %v4742 = vpop.f32.mrb[0].mxu0
        %v4743 = vpop.f32.mrb[0].mxu0
        %v4744 = vadd.f32 %v4512, %v4743
        %v4745 = vpop.f32.mrb[0].mxu0
        %4746 = vmatprep.mubr.bf16.mxu0 %v4384
        %4747 = vmatmul.mubr.bf16.gmra.mrb[0].mxu0 %v4383
        %v4748 = vpop.f32.mrb[0].mxu0
        %v4749 = vadd.f32 %v4512, %v4748
        %v4750 = vpop.f32.mrb[0].mxu0
        %v4751 = vpop.f32.mrb[0].mxu0
        %v4752 = vadd.f32 %v4512, %v4751
        %v4753 = vpop.f32.mrb[0].mxu0
        %4754 = vmatprep.mubr.bf16.mxu0 %v4388
        %4755 = vmatmul.mubr.bf16.gmra.mrb[0].mxu0 %v4387
        %v4756 = vpop.f32.mrb[0].mxu0
        %v4757 = vadd.f32 %v4512, %v4756
        %v4758 = vpop.f32.mrb[0].mxu0
        %v4759 = vpop.f32.mrb[0].mxu0
        %v4760 = vadd.f32 %v4512, %v4759
        %v4761 = vpop.f32.mrb[0].mxu0
        %4762 = vmatprep.mubr.bf16.mxu0 %v4392
        %4763 = vmatmul.mubr.bf16.gmra.mrb[0].mxu0 %v4391
        %v4764 = vpop.f32.mrb[0].mxu0
        %v4765 = vadd.f32 %v4512, %v4764
        %v4766 = vpop.f32.mrb[0].mxu0
        %v4767 = vpop.f32.mrb[0].mxu0
        %v4768 = vadd.f32 %v4512, %v4767
        %v4769 = vpop.f32.mrb[0].mxu0
        %4770 = vmatprep.mubr.bf16.mxu0 %v4396
        %4771 = vmatmul.mubr.bf16.gmra.mrb[0].mxu0 %v4395
        %v4772 = vpop.f32.mrb[0].mxu0
        %v4773 = vadd.f32 %v4512, %v4772
        %v4774 = vpop.f32.mrb[0].mxu0
        %v4775 = vpop.f32.mrb[0].mxu0
        %v4776 = vadd.f32 %v4512, %v4775
        %v4777 = vpop.f32.mrb[0].mxu0
        %4778 = vmatprep.mubr.bf16.mxu0 %v4400
        %4779 = vmatmul.mubr.bf16.gmra.mrb[0].mxu0 %v4399
        %v4780 = vpop.f32.mrb[0].mxu0
        %v4781 = vadd.f32 %v4512, %v4780
        %v4782 = vpop.f32.mrb[0].mxu0
        %v4783 = vpop.f32.mrb[0].mxu0
        %v4784 = vadd.f32 %v4512, %v4783
        %v4785 = vpop.f32.mrb[0].mxu0
        %4786 = vmatprep.mubr.bf16.mxu0 %v4404
        %4787 = vmatmul.mubr.bf16.gmra.mrb[0].mxu0 %v4403
        %v4788 = vpop.f32.mrb[0].mxu0
        %v4789 = vadd.f32 %v4512, %v4788
        %v4790 = vpop.f32.mrb[0].mxu0
        %v4791 = vpop.f32.mrb[0].mxu0
        %v4792 = vadd.f32 %v4512, %v4791
        %v4793 = vpop.f32.mrb[0].mxu0
        %4794 = vmatprep.mubr.bf16.mxu0 %v4408
        %4795 = vmatmul.mubr.bf16.gmra.mrb[0].mxu0 %v4407
        %v4796 = vpop.f32.mrb[0].mxu0
        %v4797 = vadd.f32 %v4512, %v4796
        %v4798 = vpop.f32.mrb[0].mxu0
        %v4799 = vpop.f32.mrb[0].mxu0
        %v4800 = vadd.f32 %v4512, %v4799
        %v4801 = vpop.f32.mrb[0].mxu0
        %4802 = vmatprep.mubr.bf16.mxu0 %v4412
        %4803 = vmatmul.mubr.bf16.gmra.mrb[0].mxu0 %v4411
        %v4804 = vpop.f32.mrb[0].mxu0
        %v4805 = vadd.f32 %v4512, %v4804
        %v4806 = vpop.f32.mrb[0].mxu0
        %v4807 = vpop.f32.mrb[0].mxu0
        %v4808 = vadd.f32 %v4512, %v4807
        %v4809 = vpop.f32.mrb[0].mxu0
        %4810 = vmatprep.mubr.bf16.mxu0 %v4416
        %4811 = vmatmul.mubr.bf16.gmra.mrb[0].mxu0 %v4415
        %v4812 = vpop.f32.mrb[0].mxu0
        %v4813 = vadd.f32 %v4512, %v4812
        %v4814 = vpop.f32.mrb[0].mxu0
        %v4815 = vpop.f32.mrb[0].mxu0
        %v4816 = vadd.f32 %v4512, %v4815
        %v4817 = vpop.f32.mrb[0].mxu0
        %4818 = vmatprep.mubr.bf16.mxu0 %v4420
        %4819 = vmatmul.mubr.bf16.gmra.mrb[0].mxu0 %v4419
        %v4820 = vpop.f32.mrb[0].mxu0
        %v4821 = vadd.f32 %v4512, %v4820
        %v4822 = vpop.f32.mrb[0].mxu0
        %v4823 = vpop.f32.mrb[0].mxu0
        %v4824 = vadd.f32 %v4512, %v4823
        %v4825 = vpop.f32.mrb[0].mxu0
        %4826 = vmatprep.mubr.bf16.mxu0 %v4424
        %4827 = vmatmul.mubr.bf16.gmra.mrb[0].mxu0 %v4423
        %v4828 = vpop.f32.mrb[0].mxu0
        %v4829 = vadd.f32 %v4512, %v4828
        %v4830 = vpop.f32.mrb[0].mxu0
        %v4831 = vpop.f32.mrb[0].mxu0
        %v4832 = vadd.f32 %v4512, %v4831
        %v4833 = vpop.f32.mrb[0].mxu0
        %4834 = vmatprep.mubr.bf16.mxu0 %v4428
        %4835 = vmatmul.mubr.bf16.gmra.mrb[0].mxu0 %v4427
        %v4836 = vpop.f32.mrb[0].mxu0
        %v4837 = vadd.f32 %v4512, %v4836
        %v4838 = vpop.f32.mrb[0].mxu0
        %v4839 = vpop.f32.mrb[0].mxu0
        %v4840 = vadd.f32 %v4512, %v4839
        %v4841 = vpop.f32.mrb[0].mxu0
        %4842 = vmatprep.mubr.bf16.mxu0 %v4432
        %4843 = vmatmul.mubr.bf16.gmra.mrb[0].mxu0 %v4431
        %v4844 = vpop.f32.mrb[0].mxu0
        %v4845 = vadd.f32 %v4512, %v4844
        %v4846 = vpop.f32.mrb[0].mxu0
        %v4847 = vpop.f32.mrb[0].mxu0
        %v4848 = vadd.f32 %v4512, %v4847
        %v4849 = vpop.f32.mrb[0].mxu0
        %4850 = vmatprep.mubr.bf16.mxu0 %v4436
        %4851 = vmatmul.mubr.bf16.gmra.mrb[0].mxu0 %v4435
        %v4852 = vpop.f32.mrb[0].mxu0
        %v4853 = vadd.f32 %v4512, %v4852
        %v4854 = vpop.f32.mrb[0].mxu0
        %v4855 = vpop.f32.mrb[0].mxu0
        %v4856 = vadd.f32 %v4512, %v4855
        %v4857 = vpop.f32.mrb[0].mxu0
        %4858 = vmatprep.mubr.bf16.mxu0 %v4440
        %4859 = vmatmul.mubr.bf16.gmra.mrb[0].mxu0 %v4439
        %v4860 = vpop.f32.mrb[0].mxu0
        %v4861 = vadd.f32 %v4512, %v4860
        %v4862 = vpop.f32.mrb[0].mxu0
        %v4863 = vpop.f32.mrb[0].mxu0
        %v4864 = vadd.f32 %v4512, %v4863
        %v4865 = vpop.f32.mrb[0].mxu0
        %4866 = vdwg.mxu0
        %4867 = vmatprep.subr.bf16.mxu0 0
        %4868 = vmatpush1.bf16.msra.mxu0 %v4658
        %4869 = vmatprep.subr.bf16.mxu0 0
        %4870 = vmatpush1.bf16.msra.mxu0 %v4659
        %4871 = vmatprep.subr.bf16.mxu0 0
        %4872 = vmatpush1.bf16.msra.mxu0 %v4660
        %4873 = vmatprep.subr.bf16.mxu0 0
        %4874 = vmatpush1.bf16.msra.mxu0 %v4661
        %4875 = vmatprep.subr.bf16.mxu0 0
        %4876 = vmatpush1.bf16.msra.mxu0 %v4662
        %4877 = vmatprep.subr.bf16.mxu0 0
        %4878 = vmatpush1.bf16.msra.mxu0 %v4663
        %4879 = vmatprep.subr.bf16.mxu0 0
        %4880 = vmatpush1.bf16.msra.mxu0 %v4664
        %4881 = vmatprep.subr.bf16.mxu0 0
        %4882 = vmatpush1.bf16.msra.mxu0 %v4665
        %4883 = vmatprep.subr.bf16.mxu0 0
        %4884 = vmatpush1.bf16.msra.mxu0 %v4666
        %4885 = vmatprep.subr.bf16.mxu0 0
        %4886 = vmatpush1.bf16.msra.mxu0 %v4667
        %4887 = vmatprep.subr.bf16.mxu0 0
        %4888 = vmatpush1.bf16.msra.mxu0 %v4668
        %4889 = vmatprep.subr.bf16.mxu0 0
        %4890 = vmatpush1.bf16.msra.mxu0 %v4669
        %4891 = vmatprep.subr.bf16.mxu0 0
        %4892 = vmatpush1.bf16.msra.mxu0 %v4670
        %4893 = vmatprep.subr.bf16.mxu0 0
        %4894 = vmatpush1.bf16.msra.mxu0 %v4671
        %4895 = vmatprep.subr.bf16.mxu0 0
        %4896 = vmatpush1.bf16.msra.mxu0 %v4672
        %4897 = vmatprep.subr.bf16.mxu0 0
        %4898 = vmatpush1.bf16.msra.mxu0 %v4673
        %4899 = vmatprep.mubr.bf16.mxu0 %v4382
        %4900 = vmatmul.mubr.bf16.gmra.mrb[0].mxu0 %v4381
        %v4901 = vpop.f32.mrb[0].mxu0
        %v4902 = vadd.f32 %v4741, %v4901
        %v4903 = vpop.f32.mrb[0].mxu0
        %v4904 = vpop.f32.mrb[0].mxu0
        %v4905 = vadd.f32 %v4744, %v4904
        %v4906 = vpop.f32.mrb[0].mxu0
        %4907 = vmatprep.mubr.bf16.mxu0 %v4386
        %4908 = vmatmul.mubr.bf16.gmra.mrb[0].mxu0 %v4385
        %v4909 = vpop.f32.mrb[0].mxu0
        %v4910 = vadd.f32 %v4749, %v4909
        %v4911 = vpop.f32.mrb[0].mxu0
        %v4912 = vpop.f32.mrb[0].mxu0
        %v4913 = vadd.f32 %v4752, %v4912
        %v4914 = vpop.f32.mrb[0].mxu0
        %4915 = vmatprep.mubr.bf16.mxu0 %v4390
        %4916 = vmatmul.mubr.bf16.gmra.mrb[0].mxu0 %v4389
        %v4917 = vpop.f32.mrb[0].mxu0
        %v4918 = vadd.f32 %v4757, %v4917
        %v4919 = vpop.f32.mrb[0].mxu0
        %v4920 = vpop.f32.mrb[0].mxu0
        %v4921 = vadd.f32 %v4760, %v4920
        %v4922 = vpop.f32.mrb[0].mxu0
        %4923 = vmatprep.mubr.bf16.mxu0 %v4394
        %4924 = vmatmul.mubr.bf16.gmra.mrb[0].mxu0 %v4393
        %v4925 = vpop.f32.mrb[0].mxu0
        %v4926 = vadd.f32 %v4765, %v4925
        %v4927 = vpop.f32.mrb[0].mxu0
        %v4928 = vpop.f32.mrb[0].mxu0
        %v4929 = vadd.f32 %v4768, %v4928
        %v4930 = vpop.f32.mrb[0].mxu0
        %4931 = vmatprep.mubr.bf16.mxu0 %v4398
        %4932 = vmatmul.mubr.bf16.gmra.mrb[0].mxu0 %v4397
        %v4933 = vpop.f32.mrb[0].mxu0
        %v4934 = vadd.f32 %v4773, %v4933
        %v4935 = vpop.f32.mrb[0].mxu0
        %v4936 = vpop.f32.mrb[0].mxu0
        %v4937 = vadd.f32 %v4776, %v4936
        %v4938 = vpop.f32.mrb[0].mxu0
        %4939 = vmatprep.mubr.bf16.mxu0 %v4402
        %4940 = vmatmul.mubr.bf16.gmra.mrb[0].mxu0 %v4401
        %v4941 = vpop.f32.mrb[0].mxu0
        %v4942 = vadd.f32 %v4781, %v4941
        %v4943 = vpop.f32.mrb[0].mxu0
        %v4944 = vpop.f32.mrb[0].mxu0
        %v4945 = vadd.f32 %v4784, %v4944
        %v4946 = vpop.f32.mrb[0].mxu0
        %4947 = vmatprep.mubr.bf16.mxu0 %v4406
        %4948 = vmatmul.mubr.bf16.gmra.mrb[0].mxu0 %v4405
        %v4949 = vpop.f32.mrb[0].mxu0
        %v4950 = vadd.f32 %v4789, %v4949
        %v4951 = vpop.f32.mrb[0].mxu0
        %v4952 = vpop.f32.mrb[0].mxu0
        %v4953 = vadd.f32 %v4792, %v4952
        %v4954 = vpop.f32.mrb[0].mxu0
        %4955 = vmatprep.mubr.bf16.mxu0 %v4410
        %4956 = vmatmul.mubr.bf16.gmra.mrb[0].mxu0 %v4409
        %v4957 = vpop.f32.mrb[0].mxu0
        %v4958 = vadd.f32 %v4797, %v4957
        %v4959 = vpop.f32.mrb[0].mxu0
        %v4960 = vpop.f32.mrb[0].mxu0
        %v4961 = vadd.f32 %v4800, %v4960
        %v4962 = vpop.f32.mrb[0].mxu0
        %4963 = vmatprep.mubr.bf16.mxu0 %v4414
        %4964 = vmatmul.mubr.bf16.gmra.mrb[0].mxu0 %v4413
        %v4965 = vpop.f32.mrb[0].mxu0
        %v4966 = vadd.f32 %v4805, %v4965
        %v4967 = vpop.f32.mrb[0].mxu0
        %v4968 = vpop.f32.mrb[0].mxu0
        %v4969 = vadd.f32 %v4808, %v4968
        %v4970 = vpop.f32.mrb[0].mxu0
        %4971 = vmatprep.mubr.bf16.mxu0 %v4418
        %4972 = vmatmul.mubr.bf16.gmra.mrb[0].mxu0 %v4417
        %v4973 = vpop.f32.mrb[0].mxu0
        %v4974 = vadd.f32 %v4813, %v4973
        %v4975 = vpop.f32.mrb[0].mxu0
        %v4976 = vpop.f32.mrb[0].mxu0
        %v4977 = vadd.f32 %v4816, %v4976
        %v4978 = vpop.f32.mrb[0].mxu0
        %4979 = vmatprep.mubr.bf16.mxu0 %v4422
        %4980 = vmatmul.mubr.bf16.gmra.mrb[0].mxu0 %v4421
        %v4981 = vpop.f32.mrb[0].mxu0
        %v4982 = vadd.f32 %v4821, %v4981
        %v4983 = vpop.f32.mrb[0].mxu0
        %v4984 = vpop.f32.mrb[0].mxu0
        %v4985 = vadd.f32 %v4824, %v4984
        %v4986 = vpop.f32.mrb[0].mxu0
        %4987 = vmatprep.mubr.bf16.mxu0 %v4426
        %4988 = vmatmul.mubr.bf16.gmra.mrb[0].mxu0 %v4425
        %v4989 = vpop.f32.mrb[0].mxu0
        %v4990 = vadd.f32 %v4829, %v4989
        %v4991 = vpop.f32.mrb[0].mxu0
        %v4992 = vpop.f32.mrb[0].mxu0
        %v4993 = vadd.f32 %v4832, %v4992
        %v4994 = vpop.f32.mrb[0].mxu0
        %4995 = vmatprep.mubr.bf16.mxu0 %v4430
        %4996 = vmatmul.mubr.bf16.gmra.mrb[0].mxu0 %v4429
        %v4997 = vpop.f32.mrb[0].mxu0
        %v4998 = vadd.f32 %v4837, %v4997
        %v4999 = vpop.f32.mrb[0].mxu0
        %v5000 = vpop.f32.mrb[0].mxu0
        %v5001 = vadd.f32 %v4840, %v5000
        %v5002 = vpop.f32.mrb[0].mxu0
        %5003 = vmatprep.mubr.bf16.mxu0 %v4434
        %5004 = vmatmul.mubr.bf16.gmra.mrb[0].mxu0 %v4433
        %v5005 = vpop.f32.mrb[0].mxu0
        %v5006 = vadd.f32 %v4845, %v5005
        %v5007 = vpop.f32.mrb[0].mxu0
        %v5008 = vpop.f32.mrb[0].mxu0
        %v5009 = vadd.f32 %v4848, %v5008
        %v5010 = vpop.f32.mrb[0].mxu0
        %5011 = vmatprep.mubr.bf16.mxu0 %v4438
        %5012 = vmatmul.mubr.bf16.gmra.mrb[0].mxu0 %v4437
        %v5013 = vpop.f32.mrb[0].mxu0
        %v5014 = vadd.f32 %v4853, %v5013
        %v5015 = vpop.f32.mrb[0].mxu0
        %v5016 = vpop.f32.mrb[0].mxu0
        %v5017 = vadd.f32 %v4856, %v5016
        %v5018 = vpop.f32.mrb[0].mxu0
        %5019 = vmatprep.mubr.bf16.mxu0 %v4442
        %5020 = vmatmul.mubr.bf16.gmra.mrb[0].mxu0 %v4441
        %v5021 = vpop.f32.mrb[0].mxu0
        %v5022 = vadd.f32 %v4861, %v5021
        %v5023 = vpop.f32.mrb[0].mxu0
        %v5024 = vpop.f32.mrb[0].mxu0
        %v5025 = vadd.f32 %v4864, %v5024
        %v5026 = vpop.f32.mrb[0].mxu0
        %5027 = vdwg.mxu0
        %v5028 = vmul.f32 %v4902, 0.5
        %v5029 = vmul.f32 %v4905, 0.5
        %v5030 = vmul.f32 %v4910, 0.5
        %v5031 = vmul.f32 %v4913, 0.5
        %v5032 = vmul.f32 %v4918, 0.5
        %v5033 = vmul.f32 %v4921, 0.5
        %v5034 = vmul.f32 %v4926, 0.5
        %v5035 = vmul.f32 %v4929, 0.5
        %v5036 = vmul.f32 %v4934, 0.5
        %v5037 = vmul.f32 %v4937, 0.5
        %v5038 = vmul.f32 %v4942, 0.5
        %v5039 = vmul.f32 %v4945, 0.5
        %v5040 = vmul.f32 %v4950, 0.5
        %v5041 = vmul.f32 %v4953, 0.5
        %v5042 = vmul.f32 %v4958, 0.5
        %v5043 = vmul.f32 %v4961, 0.5
        %v5044 = vmul.f32 %v4966, 0.5
        %v5045 = vmul.f32 %v4969, 0.5
        %v5046 = vmul.f32 %v4974, 0.5
        %v5047 = vmul.f32 %v4977, 0.5
        %v5048 = vmul.f32 %v4982, 0.5
        %v5049 = vmul.f32 %v4985, 0.5
        %v5050 = vmul.f32 %v4990, 0.5
        %v5051 = vmul.f32 %v4993, 0.5
        %v5052 = vmul.f32 %v4998, 0.5
        %v5053 = vmul.f32 %v5001, 0.5
        %v5054 = vmul.f32 %v5006, 0.5
        %v5055 = vmul.f32 %v5009, 0.5
        %v5056 = vmul.f32 %v5014, 0.5
        %v5057 = vmul.f32 %v5017, 0.5
        %v5058 = vmul.f32 %v5022, 0.5
        %v5059 = vmul.f32 %v5025, 0.5
        %v5060 = vmul.f32 %v4902, 0.70710677
        %v5061 = vmul.f32 %v4905, 0.70710677
        %v5062 = vmul.f32 %v4910, 0.70710677
        %v5063 = vmul.f32 %v4913, 0.70710677
        %v5064 = vmul.f32 %v4918, 0.70710677
        %v5065 = vmul.f32 %v4921, 0.70710677
        %v5066 = vmul.f32 %v4926, 0.70710677
        %v5067 = vmul.f32 %v4929, 0.70710677
        %v5068 = vmul.f32 %v4934, 0.70710677
        %v5069 = vmul.f32 %v4937, 0.70710677
        %v5070 = vmul.f32 %v4942, 0.70710677
        %v5071 = vmul.f32 %v4945, 0.70710677
        %v5072 = vmul.f32 %v4950, 0.70710677
        %v5073 = vmul.f32 %v4953, 0.70710677
        %v5074 = vmul.f32 %v4958, 0.70710677
        %v5075 = vmul.f32 %v4961, 0.70710677
        %v5076 = vmul.f32 %v4966, 0.70710677
        %v5077 = vmul.f32 %v4969, 0.70710677
        %v5078 = vmul.f32 %v4974, 0.70710677
        %v5079 = vmul.f32 %v4977, 0.70710677
        %v5080 = vmul.f32 %v4982, 0.70710677
        %v5081 = vmul.f32 %v4985, 0.70710677
        %v5082 = vmul.f32 %v4990, 0.70710677
        %v5083 = vmul.f32 %v4993, 0.70710677
        %v5084 = vmul.f32 %v4998, 0.70710677
        %v5085 = vmul.f32 %v5001, 0.70710677
        %v5086 = vmul.f32 %v5006, 0.70710677
        %v5087 = vmul.f32 %v5009, 0.70710677
        %v5088 = vmul.f32 %v5014, 0.70710677
        %v5089 = vmul.f32 %v5017, 0.70710677
        %v5090 = vmul.f32 %v5022, 0.70710677
        %v5091 = vmul.f32 %v5025, 0.70710677
        %v5092 = vand.u32 2147483647, %v5060
        %v5093 = vand.u32 2147483647, %v5061
        %v5094 = vand.u32 2147483647, %v5062
        %v5095 = vand.u32 2147483647, %v5063
        %v5096 = vand.u32 2147483647, %v5064
        %v5097 = vand.u32 2147483647, %v5065
        %v5098 = vand.u32 2147483647, %v5066
        %v5099 = vand.u32 2147483647, %v5067
        %v5100 = vand.u32 2147483647, %v5068
        %v5101 = vand.u32 2147483647, %v5069
        %v5102 = vand.u32 2147483647, %v5070
        %v5103 = vand.u32 2147483647, %v5071
        %v5104 = vand.u32 2147483647, %v5072
        %v5105 = vand.u32 2147483647, %v5073
        %v5106 = vand.u32 2147483647, %v5074
        %v5107 = vand.u32 2147483647, %v5075
        %v5108 = vand.u32 2147483647, %v5076
        %v5109 = vand.u32 2147483647, %v5077
        %v5110 = vand.u32 2147483647, %v5078
        %v5111 = vand.u32 2147483647, %v5079
        %v5112 = vand.u32 2147483647, %v5080
        %v5113 = vand.u32 2147483647, %v5081
        %v5114 = vand.u32 2147483647, %v5082
        %v5115 = vand.u32 2147483647, %v5083
        %v5116 = vand.u32 2147483647, %v5084
        %v5117 = vand.u32 2147483647, %v5085
        %v5118 = vand.u32 2147483647, %v5086
        %v5119 = vand.u32 2147483647, %v5087
        %v5120 = vand.u32 2147483647, %v5088
        %v5121 = vand.u32 2147483647, %v5089
        %v5122 = vand.u32 2147483647, %v5090
        %v5123 = vand.u32 2147483647, %v5091
        %v5124 = vmul.f32 %v5092, 0.3275911
        %v5125 = vmul.f32 %v5093, 0.3275911
        %v5126 = vmul.f32 %v5094, 0.3275911
        %v5127 = vmul.f32 %v5095, 0.3275911
        %v5128 = vmul.f32 %v5096, 0.3275911
        %v5129 = vmul.f32 %v5097, 0.3275911
        %v5130 = vmul.f32 %v5098, 0.3275911
        %v5131 = vmul.f32 %v5099, 0.3275911
        %v5132 = vmul.f32 %v5100, 0.3275911
        %v5133 = vmul.f32 %v5101, 0.3275911
        %v5134 = vmul.f32 %v5102, 0.3275911
        %v5135 = vmul.f32 %v5103, 0.3275911
        %v5136 = vmul.f32 %v5104, 0.3275911
        %v5137 = vmul.f32 %v5105, 0.3275911
        %v5138 = vmul.f32 %v5106, 0.3275911
        %v5139 = vmul.f32 %v5107, 0.3275911
        %v5140 = vmul.f32 %v5108, 0.3275911
        %v5141 = vmul.f32 %v5109, 0.3275911
        %v5142 = vmul.f32 %v5110, 0.3275911
        %v5143 = vmul.f32 %v5111, 0.3275911
        %v5144 = vmul.f32 %v5112, 0.3275911
        %v5145 = vmul.f32 %v5113, 0.3275911
        %v5146 = vmul.f32 %v5114, 0.3275911
        %v5147 = vmul.f32 %v5115, 0.3275911
        %v5148 = vmul.f32 %v5116, 0.3275911
        %v5149 = vmul.f32 %v5117, 0.3275911
        %v5150 = vmul.f32 %v5118, 0.3275911
        %v5151 = vmul.f32 %v5119, 0.3275911
        %v5152 = vmul.f32 %v5120, 0.3275911
        %v5153 = vmul.f32 %v5121, 0.3275911
        %v5154 = vmul.f32 %v5122, 0.3275911
        %v5155 = vmul.f32 %v5123, 0.3275911
        %v5156 = vadd.f32 %v5124, 1.0
        %v5157 = vadd.f32 %v5125, 1.0
        %v5158 = vadd.f32 %v5126, 1.0
        %v5159 = vadd.f32 %v5127, 1.0
        %v5160 = vadd.f32 %v5128, 1.0
        %v5161 = vadd.f32 %v5129, 1.0
        %v5162 = vadd.f32 %v5130, 1.0
        %v5163 = vadd.f32 %v5131, 1.0
        %v5164 = vadd.f32 %v5132, 1.0
        %v5165 = vadd.f32 %v5133, 1.0
        %v5166 = vadd.f32 %v5134, 1.0
        %v5167 = vadd.f32 %v5135, 1.0
        %v5168 = vadd.f32 %v5136, 1.0
        %v5169 = vadd.f32 %v5137, 1.0
        %v5170 = vadd.f32 %v5138, 1.0
        %v5171 = vadd.f32 %v5139, 1.0
        %v5172 = vadd.f32 %v5140, 1.0
        %v5173 = vadd.f32 %v5141, 1.0
        %v5174 = vadd.f32 %v5142, 1.0
        %v5175 = vadd.f32 %v5143, 1.0
        %v5176 = vadd.f32 %v5144, 1.0
        %v5177 = vadd.f32 %v5145, 1.0
        %v5178 = vadd.f32 %v5146, 1.0
        %v5179 = vadd.f32 %v5147, 1.0
        %v5180 = vadd.f32 %v5148, 1.0
        %v5181 = vadd.f32 %v5149, 1.0
        %v5182 = vadd.f32 %v5150, 1.0
        %v5183 = vadd.f32 %v5151, 1.0
        %v5184 = vadd.f32 %v5152, 1.0
        %v5185 = vadd.f32 %v5153, 1.0
        %v5186 = vadd.f32 %v5154, 1.0
        %v5187 = vadd.f32 %v5155, 1.0
        %v5188 = vrcp.pop %v5156
        %v5189 = vmul.f32 1.0, %v5188
        %v5190 = vrcp.pop %v5157
        %v5191 = vmul.f32 1.0, %v5190
        %v5192 = vrcp.pop %v5158
        %v5193 = vmul.f32 1.0, %v5192
        %v5194 = vrcp.pop %v5159
        %v5195 = vmul.f32 1.0, %v5194
        %v5196 = vrcp.pop %v5160
        %v5197 = vmul.f32 1.0, %v5196
        %v5198 = vrcp.pop %v5161
        %v5199 = vmul.f32 1.0, %v5198
        %v5200 = vrcp.pop %v5162
        %v5201 = vmul.f32 1.0, %v5200
        %v5202 = vrcp.pop %v5163
        %v5203 = vmul.f32 1.0, %v5202
        %v5204 = vrcp.pop %v5164
        %v5205 = vmul.f32 1.0, %v5204
        %v5206 = vrcp.pop %v5165
        %v5207 = vmul.f32 1.0, %v5206
        %v5208 = vrcp.pop %v5166
        %v5209 = vmul.f32 1.0, %v5208
        %v5210 = vrcp.pop %v5167
        %v5211 = vmul.f32 1.0, %v5210
        %v5212 = vrcp.pop %v5168
        %v5213 = vmul.f32 1.0, %v5212
        %v5214 = vrcp.pop %v5169
        %v5215 = vmul.f32 1.0, %v5214
        %v5216 = vrcp.pop %v5170
        %v5217 = vmul.f32 1.0, %v5216
        %v5218 = vrcp.pop %v5171
        %v5219 = vmul.f32 1.0, %v5218
        %v5220 = vrcp.pop %v5172
        %v5221 = vmul.f32 1.0, %v5220
        %v5222 = vrcp.pop %v5173
        %v5223 = vmul.f32 1.0, %v5222
        %v5224 = vrcp.pop %v5174
        %v5225 = vmul.f32 1.0, %v5224
        %v5226 = vrcp.pop %v5175
        %v5227 = vmul.f32 1.0, %v5226
        %v5228 = vrcp.pop %v5176
        %v5229 = vmul.f32 1.0, %v5228
        %v5230 = vrcp.pop %v5177
        %v5231 = vmul.f32 1.0, %v5230
        %v5232 = vrcp.pop %v5178
        %v5233 = vmul.f32 1.0, %v5232
        %v5234 = vrcp.pop %v5179
        %v5235 = vmul.f32 1.0, %v5234
        %v5236 = vrcp.pop %v5180
        %v5237 = vmul.f32 1.0, %v5236
        %v5238 = vrcp.pop %v5181
        %v5239 = vmul.f32 1.0, %v5238
        %v5240 = vrcp.pop %v5182
        %v5241 = vmul.f32 1.0, %v5240
        %v5242 = vrcp.pop %v5183
        %v5243 = vmul.f32 1.0, %v5242
        %v5244 = vrcp.pop %v5184
        %v5245 = vmul.f32 1.0, %v5244
        %v5246 = vrcp.pop %v5185
        %v5247 = vmul.f32 1.0, %v5246
        %v5248 = vrcp.pop %v5186
        %v5249 = vmul.f32 1.0, %v5248
        %v5250 = vrcp.pop %v5187
        %v5251 = vmul.f32 1.0, %v5250
        %v5252 = vmul.f32 %v5189, 1.0614054
        %v5253 = vmul.f32 %v5191, 1.0614054
        %v5254 = vmul.f32 %v5193, 1.0614054
        %v5255 = vmul.f32 %v5195, 1.0614054
        %v5256 = vmul.f32 %v5197, 1.0614054
        %v5257 = vmul.f32 %v5199, 1.0614054
        %v5258 = vmul.f32 %v5201, 1.0614054
        %v5259 = vmul.f32 %v5203, 1.0614054
        %v5260 = vmul.f32 %v5205, 1.0614054
        %v5261 = vmul.f32 %v5207, 1.0614054
        %v5262 = vmul.f32 %v5209, 1.0614054
        %v5263 = vmul.f32 %v5211, 1.0614054
        %v5264 = vmul.f32 %v5213, 1.0614054
        %v5265 = vmul.f32 %v5215, 1.0614054
        %v5266 = vmul.f32 %v5217, 1.0614054
        %v5267 = vmul.f32 %v5219, 1.0614054
        %v5268 = vmul.f32 %v5221, 1.0614054
        %v5269 = vmul.f32 %v5223, 1.0614054
        %v5270 = vmul.f32 %v5225, 1.0614054
        %v5271 = vmul.f32 %v5227, 1.0614054
        %v5272 = vmul.f32 %v5229, 1.0614054
        %v5273 = vmul.f32 %v5231, 1.0614054
        %v5274 = vmul.f32 %v5233, 1.0614054
        %v5275 = vmul.f32 %v5235, 1.0614054
        %v5276 = vmul.f32 %v5237, 1.0614054
        %v5277 = vmul.f32 %v5239, 1.0614054
        %v5278 = vmul.f32 %v5241, 1.0614054
        %v5279 = vmul.f32 %v5243, 1.0614054
        %v5280 = vmul.f32 %v5245, 1.0614054
        %v5281 = vmul.f32 %v5247, 1.0614054
        %v5282 = vmul.f32 %v5249, 1.0614054
        %v5283 = vmul.f32 %v5251, 1.0614054
        %v5284 = vadd.f32 %v5252, -1.4531521
        %v5285 = vadd.f32 %v5253, -1.4531521
        %v5286 = vadd.f32 %v5254, -1.4531521
        %v5287 = vadd.f32 %v5255, -1.4531521
        %v5288 = vadd.f32 %v5256, -1.4531521
        %v5289 = vadd.f32 %v5257, -1.4531521
        %v5290 = vadd.f32 %v5258, -1.4531521
        %v5291 = vadd.f32 %v5259, -1.4531521
        %v5292 = vadd.f32 %v5260, -1.4531521
        %v5293 = vadd.f32 %v5261, -1.4531521
        %v5294 = vadd.f32 %v5262, -1.4531521
        %v5295 = vadd.f32 %v5263, -1.4531521
        %v5296 = vadd.f32 %v5264, -1.4531521
        %v5297 = vadd.f32 %v5265, -1.4531521
        %v5298 = vadd.f32 %v5266, -1.4531521
        %v5299 = vadd.f32 %v5267, -1.4531521
        %v5300 = vadd.f32 %v5268, -1.4531521
        %v5301 = vadd.f32 %v5269, -1.4531521
        %v5302 = vadd.f32 %v5270, -1.4531521
        %v5303 = vadd.f32 %v5271, -1.4531521
        %v5304 = vadd.f32 %v5272, -1.4531521
        %v5305 = vadd.f32 %v5273, -1.4531521
        %v5306 = vadd.f32 %v5274, -1.4531521
        %v5307 = vadd.f32 %v5275, -1.4531521
        %v5308 = vadd.f32 %v5276, -1.4531521
        %v5309 = vadd.f32 %v5277, -1.4531521
        %v5310 = vadd.f32 %v5278, -1.4531521
        %v5311 = vadd.f32 %v5279, -1.4531521
        %v5312 = vadd.f32 %v5280, -1.4531521
        %v5313 = vadd.f32 %v5281, -1.4531521
        %v5314 = vadd.f32 %v5282, -1.4531521
        %v5315 = vadd.f32 %v5283, -1.4531521
        %v5316 = vmul.f32 %v5284, %v5189
        %v5317 = vmul.f32 %v5285, %v5191
        %v5318 = vmul.f32 %v5286, %v5193
        %v5319 = vmul.f32 %v5287, %v5195
        %v5320 = vmul.f32 %v5288, %v5197
        %v5321 = vmul.f32 %v5289, %v5199
        %v5322 = vmul.f32 %v5290, %v5201
        %v5323 = vmul.f32 %v5291, %v5203
        %v5324 = vmul.f32 %v5292, %v5205
        %v5325 = vmul.f32 %v5293, %v5207
        %v5326 = vmul.f32 %v5294, %v5209
        %v5327 = vmul.f32 %v5295, %v5211
        %v5328 = vmul.f32 %v5296, %v5213
        %v5329 = vmul.f32 %v5297, %v5215
        %v5330 = vmul.f32 %v5298, %v5217
        %v5331 = vmul.f32 %v5299, %v5219
        %v5332 = vmul.f32 %v5300, %v5221
        %v5333 = vmul.f32 %v5301, %v5223
        %v5334 = vmul.f32 %v5302, %v5225
        %v5335 = vmul.f32 %v5303, %v5227
        %v5336 = vmul.f32 %v5304, %v5229
        %v5337 = vmul.f32 %v5305, %v5231
        %v5338 = vmul.f32 %v5306, %v5233
        %v5339 = vmul.f32 %v5307, %v5235
        %v5340 = vmul.f32 %v5308, %v5237
        %v5341 = vmul.f32 %v5309, %v5239
        %v5342 = vmul.f32 %v5310, %v5241
        %v5343 = vmul.f32 %v5311, %v5243
        %v5344 = vmul.f32 %v5312, %v5245
        %v5345 = vmul.f32 %v5313, %v5247
        %v5346 = vmul.f32 %v5314, %v5249
        %v5347 = vmul.f32 %v5315, %v5251
        %v5348 = vadd.f32 %v5316, 1.4214138
        %v5349 = vadd.f32 %v5317, 1.4214138
        %v5350 = vadd.f32 %v5318, 1.4214138
        %v5351 = vadd.f32 %v5319, 1.4214138
        %v5352 = vadd.f32 %v5320, 1.4214138
        %v5353 = vadd.f32 %v5321, 1.4214138
        %v5354 = vadd.f32 %v5322, 1.4214138
        %v5355 = vadd.f32 %v5323, 1.4214138
        %v5356 = vadd.f32 %v5324, 1.4214138
        %v5357 = vadd.f32 %v5325, 1.4214138
        %v5358 = vadd.f32 %v5326, 1.4214138
        %v5359 = vadd.f32 %v5327, 1.4214138
        %v5360 = vadd.f32 %v5328, 1.4214138
        %v5361 = vadd.f32 %v5329, 1.4214138
        %v5362 = vadd.f32 %v5330, 1.4214138
        %v5363 = vadd.f32 %v5331, 1.4214138
        %v5364 = vadd.f32 %v5332, 1.4214138
        %v5365 = vadd.f32 %v5333, 1.4214138
        %v5366 = vadd.f32 %v5334, 1.4214138
        %v5367 = vadd.f32 %v5335, 1.4214138
        %v5368 = vadd.f32 %v5336, 1.4214138
        %v5369 = vadd.f32 %v5337, 1.4214138
        %v5370 = vadd.f32 %v5338, 1.4214138
        %v5371 = vadd.f32 %v5339, 1.4214138
        %v5372 = vadd.f32 %v5340, 1.4214138
        %v5373 = vadd.f32 %v5341, 1.4214138
        %v5374 = vadd.f32 %v5342, 1.4214138
        %v5375 = vadd.f32 %v5343, 1.4214138
        %v5376 = vadd.f32 %v5344, 1.4214138
        %v5377 = vadd.f32 %v5345, 1.4214138
        %v5378 = vadd.f32 %v5346, 1.4214138
        %v5379 = vadd.f32 %v5347, 1.4214138
        %v5380 = vmul.f32 %v5348, %v5189
        %v5381 = vmul.f32 %v5349, %v5191
        %v5382 = vmul.f32 %v5350, %v5193
        %v5383 = vmul.f32 %v5351, %v5195
        %v5384 = vmul.f32 %v5352, %v5197
        %v5385 = vmul.f32 %v5353, %v5199
        %v5386 = vmul.f32 %v5354, %v5201
        %v5387 = vmul.f32 %v5355, %v5203
        %v5388 = vmul.f32 %v5356, %v5205
        %v5389 = vmul.f32 %v5357, %v5207
        %v5390 = vmul.f32 %v5358, %v5209
        %v5391 = vmul.f32 %v5359, %v5211
        %v5392 = vmul.f32 %v5360, %v5213
        %v5393 = vmul.f32 %v5361, %v5215
        %v5394 = vmul.f32 %v5362, %v5217
        %v5395 = vmul.f32 %v5363, %v5219
        %v5396 = vmul.f32 %v5364, %v5221
        %v5397 = vmul.f32 %v5365, %v5223
        %v5398 = vmul.f32 %v5366, %v5225
        %v5399 = vmul.f32 %v5367, %v5227
        %v5400 = vmul.f32 %v5368, %v5229
        %v5401 = vmul.f32 %v5369, %v5231
        %v5402 = vmul.f32 %v5370, %v5233
        %v5403 = vmul.f32 %v5371, %v5235
        %v5404 = vmul.f32 %v5372, %v5237
        %v5405 = vmul.f32 %v5373, %v5239
        %v5406 = vmul.f32 %v5374, %v5241
        %v5407 = vmul.f32 %v5375, %v5243
        %v5408 = vmul.f32 %v5376, %v5245
        %v5409 = vmul.f32 %v5377, %v5247
        %v5410 = vmul.f32 %v5378, %v5249
        %v5411 = vmul.f32 %v5379, %v5251
        %v5412 = vadd.f32 %v5380, -0.28449672
        %v5413 = vadd.f32 %v5381, -0.28449672
        %v5414 = vadd.f32 %v5382, -0.28449672
        %v5415 = vadd.f32 %v5383, -0.28449672
        %v5416 = vadd.f32 %v5384, -0.28449672
        %v5417 = vadd.f32 %v5385, -0.28449672
        %v5418 = vadd.f32 %v5386, -0.28449672
        %v5419 = vadd.f32 %v5387, -0.28449672
        %v5420 = vadd.f32 %v5388, -0.28449672
        %v5421 = vadd.f32 %v5389, -0.28449672
        %v5422 = vadd.f32 %v5390, -0.28449672
        %v5423 = vadd.f32 %v5391, -0.28449672
        %v5424 = vadd.f32 %v5392, -0.28449672
        %v5425 = vadd.f32 %v5393, -0.28449672
        %v5426 = vadd.f32 %v5394, -0.28449672
        %v5427 = vadd.f32 %v5395, -0.28449672
        %v5428 = vadd.f32 %v5396, -0.28449672
        %v5429 = vadd.f32 %v5397, -0.28449672
        %v5430 = vadd.f32 %v5398, -0.28449672
        %v5431 = vadd.f32 %v5399, -0.28449672
        %v5432 = vadd.f32 %v5400, -0.28449672
        %v5433 = vadd.f32 %v5401, -0.28449672
        %v5434 = vadd.f32 %v5402, -0.28449672
        %v5435 = vadd.f32 %v5403, -0.28449672
        %v5436 = vadd.f32 %v5404, -0.28449672
        %v5437 = vadd.f32 %v5405, -0.28449672
        %v5438 = vadd.f32 %v5406, -0.28449672
        %v5439 = vadd.f32 %v5407, -0.28449672
        %v5440 = vadd.f32 %v5408, -0.28449672
        %v5441 = vadd.f32 %v5409, -0.28449672
        %v5442 = vadd.f32 %v5410, -0.28449672
        %v5443 = vadd.f32 %v5411, -0.28449672
        %v5444 = vmul.f32 %v5412, %v5189
        %v5445 = vmul.f32 %v5413, %v5191
        %v5446 = vmul.f32 %v5414, %v5193
        %v5447 = vmul.f32 %v5415, %v5195
        %v5448 = vmul.f32 %v5416, %v5197
        %v5449 = vmul.f32 %v5417, %v5199
        %v5450 = vmul.f32 %v5418, %v5201
        %v5451 = vmul.f32 %v5419, %v5203
        %v5452 = vmul.f32 %v5420, %v5205
        %v5453 = vmul.f32 %v5421, %v5207
        %v5454 = vmul.f32 %v5422, %v5209
        %v5455 = vmul.f32 %v5423, %v5211
        %v5456 = vmul.f32 %v5424, %v5213
        %v5457 = vmul.f32 %v5425, %v5215
        %v5458 = vmul.f32 %v5426, %v5217
        %v5459 = vmul.f32 %v5427, %v5219
        %v5460 = vmul.f32 %v5428, %v5221
        %v5461 = vmul.f32 %v5429, %v5223
        %v5462 = vmul.f32 %v5430, %v5225
        %v5463 = vmul.f32 %v5431, %v5227
        %v5464 = vmul.f32 %v5432, %v5229
        %v5465 = vmul.f32 %v5433, %v5231
        %v5466 = vmul.f32 %v5434, %v5233
        %v5467 = vmul.f32 %v5435, %v5235
        %v5468 = vmul.f32 %v5436, %v5237
        %v5469 = vmul.f32 %v5437, %v5239
        %v5470 = vmul.f32 %v5438, %v5241
        %v5471 = vmul.f32 %v5439, %v5243
        %v5472 = vmul.f32 %v5440, %v5245
        %v5473 = vmul.f32 %v5441, %v5247
        %v5474 = vmul.f32 %v5442, %v5249
        %v5475 = vmul.f32 %v5443, %v5251
        %v5476 = vadd.f32 %v5444, 0.2548296
        %v5477 = vadd.f32 %v5445, 0.2548296
        %v5478 = vadd.f32 %v5446, 0.2548296
        %v5479 = vadd.f32 %v5447, 0.2548296
        %v5480 = vadd.f32 %v5448, 0.2548296
        %v5481 = vadd.f32 %v5449, 0.2548296
        %v5482 = vadd.f32 %v5450, 0.2548296
        %v5483 = vadd.f32 %v5451, 0.2548296
        %v5484 = vadd.f32 %v5452, 0.2548296
        %v5485 = vadd.f32 %v5453, 0.2548296
        %v5486 = vadd.f32 %v5454, 0.2548296
        %v5487 = vadd.f32 %v5455, 0.2548296
        %v5488 = vadd.f32 %v5456, 0.2548296
        %v5489 = vadd.f32 %v5457, 0.2548296
        %v5490 = vadd.f32 %v5458, 0.2548296
        %v5491 = vadd.f32 %v5459, 0.2548296
        %v5492 = vadd.f32 %v5460, 0.2548296
        %v5493 = vadd.f32 %v5461, 0.2548296
        %v5494 = vadd.f32 %v5462, 0.2548296
        %v5495 = vadd.f32 %v5463, 0.2548296
        %v5496 = vadd.f32 %v5464, 0.2548296
        %v5497 = vadd.f32 %v5465, 0.2548296
        %v5498 = vadd.f32 %v5466, 0.2548296
        %v5499 = vadd.f32 %v5467, 0.2548296
        %v5500 = vadd.f32 %v5468, 0.2548296
        %v5501 = vadd.f32 %v5469, 0.2548296
        %v5502 = vadd.f32 %v5470, 0.2548296
        %v5503 = vadd.f32 %v5471, 0.2548296
        %v5504 = vadd.f32 %v5472, 0.2548296
        %v5505 = vadd.f32 %v5473, 0.2548296
        %v5506 = vadd.f32 %v5474, 0.2548296
        %v5507 = vadd.f32 %v5475, 0.2548296
        %v5508 = vmul.f32 %v5476, %v5189
        %v5509 = vmul.f32 %v5477, %v5191
        %v5510 = vmul.f32 %v5478, %v5193
        %v5511 = vmul.f32 %v5479, %v5195
        %v5512 = vmul.f32 %v5480, %v5197
        %v5513 = vmul.f32 %v5481, %v5199
        %v5514 = vmul.f32 %v5482, %v5201
        %v5515 = vmul.f32 %v5483, %v5203
        %v5516 = vmul.f32 %v5484, %v5205
        %v5517 = vmul.f32 %v5485, %v5207
        %v5518 = vmul.f32 %v5486, %v5209
        %v5519 = vmul.f32 %v5487, %v5211
        %v5520 = vmul.f32 %v5488, %v5213
        %v5521 = vmul.f32 %v5489, %v5215
        %v5522 = vmul.f32 %v5490, %v5217
        %v5523 = vmul.f32 %v5491, %v5219
        %v5524 = vmul.f32 %v5492, %v5221
        %v5525 = vmul.f32 %v5493, %v5223
        %v5526 = vmul.f32 %v5494, %v5225
        %v5527 = vmul.f32 %v5495, %v5227
        %v5528 = vmul.f32 %v5496, %v5229
        %v5529 = vmul.f32 %v5497, %v5231
        %v5530 = vmul.f32 %v5498, %v5233
        %v5531 = vmul.f32 %v5499, %v5235
        %v5532 = vmul.f32 %v5500, %v5237
        %v5533 = vmul.f32 %v5501, %v5239
        %v5534 = vmul.f32 %v5502, %v5241
        %v5535 = vmul.f32 %v5503, %v5243
        %v5536 = vmul.f32 %v5504, %v5245
        %v5537 = vmul.f32 %v5505, %v5247
        %v5538 = vmul.f32 %v5506, %v5249
        %v5539 = vmul.f32 %v5507, %v5251
        %v5540 = vmul.f32 %v5092, %v5092
        %v5541 = vmul.f32 %v5093, %v5093
        %v5542 = vmul.f32 %v5094, %v5094
        %v5543 = vmul.f32 %v5095, %v5095
        %v5544 = vmul.f32 %v5096, %v5096
        %v5545 = vmul.f32 %v5097, %v5097
        %v5546 = vmul.f32 %v5098, %v5098
        %v5547 = vmul.f32 %v5099, %v5099
        %v5548 = vmul.f32 %v5100, %v5100
        %v5549 = vmul.f32 %v5101, %v5101
        %v5550 = vmul.f32 %v5102, %v5102
        %v5551 = vmul.f32 %v5103, %v5103
        %v5552 = vmul.f32 %v5104, %v5104
        %v5553 = vmul.f32 %v5105, %v5105
        %v5554 = vmul.f32 %v5106, %v5106
        %v5555 = vmul.f32 %v5107, %v5107
        %v5556 = vmul.f32 %v5108, %v5108
        %v5557 = vmul.f32 %v5109, %v5109
        %v5558 = vmul.f32 %v5110, %v5110
        %v5559 = vmul.f32 %v5111, %v5111
        %v5560 = vmul.f32 %v5112, %v5112
        %v5561 = vmul.f32 %v5113, %v5113
        %v5562 = vmul.f32 %v5114, %v5114
        %v5563 = vmul.f32 %v5115, %v5115
        %v5564 = vmul.f32 %v5116, %v5116
        %v5565 = vmul.f32 %v5117, %v5117
        %v5566 = vmul.f32 %v5118, %v5118
        %v5567 = vmul.f32 %v5119, %v5119
        %v5568 = vmul.f32 %v5120, %v5120
        %v5569 = vmul.f32 %v5121, %v5121
        %v5570 = vmul.f32 %v5122, %v5122
        %v5571 = vmul.f32 %v5123, %v5123
        %v5572 = vsub.f32 0.0, %v5540
        %v5573 = vsub.f32 0.0, %v5541
        %v5574 = vsub.f32 0.0, %v5542
        %v5575 = vsub.f32 0.0, %v5543
        %v5576 = vsub.f32 0.0, %v5544
        %v5577 = vsub.f32 0.0, %v5545
        %v5578 = vsub.f32 0.0, %v5546
        %v5579 = vsub.f32 0.0, %v5547
        %v5580 = vsub.f32 0.0, %v5548
        %v5581 = vsub.f32 0.0, %v5549
        %v5582 = vsub.f32 0.0, %v5550
        %v5583 = vsub.f32 0.0, %v5551
        %v5584 = vsub.f32 0.0, %v5552
        %v5585 = vsub.f32 0.0, %v5553
        %v5586 = vsub.f32 0.0, %v5554
        %v5587 = vsub.f32 0.0, %v5555
        %v5588 = vsub.f32 0.0, %v5556
        %v5589 = vsub.f32 0.0, %v5557
        %v5590 = vsub.f32 0.0, %v5558
        %v5591 = vsub.f32 0.0, %v5559
        %v5592 = vsub.f32 0.0, %v5560
        %v5593 = vsub.f32 0.0, %v5561
        %v5594 = vsub.f32 0.0, %v5562
        %v5595 = vsub.f32 0.0, %v5563
        %v5596 = vsub.f32 0.0, %v5564
        %v5597 = vsub.f32 0.0, %v5565
        %v5598 = vsub.f32 0.0, %v5566
        %v5599 = vsub.f32 0.0, %v5567
        %v5600 = vsub.f32 0.0, %v5568
        %v5601 = vsub.f32 0.0, %v5569
        %v5602 = vsub.f32 0.0, %v5570
        %v5603 = vsub.f32 0.0, %v5571
        %v5604 = vmul.f32 %v5572, 1.442695
        %v5605 = vpow.pop %v5604
        %v5606 = vmul.f32 %v5573, 1.442695
        %v5607 = vpow.pop %v5606
        %v5608 = vmul.f32 %v5574, 1.442695
        %v5609 = vpow.pop %v5608
        %v5610 = vmul.f32 %v5575, 1.442695
        %v5611 = vpow.pop %v5610
        %v5612 = vmul.f32 %v5576, 1.442695
        %v5613 = vpow.pop %v5612
        %v5614 = vmul.f32 %v5577, 1.442695
        %v5615 = vpow.pop %v5614
        %v5616 = vmul.f32 %v5578, 1.442695
        %v5617 = vpow.pop %v5616
        %v5618 = vmul.f32 %v5579, 1.442695
        %v5619 = vpow.pop %v5618
        %v5620 = vmul.f32 %v5580, 1.442695
        %v5621 = vpow.pop %v5620
        %v5622 = vmul.f32 %v5581, 1.442695
        %v5623 = vpow.pop %v5622
        %v5624 = vmul.f32 %v5582, 1.442695
        %v5625 = vpow.pop %v5624
        %v5626 = vmul.f32 %v5583, 1.442695
        %v5627 = vpow.pop %v5626
        %v5628 = vmul.f32 %v5584, 1.442695
        %v5629 = vpow.pop %v5628
        %v5630 = vmul.f32 %v5585, 1.442695
        %v5631 = vpow.pop %v5630
        %v5632 = vmul.f32 %v5586, 1.442695
        %v5633 = vpow.pop %v5632
        %v5634 = vmul.f32 %v5587, 1.442695
        %v5635 = vpow.pop %v5634
        %v5636 = vmul.f32 %v5588, 1.442695
        %v5637 = vpow.pop %v5636
        %v5638 = vmul.f32 %v5589, 1.442695
        %v5639 = vpow.pop %v5638
        %v5640 = vmul.f32 %v5590, 1.442695
        %v5641 = vpow.pop %v5640
        %v5642 = vmul.f32 %v5591, 1.442695
        %v5643 = vpow.pop %v5642
        %v5644 = vmul.f32 %v5592, 1.442695
        %v5645 = vpow.pop %v5644
        %v5646 = vmul.f32 %v5593, 1.442695
        %v5647 = vpow.pop %v5646
        %v5648 = vmul.f32 %v5594, 1.442695
        %v5649 = vpow.pop %v5648
        %v5650 = vmul.f32 %v5595, 1.442695
        %v5651 = vpow.pop %v5650
        %v5652 = vmul.f32 %v5596, 1.442695
        %v5653 = vpow.pop %v5652
        %v5654 = vmul.f32 %v5597, 1.442695
        %v5655 = vpow.pop %v5654
        %v5656 = vmul.f32 %v5598, 1.442695
        %v5657 = vpow.pop %v5656
        %v5658 = vmul.f32 %v5599, 1.442695
        %v5659 = vpow.pop %v5658
        %v5660 = vmul.f32 %v5600, 1.442695
        %v5661 = vpow.pop %v5660
        %v5662 = vmul.f32 %v5601, 1.442695
        %v5663 = vpow.pop %v5662
        %v5664 = vmul.f32 %v5602, 1.442695
        %v5665 = vpow.pop %v5664
        %v5666 = vmul.f32 %v5603, 1.442695
        %v5667 = vpow.pop %v5666
        %v5668 = vmul.f32 %v5508, %v5605
        %v5669 = vmul.f32 %v5509, %v5607
        %v5670 = vmul.f32 %v5510, %v5609
        %v5671 = vmul.f32 %v5511, %v5611
        %v5672 = vmul.f32 %v5512, %v5613
        %v5673 = vmul.f32 %v5513, %v5615
        %v5674 = vmul.f32 %v5514, %v5617
        %v5675 = vmul.f32 %v5515, %v5619
        %v5676 = vmul.f32 %v5516, %v5621
        %v5677 = vmul.f32 %v5517, %v5623
        %v5678 = vmul.f32 %v5518, %v5625
        %v5679 = vmul.f32 %v5519, %v5627
        %v5680 = vmul.f32 %v5520, %v5629
        %v5681 = vmul.f32 %v5521, %v5631
        %v5682 = vmul.f32 %v5522, %v5633
        %v5683 = vmul.f32 %v5523, %v5635
        %v5684 = vmul.f32 %v5524, %v5637
        %v5685 = vmul.f32 %v5525, %v5639
        %v5686 = vmul.f32 %v5526, %v5641
        %v5687 = vmul.f32 %v5527, %v5643
        %v5688 = vmul.f32 %v5528, %v5645
        %v5689 = vmul.f32 %v5529, %v5647
        %v5690 = vmul.f32 %v5530, %v5649
        %v5691 = vmul.f32 %v5531, %v5651
        %v5692 = vmul.f32 %v5532, %v5653
        %v5693 = vmul.f32 %v5533, %v5655
        %v5694 = vmul.f32 %v5534, %v5657
        %v5695 = vmul.f32 %v5535, %v5659
        %v5696 = vmul.f32 %v5536, %v5661
        %v5697 = vmul.f32 %v5537, %v5663
        %v5698 = vmul.f32 %v5538, %v5665
        %v5699 = vmul.f32 %v5539, %v5667
        %v5700 = vsub.f32 1.0, %v5668
        %v5701 = vsub.f32 1.0, %v5669
        %v5702 = vsub.f32 1.0, %v5670
        %v5703 = vsub.f32 1.0, %v5671
        %v5704 = vsub.f32 1.0, %v5672
        %v5705 = vsub.f32 1.0, %v5673
        %v5706 = vsub.f32 1.0, %v5674
        %v5707 = vsub.f32 1.0, %v5675
        %v5708 = vsub.f32 1.0, %v5676
        %v5709 = vsub.f32 1.0, %v5677
        %v5710 = vsub.f32 1.0, %v5678
        %v5711 = vsub.f32 1.0, %v5679
        %v5712 = vsub.f32 1.0, %v5680
        %v5713 = vsub.f32 1.0, %v5681
        %v5714 = vsub.f32 1.0, %v5682
        %v5715 = vsub.f32 1.0, %v5683
        %v5716 = vsub.f32 1.0, %v5684
        %v5717 = vsub.f32 1.0, %v5685
        %v5718 = vsub.f32 1.0, %v5686
        %v5719 = vsub.f32 1.0, %v5687
        %v5720 = vsub.f32 1.0, %v5688
        %v5721 = vsub.f32 1.0, %v5689
        %v5722 = vsub.f32 1.0, %v5690
        %v5723 = vsub.f32 1.0, %v5691
        %v5724 = vsub.f32 1.0, %v5692
        %v5725 = vsub.f32 1.0, %v5693
        %v5726 = vsub.f32 1.0, %v5694
        %v5727 = vsub.f32 1.0, %v5695
        %v5728 = vsub.f32 1.0, %v5696
        %v5729 = vsub.f32 1.0, %v5697
        %v5730 = vsub.f32 1.0, %v5698
        %v5731 = vsub.f32 1.0, %v5699
        %vm5732 = vcmp.lt.f32.partialorder %v5060, 0.0
        %vm5733 = vcmp.lt.f32.partialorder %v5061, 0.0
        %vm5734 = vcmp.lt.f32.partialorder %v5062, 0.0
        %vm5735 = vcmp.lt.f32.partialorder %v5063, 0.0
        %vm5736 = vcmp.lt.f32.partialorder %v5064, 0.0
        %vm5737 = vcmp.lt.f32.partialorder %v5065, 0.0
        %vm5738 = vcmp.lt.f32.partialorder %v5066, 0.0
        %vm5739 = vcmp.lt.f32.partialorder %v5067, 0.0
        %vm5740 = vcmp.lt.f32.partialorder %v5068, 0.0
        %vm5741 = vcmp.lt.f32.partialorder %v5069, 0.0
        %vm5742 = vcmp.lt.f32.partialorder %v5070, 0.0
        %vm5743 = vcmp.lt.f32.partialorder %v5071, 0.0
        %vm5744 = vcmp.lt.f32.partialorder %v5072, 0.0
        %vm5745 = vcmp.lt.f32.partialorder %v5073, 0.0
        %vm5746 = vcmp.lt.f32.partialorder %v5074, 0.0
        %vm5747 = vcmp.lt.f32.partialorder %v5075, 0.0
        %vm5748 = vcmp.lt.f32.partialorder %v5076, 0.0
        %vm5749 = vcmp.lt.f32.partialorder %v5077, 0.0
        %vm5750 = vcmp.lt.f32.partialorder %v5078, 0.0
        %vm5751 = vcmp.lt.f32.partialorder %v5079, 0.0
        %vm5752 = vcmp.lt.f32.partialorder %v5080, 0.0
        %vm5753 = vcmp.lt.f32.partialorder %v5081, 0.0
        %vm5754 = vcmp.lt.f32.partialorder %v5082, 0.0
        %vm5755 = vcmp.lt.f32.partialorder %v5083, 0.0
        %vm5756 = vcmp.lt.f32.partialorder %v5084, 0.0
        %vm5757 = vcmp.lt.f32.partialorder %v5085, 0.0
        %vm5758 = vcmp.lt.f32.partialorder %v5086, 0.0
        %vm5759 = vcmp.lt.f32.partialorder %v5087, 0.0
        %vm5760 = vcmp.lt.f32.partialorder %v5088, 0.0
        %vm5761 = vcmp.lt.f32.partialorder %v5089, 0.0
        %vm5762 = vcmp.lt.f32.partialorder %v5090, 0.0
        %vm5763 = vcmp.lt.f32.partialorder %v5091, 0.0
        %v5764 = vsub.f32 0.0, %v5700
        %v5765 = vsub.f32 0.0, %v5701
        %v5766 = vsub.f32 0.0, %v5702
        %v5767 = vsub.f32 0.0, %v5703
        %v5768 = vsub.f32 0.0, %v5704
        %v5769 = vsub.f32 0.0, %v5705
        %v5770 = vsub.f32 0.0, %v5706
        %v5771 = vsub.f32 0.0, %v5707
        %v5772 = vsub.f32 0.0, %v5708
        %v5773 = vsub.f32 0.0, %v5709
        %v5774 = vsub.f32 0.0, %v5710
        %v5775 = vsub.f32 0.0, %v5711
        %v5776 = vsub.f32 0.0, %v5712
        %v5777 = vsub.f32 0.0, %v5713
        %v5778 = vsub.f32 0.0, %v5714
        %v5779 = vsub.f32 0.0, %v5715
        %v5780 = vsub.f32 0.0, %v5716
        %v5781 = vsub.f32 0.0, %v5717
        %v5782 = vsub.f32 0.0, %v5718
        %v5783 = vsub.f32 0.0, %v5719
        %v5784 = vsub.f32 0.0, %v5720
        %v5785 = vsub.f32 0.0, %v5721
        %v5786 = vsub.f32 0.0, %v5722
        %v5787 = vsub.f32 0.0, %v5723
        %v5788 = vsub.f32 0.0, %v5724
        %v5789 = vsub.f32 0.0, %v5725
        %v5790 = vsub.f32 0.0, %v5726
        %v5791 = vsub.f32 0.0, %v5727
        %v5792 = vsub.f32 0.0, %v5728
        %v5793 = vsub.f32 0.0, %v5729
        %v5794 = vsub.f32 0.0, %v5730
        %v5795 = vsub.f32 0.0, %v5731
        %v5796 = vsel %vm5732, %v5764, %v5700
        %v5797 = vsel %vm5733, %v5765, %v5701
        %v5798 = vsel %vm5734, %v5766, %v5702
        %v5799 = vsel %vm5735, %v5767, %v5703
        %v5800 = vsel %vm5736, %v5768, %v5704
        %v5801 = vsel %vm5737, %v5769, %v5705
        %v5802 = vsel %vm5738, %v5770, %v5706
        %v5803 = vsel %vm5739, %v5771, %v5707
        %v5804 = vsel %vm5740, %v5772, %v5708
        %v5805 = vsel %vm5741, %v5773, %v5709
        %v5806 = vsel %vm5742, %v5774, %v5710
        %v5807 = vsel %vm5743, %v5775, %v5711
        %v5808 = vsel %vm5744, %v5776, %v5712
        %v5809 = vsel %vm5745, %v5777, %v5713
        %v5810 = vsel %vm5746, %v5778, %v5714
        %v5811 = vsel %vm5747, %v5779, %v5715
        %v5812 = vsel %vm5748, %v5780, %v5716
        %v5813 = vsel %vm5749, %v5781, %v5717
        %v5814 = vsel %vm5750, %v5782, %v5718
        %v5815 = vsel %vm5751, %v5783, %v5719
        %v5816 = vsel %vm5752, %v5784, %v5720
        %v5817 = vsel %vm5753, %v5785, %v5721
        %v5818 = vsel %vm5754, %v5786, %v5722
        %v5819 = vsel %vm5755, %v5787, %v5723
        %v5820 = vsel %vm5756, %v5788, %v5724
        %v5821 = vsel %vm5757, %v5789, %v5725
        %v5822 = vsel %vm5758, %v5790, %v5726
        %v5823 = vsel %vm5759, %v5791, %v5727
        %v5824 = vsel %vm5760, %v5792, %v5728
        %v5825 = vsel %vm5761, %v5793, %v5729
        %v5826 = vsel %vm5762, %v5794, %v5730
        %v5827 = vsel %vm5763, %v5795, %v5731
        %v5828 = vadd.f32 %v5796, 1.0
        %v5829 = vadd.f32 %v5797, 1.0
        %v5830 = vadd.f32 %v5798, 1.0
        %v5831 = vadd.f32 %v5799, 1.0
        %v5832 = vadd.f32 %v5800, 1.0
        %v5833 = vadd.f32 %v5801, 1.0
        %v5834 = vadd.f32 %v5802, 1.0
        %v5835 = vadd.f32 %v5803, 1.0
        %v5836 = vadd.f32 %v5804, 1.0
        %v5837 = vadd.f32 %v5805, 1.0
        %v5838 = vadd.f32 %v5806, 1.0
        %v5839 = vadd.f32 %v5807, 1.0
        %v5840 = vadd.f32 %v5808, 1.0
        %v5841 = vadd.f32 %v5809, 1.0
        %v5842 = vadd.f32 %v5810, 1.0
        %v5843 = vadd.f32 %v5811, 1.0
        %v5844 = vadd.f32 %v5812, 1.0
        %v5845 = vadd.f32 %v5813, 1.0
        %v5846 = vadd.f32 %v5814, 1.0
        %v5847 = vadd.f32 %v5815, 1.0
        %v5848 = vadd.f32 %v5816, 1.0
        %v5849 = vadd.f32 %v5817, 1.0
        %v5850 = vadd.f32 %v5818, 1.0
        %v5851 = vadd.f32 %v5819, 1.0
        %v5852 = vadd.f32 %v5820, 1.0
        %v5853 = vadd.f32 %v5821, 1.0
        %v5854 = vadd.f32 %v5822, 1.0
        %v5855 = vadd.f32 %v5823, 1.0
        %v5856 = vadd.f32 %v5824, 1.0
        %v5857 = vadd.f32 %v5825, 1.0
        %v5858 = vadd.f32 %v5826, 1.0
        %v5859 = vadd.f32 %v5827, 1.0
        %v5860 = vmul.f32 %v5028, %v5828
        %v5861 = vmul.f32 %v5029, %v5829
        %v5862 = vmul.f32 %v5030, %v5830
        %v5863 = vmul.f32 %v5031, %v5831
        %v5864 = vmul.f32 %v5032, %v5832
        %v5865 = vmul.f32 %v5033, %v5833
        %v5866 = vmul.f32 %v5034, %v5834
        %v5867 = vmul.f32 %v5035, %v5835
        %v5868 = vmul.f32 %v5036, %v5836
        %v5869 = vmul.f32 %v5037, %v5837
        %v5870 = vmul.f32 %v5038, %v5838
        %v5871 = vmul.f32 %v5039, %v5839
        %v5872 = vmul.f32 %v5040, %v5840
        %v5873 = vmul.f32 %v5041, %v5841
        %v5874 = vmul.f32 %v5042, %v5842
        %v5875 = vmul.f32 %v5043, %v5843
        %v5876 = vmul.f32 %v5044, %v5844
        %v5877 = vmul.f32 %v5045, %v5845
        %v5878 = vmul.f32 %v5046, %v5846
        %v5879 = vmul.f32 %v5047, %v5847
        %v5880 = vmul.f32 %v5048, %v5848
        %v5881 = vmul.f32 %v5049, %v5849
        %v5882 = vmul.f32 %v5050, %v5850
        %v5883 = vmul.f32 %v5051, %v5851
        %v5884 = vmul.f32 %v5052, %v5852
        %v5885 = vmul.f32 %v5053, %v5853
        %v5886 = vmul.f32 %v5054, %v5854
        %v5887 = vmul.f32 %v5055, %v5855
        %v5888 = vmul.f32 %v5056, %v5856
        %v5889 = vmul.f32 %v5057, %v5857
        %v5890 = vmul.f32 %v5058, %v5858
        %v5891 = vmul.f32 %v5059, %v5859
        %5892 = vst [vmem:[%s271] sm:$0xff] %v5860
        %5893 = vst [vmem:[%s271 + $0x8] sm:$0xff] %v5861
        %5894 = vst [vmem:[%s271 + $0x10] sm:$0xff] %v5862
        %5895 = vst [vmem:[%s271 + $0x18] sm:$0xff] %v5863
        %5896 = vst [vmem:[%s271 + $0x20] sm:$0xff] %v5864
        %5897 = vst [vmem:[%s271 + $0x28] sm:$0xff] %v5865
        %5898 = vst [vmem:[%s271 + $0x30] sm:$0xff] %v5866
        %5899 = vst [vmem:[%s271 + $0x38] sm:$0xff] %v5867
        %5900 = vst [vmem:[%s271 + $0x40] sm:$0xff] %v5868
        %5901 = vst [vmem:[%s271 + $0x48] sm:$0xff] %v5869
        %5902 = vst [vmem:[%s271 + $0x50] sm:$0xff] %v5870
        %5903 = vst [vmem:[%s271 + $0x58] sm:$0xff] %v5871
        %5904 = vst [vmem:[%s271 + $0x60] sm:$0xff] %v5872
        %5905 = vst [vmem:[%s271 + $0x68] sm:$0xff] %v5873
        %5906 = vst [vmem:[%s271 + $0x70] sm:$0xff] %v5874
        %5907 = vst [vmem:[%s271 + $0x78] sm:$0xff] %v5875
        %5908 = vst [vmem:[%s271 + $0x80] sm:$0xff] %v5876
        %5909 = vst [vmem:[%s271 + $0x88] sm:$0xff] %v5877
        %5910 = vst [vmem:[%s271 + $0x90] sm:$0xff] %v5878
        %5911 = vst [vmem:[%s271 + $0x98] sm:$0xff] %v5879
        %5912 = vst [vmem:[%s271 + $0xa0] sm:$0xff] %v5880
        %5913 = vst [vmem:[%s271 + $0xa8] sm:$0xff] %v5881
        %5914 = vst [vmem:[%s271 + $0xb0] sm:$0xff] %v5882
        %5915 = vst [vmem:[%s271 + $0xb8] sm:$0xff] %v5883
        %5916 = vst [vmem:[%s271 + $0xc0] sm:$0xff] %v5884
        %5917 = vst [vmem:[%s271 + $0xc8] sm:$0xff] %v5885
        %5918 = vst [vmem:[%s271 + $0xd0] sm:$0xff] %v5886
        %5919 = vst [vmem:[%s271 + $0xd8] sm:$0xff] %v5887
        %5920 = vst [vmem:[%s271 + $0xe0] sm:$0xff] %v5888
        %5921 = vst [vmem:[%s271 + $0xe8] sm:$0xff] %v5889
        %5922 = vst [vmem:[%s271 + $0xf0] sm:$0xff] %v5890
        %5923 = vst [vmem:[%s271 + $0xf8] sm:$0xff] %v5891
        %s5924 = sand.u32 %s141, 1
        %s5925 = scalar_lea.sflag [#allocation4], %s5924
        %s5926 = sand.u32 %s141, 1
        %s5927 = smul.addr %s5926, 256
        %s5928 = scalar_lea.vmem [#allocation8], %s5927
        // Predicated region
        $region53: #{_mlp_pallas_jit.1} parent=39 // pred_check
          %p5929 = pneg %p151
        $region54: #{_mlp_pallas_jit.1} parent=39 // pred_check_branch
          %5931 = sbr.rel (%p5929) target = $region56
        $region55: #{_mlp_pallas_jit.1} parent=39 // pred_region
          %s5932 = smul.u32 32, %s23
          %s5934 = ssub.s32 4096, 4096
          %5935 = vsyncadd %s5925, %s5934
          %s5936 = smul.addr %s5932, 128
          %s5937 = scalar_lea.hbm %s5, %s5936
          %s5938 = sshll.u32 %s5928, 4
          %s5939 = int_to_ptr.vmem [resolvable:$true] %s5938
          %5944 = dma.vmem_to_hbm [thread:$0]  %s5939, 4096, %s5937, %s5925, 128, 128, 8
        $region56: #{_mlp_pallas_jit.1} parent=39 // pred_fallthru
          _
      $region40: #{_mlp_pallas_jit.1} parent=5 // pred_fallthru
        _
      %p5945 = scmp.le.s32.totalorder 2, %s18
      // Predicated region
      $region57: #{_mlp_pallas_jit.1} parent=5 // pred_check
        %p5946 = pneg %p5945
      $region58: #{_mlp_pallas_jit.1} parent=5 // pred_check_branch
        %5948 = sbr.rel (%p5946) target = $region60
      $region59: #{_mlp_pallas_jit.1} parent=5 // pred_region
        %s5949 = ssub.s32 %s18, 2
        // Predicated region
        $region61: #{_mlp_pallas_jit.1} parent=59 // pred_check
          %p5950 = pneg %p157
        $region62: #{_mlp_pallas_jit.1} parent=59 // pred_check_branch
          %5952 = sbr.rel (%p5950) target = $region64
        $region63: #{_mlp_pallas_jit.1} parent=59 // pred_region
          %s5953 = sand.u32 %s142, 1
          %s5954 = scalar_lea.sflag [#allocation4], %s5953
          %s5955 = sand.u32 %s142, 1
          %s5956 = smul.addr %s5955, 256
          %s5957 = scalar_lea.vmem [#allocation8], %s5956
          %5958 = dma.done %s5954, 4096
        $region64: #{_mlp_pallas_jit.1} parent=59 // pred_fallthru
          _
      $region60: #{_mlp_pallas_jit.1} parent=5 // pred_fallthru
        _
    $region6: #{_mlp_pallas_jit.1} parent=1 // loop_footer
      %s22 = sadd.s32 1, %s18
    $region7: #{_mlp_pallas_jit.1} parent=1 // loop_footer_branch
      %17 = sbr.rel target = $region3
    $region8: #{_mlp_pallas_jit.1} parent=1 // loop_exit
      _
    %5959 = vsyncpa [#allocation3], 1
    %s5960 = scalar_lea.sflag [#allocation3], 1
    %5961 = vsyncpa %s5960, 1
    %5962 = vsyncpa [#allocation6], 1
    %5963 = vsyncpa [#allocation4], 1
    %s5964 = scalar_lea.sflag [#allocation4], 1
    %5965 = vsyncpa %s5964, 1

</llo_original>
